<compile_context>
chip_gen: v7x
topology: tpu7x:2x2x1
jax: 0.10.0
libtpu: 0.0.40
codegen_flags: <defaults>
</compile_context>

<pallas_src>
import functools
import math

import jax
import jax.numpy as jnp
from jax.experimental import pallas as pl
from jax.experimental.pallas import tpu as pltpu


# ---------------------------------------------------------------------------
# Generation-dependent tuning knobs
# ---------------------------------------------------------------------------

def _default_vmem_limit():
    """Scoped-VMEM limit keyed off the chip (v5e/v6e: 128 MiB physical, v7x: 64 MiB/TC)."""
    cap = None
    try:
        info_fn = getattr(pltpu, "get_tpu_info", None)
        if info_fn is not None:
            cap = getattr(info_fn(), "vmem_capacity_bytes", None)
    except Exception:
        cap = None
    if cap is not None and cap >= 100 * 1024 * 1024:
        return 96 * 1024 * 1024          # v5e / v6e: plenty of headroom below 128 MiB
    return 48 * 1024 * 1024              # v7x (64 MiB/TC) or unknown: stay conservative


_VMEM_LIMIT = _default_vmem_limit()
# Budget for keeping a whole weight slab resident in VMEM (plus double-buffered act/out blocks).
_RESIDENT_BUDGET = min(40 * 1024 * 1024, int(0.6 * _VMEM_LIMIT))
# Bigger M tiles only where VMEM is plentiful (v5e/v6e); cap at 256 on v7x / unknown.
_TM_CANDIDATES = ((512, 256, 128, 64, 32, 16, 8) if _VMEM_LIMIT >= 80 * 1024 * 1024
                  else (256, 128, 64, 32, 16, 8))


def _pick_tile(dim, candidates):
    """Largest candidate tile that evenly divides `dim`, else the full dim."""
    for c in candidates:
        if c <= dim and dim % c == 0:
            return c
    return dim


def _pick_resident_tm(m, kdim, n, x_bytes, extra_row_bytes, w_bytes):
    """Largest M tile for which a fully VMEM-resident weight slab fits the budget, else None."""
    def fits(tm):
        est = (2 * w_bytes                       # weight slab (conservatively double-counted)
               + 2 * tm * kdim * x_bytes         # activation block, double-buffered
               + 2 * tm * extra_row_bytes        # residual / extra per-row inputs
               + 3 * tm * n * 4)                 # f32 compute intermediate + output buffers
        return est <= _RESIDENT_BUDGET
    for tm in _TM_CANDIDATES:
        if tm <= m and m % tm == 0 and fits(tm):
            return tm
    if fits(m):
        return m
    return None


def _round_up(v, mult):
    return ((v + mult - 1) // mult) * mult


def _heads_per_group(num_heads):
    # Pair heads so per-group Q/K/V/context slabs are 2*head_dim lanes wide
    # (128 lanes for BERT's head_dim=64 -> unmasked, 128-aligned loads/stores).
    return 2 if num_heads % 2 == 0 else 1


# ---------------------------------------------------------------------------
# In-kernel math helpers
# ---------------------------------------------------------------------------

_SQRT1_2 = 0.7071067811865476


def _erf_poly(x):
    # Abramowitz & Stegun 7.1.26 polynomial approximation of erf, |error| < 1.5e-7.
    a1, a2, a3, a4, a5 = 0.254829592, -0.284496736, 1.421413741, -1.453152027, 1.061405429
    p = 0.3275911
    sgn = jnp.where(x < 0.0, -1.0, 1.0)
    ax = jnp.abs(x)
    t = 1.0 / (1.0 + p * ax)
    poly = ((((a5 * t + a4) * t + a3) * t + a2) * t + a1) * t
    return sgn * (1.0 - poly * jnp.exp(-ax * ax))


def _gelu_erf(x):
    # exact-erf GELU (matches torch.nn.functional.gelu default) via polynomial erf
    return 0.5 * x * (1.0 + _erf_poly(x * _SQRT1_2))


def _to_bf16(x):
    return x if x.dtype == jnp.bfloat16 else x.astype(jnp.bfloat16)


# ---------------------------------------------------------------------------
# Matmul kernels — weight-resident primary path, K-tiled fallback
# ---------------------------------------------------------------------------

def _linear_resident_kernel(x_ref, w_ref, b_ref, o_ref, *, activation):
    y = jnp.dot(_to_bf16(x_ref[...]), w_ref[...],
                preferred_element_type=jnp.float32) + b_ref[...]
    if activation == "gelu":
        y = _gelu_erf(y)
    o_ref[...] = y.astype(o_ref.dtype)


def _linear_tiled_kernel(x_ref, w_ref, b_ref, o_ref, acc_ref, *, activation):
    @pl.when(pl.program_id(2) == 0)
    def _():
        acc_ref[...] = jnp.zeros_like(acc_ref)

    acc_ref[...] += jnp.dot(_to_bf16(x_ref[...]), w_ref[...],
                            preferred_element_type=jnp.float32)

    @pl.when(pl.program_id(2) == pl.num_programs(2) - 1)
    def _():
        y = acc_ref[...] + b_ref[...]
        if activation == "gelu":
            y = _gelu_erf(y)
        o_ref[...] = y.astype(o_ref.dtype)


def linear(x, w, b, activation=None, out_dtype=jnp.bfloat16):
    """y = act(x @ w + b).  bf16 MXU operands, f32 accumulation, weight resident in VMEM."""
    m, kdim = x.shape
    n = w.shape[1]
    x_bytes = jnp.dtype(x.dtype).itemsize
    w_bytes = kdim * n * jnp.dtype(w.dtype).itemsize

    tm = _pick_resident_tm(m, kdim, n, x_bytes, extra_row_bytes=0, w_bytes=w_bytes)
    if tm is not None:
        kern = functools.partial(_linear_resident_kernel, activation=activation)
        return pl.pallas_call(
            kern,
            grid=(m // tm,),
            out_shape=jax.ShapeDtypeStruct((m, n), out_dtype),
            in_specs=[
                pl.BlockSpec((tm, kdim), lambda i: (i, 0)),
                pl.BlockSpec((kdim, n), lambda i: (0, 0)),     # grid-invariant: DMA'd once
                pl.BlockSpec((1, n), lambda i: (0, 0)),
            ],
            out_specs=pl.BlockSpec((tm, n), lambda i: (i, 0)),
            compiler_params=pltpu.CompilerParams(
                dimension_semantics=("parallel",),
                vmem_limit_bytes=_VMEM_LIMIT),
        )(x, w, b.reshape(1, n))

    # Fallback (weight too large for residence): K/N-tiled with f32 scratch accumulator.
    tm = _pick_tile(m, _TM_CANDIDATES)
    tn = _pick_tile(n, (512, 256, 128))
    tk = _pick_tile(kdim, (512, 256, 128))
    kern = functools.partial(_linear_tiled_kernel, activation=activation)
    return pl.pallas_call(
        kern,
        grid=(m // tm, n // tn, kdim // tk),
        out_shape=jax.ShapeDtypeStruct((m, n), out_dtype),
        in_specs=[
            pl.BlockSpec((tm, tk), lambda i, j, k: (i, k)),
            pl.BlockSpec((tk, tn), lambda i, j, k: (k, j)),
            pl.BlockSpec((1, tn), lambda i, j, k: (0, j)),
        ],
        out_specs=pl.BlockSpec((tm, tn), lambda i, j, k: (i, j)),
        scratch_shapes=[pltpu.VMEM((tm, tn), jnp.float32)],
        compiler_params=pltpu.CompilerParams(
            dimension_semantics=("parallel", "parallel", "arbitrary"),
            vmem_limit_bytes=_VMEM_LIMIT),
    )(x, w, b.reshape(1, n))


def _linear_add_ln_resident_kernel(x_ref, w_ref, b_ref, r_ref, g_ref, be_ref, o_ref, *, eps):
    h = (jnp.dot(_to_bf16(x_ref[...]), w_ref[...], preferred_element_type=jnp.float32)
         + b_ref[...] + r_ref[...].astype(jnp.float32))
    mu = jnp.mean(h, axis=-1, keepdims=True)
    var = jnp.mean(jnp.square(h - mu), axis=-1, keepdims=True)
    o_ref[...] = ((h - mu) * jax.lax.rsqrt(var + eps) * g_ref[...]
                  + be_ref[...]).astype(o_ref.dtype)


def _linear_add_ln_tiled_kernel(x_ref, w_ref, b_ref, r_ref, g_ref, be_ref, o_ref, acc_ref, *, eps):
    @pl.when(pl.program_id(1) == 0)
    def _():
        acc_ref[...] = jnp.zeros_like(acc_ref)

    acc_ref[...] += jnp.dot(_to_bf16(x_ref[...]), w_ref[...],
                            preferred_element_type=jnp.float32)

    @pl.when(pl.program_id(1) == pl.num_programs(1) - 1)
    def _():
        h = acc_ref[...] + b_ref[...] + r_ref[...].astype(jnp.float32)
        mu = jnp.mean(h, axis=-1, keepdims=True)
        var = jnp.mean(jnp.square(h - mu), axis=-1, keepdims=True)
        o_ref[...] = ((h - mu) * jax.lax.rsqrt(var + eps) * g_ref[...]
                      + be_ref[...]).astype(o_ref.dtype)


def linear_add_ln(x, w, b, residual, gamma, beta, eps=1e-12, out_dtype=jnp.bfloat16):
    """LayerNorm(x @ w + b + residual) — BertSelfOutput / BertOutput fused.

    Residual add and LN statistics run in f32 regardless of the (bf16) storage dtypes."""
    m, kdim = x.shape
    n = w.shape[1]
    x_bytes = jnp.dtype(x.dtype).itemsize
    r_bytes = jnp.dtype(residual.dtype).itemsize
    w_bytes = kdim * n * jnp.dtype(w.dtype).itemsize

    tm = _pick_resident_tm(m, kdim, n, x_bytes, extra_row_bytes=n * r_bytes, w_bytes=w_bytes)
    if tm is not None:
        kern = functools.partial(_linear_add_ln_resident_kernel, eps=eps)
        return pl.pallas_call(
            kern,
            grid=(m // tm,),
            out_shape=jax.ShapeDtypeStruct((m, n), out_dtype),
            in_specs=[
                pl.BlockSpec((tm, kdim), lambda i: (i, 0)),
                pl.BlockSpec((kdim, n), lambda i: (0, 0)),     # grid-invariant weight
                pl.BlockSpec((1, n), lambda i: (0, 0)),
                pl.BlockSpec((tm, n), lambda i: (i, 0)),
                pl.BlockSpec((1, n), lambda i: (0, 0)),
                pl.BlockSpec((1, n), lambda i: (0, 0)),
            ],
            out_specs=pl.BlockSpec((tm, n), lambda i: (i, 0)),
            compiler_params=pltpu.CompilerParams(
                dimension_semantics=("parallel",),
                vmem_limit_bytes=_VMEM_LIMIT),
        )(x, w, b.reshape(1, n), residual, gamma.reshape(1, n), beta.reshape(1, n))

    # Fallback: K-tiled with f32 scratch accumulator.
    tm = _pick_tile(m, _TM_CANDIDATES)
    tk = _pick_tile(kdim, (512, 256, 128))
    kern = functools.partial(_linear_add_ln_tiled_kernel, eps=eps)
    return pl.pallas_call(
        kern,
        grid=(m // tm, kdim // tk),
        out_shape=jax.ShapeDtypeStruct((m, n), out_dtype),
        in_specs=[
            pl.BlockSpec((tm, tk), lambda i, k: (i, k)),
            pl.BlockSpec((tk, n), lambda i, k: (k, 0)),
            pl.BlockSpec((1, n), lambda i, k: (0, 0)),
            pl.BlockSpec((tm, n), lambda i, k: (i, 0)),
            pl.BlockSpec((1, n), lambda i, k: (0, 0)),
            pl.BlockSpec((1, n), lambda i, k: (0, 0)),
        ],
        out_specs=pl.BlockSpec((tm, n), lambda i, k: (i, 0)),
        scratch_shapes=[pltpu.VMEM((tm, n), jnp.float32)],
        compiler_params=pltpu.CompilerParams(
            dimension_semantics=("parallel", "arbitrary"),
            vmem_limit_bytes=_VMEM_LIMIT),
    )(x, w, b.reshape(1, n), residual, gamma.reshape(1, n), beta.reshape(1, n))


# ---------------------------------------------------------------------------
# Embedding LayerNorm kernel
# ---------------------------------------------------------------------------

def _embed_ln_kernel(we_ref, pe_ref, te_ref, g_ref, b_ref, o_ref, *, eps):
    h = we_ref[0] + pe_ref[0] + te_ref[0]                  # (S, H) f32
    mu = jnp.mean(h, axis=-1, keepdims=True)
    var = jnp.mean(jnp.square(h - mu), axis=-1, keepdims=True)
    o_ref[0] = ((h - mu) * jax.lax.rsqrt(var + eps) * g_ref[0] + b_ref[0]).astype(o_ref.dtype)


def embed_layernorm(we, pe, te, gamma, beta, eps=1e-12, out_dtype=jnp.bfloat16):
    b, s, hdim = we.shape
    kern = functools.partial(_embed_ln_kernel, eps=eps)
    return pl.pallas_call(
        kern,
        grid=(b,),
        out_shape=jax.ShapeDtypeStruct((b, s, hdim), out_dtype),
        in_specs=[
            pl.BlockSpec((1, s, hdim), lambda i: (i, 0, 0)),
            pl.BlockSpec((1, s, hdim), lambda i: (0, 0, 0)),
            pl.BlockSpec((1, s, hdim), lambda i: (i, 0, 0)),
            pl.BlockSpec((1, 1, hdim), lambda i: (0, 0, 0)),
            pl.BlockSpec((1, 1, hdim), lambda i: (0, 0, 0)),
        ],
        out_specs=pl.BlockSpec((1, s, hdim), lambda i: (i, 0, 0)),
        compiler_params=pltpu.CompilerParams(
            dimension_semantics=("parallel",),
            vmem_limit_bytes=_VMEM_LIMIT),
    )(we, pe, te, gamma.reshape(1, 1, hdim), beta.reshape(1, 1, hdim))


# ---------------------------------------------------------------------------
# Attention kernels
#   QKV columns are head-GROUP-major: [group g: Q_g (gw) | K_g (gw) | V_g (gw)], gw = hpg*head_dim.
#   Grouped path (gw % 128 == 0): grid = (batch, head_group, q_tile), clean 128-lane blocks.
#   Small-model fallback: whole (1, S, 3H) block per batch element, per-group stores.
# ---------------------------------------------------------------------------

def _attention_group_kernel(q_ref, k_ref, v_ref, bias_ref, o_ref, *,
                            heads_per_group, head_dim, scale):
    # q_ref: (1, tq, gw) bf16; k_ref/v_ref: (1, S, gw) bf16; bias_ref: (1, 1, S) f32
    bias = bias_ref[0]
    ctx = []
    for i in range(heads_per_group):                      # static unroll (<= 2 heads live)
        q = q_ref[0, :, i * head_dim:(i + 1) * head_dim]
        k = k_ref[0, :, i * head_dim:(i + 1) * head_dim]
        v = v_ref[0, :, i * head_dim:(i + 1) * head_dim]
        sc = jnp.einsum("qd,kd->qk", q, k, preferred_element_type=jnp.float32) * scale + bias
        sc = sc - jnp.max(sc, axis=-1, keepdims=True)
        p = jnp.exp(sc)
        p = p * pl.reciprocal(jnp.sum(p, axis=-1, keepdims=True), approx=True)
        ctx.append(jnp.dot(p.astype(jnp.bfloat16), v, preferred_element_type=jnp.float32))
    merged = ctx[0] if heads_per_group == 1 else jnp.concatenate(ctx, axis=-1)
    o_ref[0] = merged.astype(o_ref.dtype)                 # 128-lane-wide unmasked store


def _attention_full_kernel(qkv_ref, bias_ref, o_ref, *,
                           num_heads, head_dim, heads_per_group, scale):
    # qkv_ref: (1, S, 3H) bf16 with group-major column layout; bias: (1, 1, S); o: (1, S, H)
    gw = heads_per_group * head_dim
    n_groups = num_heads // heads_per_group
    bias = bias_ref[0]
    for g in range(n_groups):
        base = g * 3 * gw
        ctx = []
        for i in range(heads_per_group):
            q = qkv_ref[0, :, base + i * head_dim:base + (i + 1) * head_dim]
            k = qkv_ref[0, :, base + gw + i * head_dim:base + gw + (i + 1) * head_dim]
            v = qkv_ref[0, :, base + 2 * gw + i * head_dim:base + 2 * gw + (i + 1) * head_dim]
            sc = jnp.einsum("qd,kd->qk", q, k, preferred_element_type=jnp.float32) * scale + bias
            sc = sc - jnp.max(sc, axis=-1, keepdims=True)
            p = jnp.exp(sc)
            p = p * pl.reciprocal(jnp.sum(p, axis=-1, keepdims=True), approx=True)
            ctx.append(jnp.dot(p.astype(jnp.bfloat16), v, preferred_element_type=jnp.float32))
        merged = ctx[0] if heads_per_group == 1 else jnp.concatenate(ctx, axis=-1)
        o_ref[0, :, g * gw:(g + 1) * gw] = merged.astype(o_ref.dtype)   # per-group store


def attention(qkv, attn_bias, num_heads, head_dim, heads_per_group):
    # TODO(synk): fuse the per-group attention-output projection (ctx_g @ W_o[g]) into this
    # kernel to recover MXU width lost to head_dim=64 and drop one context write/read per layer.
    b, s, h3 = qkv.shape
    hid = num_heads * head_dim
    gw = heads_per_group * head_dim
    n_groups = num_heads // heads_per_group
    scale = 1.0 / math.sqrt(head_dim)

    if gw % 128 == 0:
        # Head-group-major blocks: every load/store is a 128-lane-aligned tile.
        tq = _pick_tile(s, (512, 256, 128))
        kern = functools.partial(_attention_group_kernel, heads_per_group=heads_per_group,
                                 head_dim=head_dim, scale=scale)
        return pl.pallas_call(
            kern,
            grid=(b, n_groups, s // tq),
            out_shape=jax.ShapeDtypeStruct((b, s, hid), jnp.bfloat16),
            in_specs=[
                pl.BlockSpec((1, tq, gw), lambda bi, gi, qi: (bi, qi, 3 * gi)),      # Q tile
                pl.BlockSpec((1, s, gw), lambda bi, gi, qi: (bi, 0, 3 * gi + 1)),    # K (full S)
                pl.BlockSpec((1, s, gw), lambda bi, gi, qi: (bi, 0, 3 * gi + 2)),    # V (full S)
                pl.BlockSpec((1, 1, s), lambda bi, gi, qi: (bi, 0, 0)),              # additive bias
            ],
            out_specs=pl.BlockSpec((1, tq, gw), lambda bi, gi, qi: (bi, qi, gi)),
            compiler_params=pltpu.CompilerParams(
                dimension_semantics=("parallel", "parallel", "parallel"),
                vmem_limit_bytes=_VMEM_LIMIT),
        )(qkv, qkv, qkv, attn_bias)

    # Small-model fallback (group width < 128 lanes): one batch element per step.
    kern = functools.partial(_attention_full_kernel, num_heads=num_heads, head_dim=head_dim,
                             heads_per_group=heads_per_group, scale=scale)
    return pl.pallas_call(
        kern,
        grid=(b,),
        out_shape=jax.ShapeDtypeStruct((b, s, hid), jnp.bfloat16),
        in_specs=[
            pl.BlockSpec((1, s, h3), lambda bi: (bi, 0, 0)),
            pl.BlockSpec((1, 1, s), lambda bi: (bi, 0, 0)),
        ],
        out_specs=pl.BlockSpec((1, s, hid), lambda bi: (bi, 0, 0)),
        compiler_params=pltpu.CompilerParams(
            dimension_semantics=("parallel",),
            vmem_limit_bytes=_VMEM_LIMIT),
    )(qkv, attn_bias)


# ---------------------------------------------------------------------------
# Parameters
# ---------------------------------------------------------------------------

def _group_qkv_weight(wq, wk, wv, num_heads, head_dim, hpg):
    """Column-reorder the fused QKV weight to head-group-major [g : Q_g | K_g | V_g]."""
    hin = wq.shape[0]
    n_groups = num_heads // hpg
    gw = hpg * head_dim
    w = jnp.stack([wq.reshape(hin, n_groups, gw),
                   wk.reshape(hin, n_groups, gw),
                   wv.reshape(hin, n_groups, gw)], axis=2)          # (hin, G, 3, gw)
    return w.reshape(hin, 3 * num_heads * head_dim)


def _group_qkv_bias(bq, bk, bv, num_heads, head_dim, hpg):
    n_groups = num_heads // hpg
    gw = hpg * head_dim
    b = jnp.stack([bq.reshape(n_groups, gw),
                   bk.reshape(n_groups, gw),
                   bv.reshape(n_groups, gw)], axis=1)               # (G, 3, gw)
    return b.reshape(3 * num_heads * head_dim)


def init_params(key, cfg):
    h = cfg["hidden"]
    nh, dh = cfg["num_heads"], cfg["head_dim"]
    hpg = _heads_per_group(nh)

    def dense(k, din, dout):
        # weights stored bf16 (MXU operands under autocast); biases / LN params f32
        return {"w": (jax.random.normal(k, (din, dout), jnp.float32) * 0.02).astype(jnp.bfloat16),
                "b": jax.random.normal(jax.random.fold_in(k, 1), (dout,), jnp.float32) * 0.02}

    n_keys = 4 + cfg["num_layers"] * 6
    keys = jax.random.split(key, n_keys)
    params = {
        "word_emb": jax.random.normal(keys[0], (cfg["vocab"], h), jnp.float32) * 0.02,
        "pos_emb": jax.random.normal(keys[1], (cfg["max_pos"], h), jnp.float32) * 0.02,
        "type_emb": jax.random.normal(keys[2], (cfg["type_vocab"], h), jnp.float32) * 0.02,
        "emb_ln_g": jnp.ones((h,), jnp.float32),
        "emb_ln_b": jnp.zeros((h,), jnp.float32),
        "img_proj": dense(keys[3], cfg["img_dim"], h),
        "layers": [],
    }
    kidx = 4
    for _ in range(cfg["num_layers"]):
        lk = keys[kidx:kidx + 6]
        kidx += 6
        q, k_, v = dense(lk[0], h, h), dense(lk[1], h, h), dense(lk[2], h, h)
        params["layers"].append({
            "qkv": {"w": _group_qkv_weight(q["w"], k_["w"], v["w"], nh, dh, hpg),
                    "b": _group_qkv_bias(q["b"], k_["b"], v["b"], nh, dh, hpg)},
            "attn_out": dense(lk[3], h, h),
            "attn_ln_g": jnp.ones((h,), jnp.float32),
            "attn_ln_b": jnp.zeros((h,), jnp.float32),
            "inter": dense(lk[4], h, cfg["intermediate"]),
            "out": dense(lk[5], cfg["intermediate"], h),
            "out_ln_g": jnp.ones((h,), jnp.float32),
            "out_ln_b": jnp.zeros((h,), jnp.float32),
        })
    return params


# ---------------------------------------------------------------------------
# Model (embedding gathers / reshapes / tiny pooling in plain JAX, heavy math in kernels)
# ---------------------------------------------------------------------------

def bert_layer(lp, h, attn_bias, cfg):
    b2, s, hid = h.shape
    hpg = _heads_per_group(cfg["num_heads"])
    x2 = h.reshape(b2 * s, hid)                                          # bf16 residual stream

    # fused QKV projection (one matmul, resident weight, bf16 output feeds attention directly)
    qkv = linear(x2, lp["qkv"]["w"], lp["qkv"]["b"], out_dtype=jnp.bfloat16)
    ctx = attention(qkv.reshape(b2, s, 3 * hid), attn_bias,
                    cfg["num_heads"], cfg["head_dim"], hpg)              # (b2, s, hid) bf16

    # BertSelfOutput: dense + residual + LayerNorm, fused (f32 internals, bf16 storage)
    attn = linear_add_ln(ctx.reshape(b2 * s, hid), lp["attn_out"]["w"], lp["attn_out"]["b"],
                         x2, lp["attn_ln_g"], lp["attn_ln_b"], out_dtype=jnp.bfloat16)

    # BertIntermediate (GELU) + BertOutput (dense + residual + LayerNorm, fused)
    inter = linear(attn, lp["inter"]["w"], lp["inter"]["b"],
                   activation="gelu", out_dtype=jnp.bfloat16)
    out = linear_add_ln(inter, lp["out"]["w"], lp["out"]["b"],
                        attn, lp["out_ln_g"], lp["out_ln_b"], out_dtype=jnp.bfloat16)
    return out.reshape(b2, s, hid)


def contrastive_twins_forward_dual(params, cfg, input_ids, token_type_ids,
                                   attention_mask, img_feats):
    """Dual-mode forward (t_forwards / i_forwards semantics: mean over the branch's sequence
    output followed by tanh).  Both twin branches share weights, so they run as one batched
    encoder pass of batch 2B (text branch rows 0..B-1, image rows B..2B-1)."""
    B, two_text = input_ids.shape
    text_len = two_text // 2
    n_img = img_feats.shape[1]
    H = cfg["hidden"]
    S0 = text_len + n_img
    # TODO(synk): pad to a multiple of 128 for production sequence lengths (lane-dense scores).
    S = _round_up(S0, 8)
    pad = S - S0

    # ---- batched text embeddings for both branches (each branch restarts positions at 0) ----
    ids_b = jnp.concatenate([input_ids[:, :text_len], input_ids[:, text_len:]], axis=0)
    tt_b = jnp.concatenate([token_type_ids[:, :text_len], token_type_ids[:, text_len:]], axis=0)
    we = jnp.take(params["word_emb"], ids_b, axis=0)                      # (2B, T, H)
    pe = params["pos_emb"][:text_len][None, :, :]                         # (1,  T, H)
    te = jnp.take(params["type_emb"], tt_b, axis=0)                       # (2B, T, H)
    emb_txt = embed_layernorm(we, pe, te, params["emb_ln_g"], params["emb_ln_b"])   # bf16

    # ---- image-region embeddings (image branch only); text branch tail + padding are zeros ----
    img_emb = linear(img_feats.reshape(B * n_img, img_feats.shape[2]),
                     params["img_proj"]["w"], params["img_proj"]["b"],
                     out_dtype=jnp.bfloat16).reshape(B, n_img, H)
    tail_txt = jnp.zeros((B, n_img + pad, H), jnp.bfloat16)
    tail_img = jnp.concatenate([img_emb, jnp.zeros((B, pad, H), jnp.bfloat16)], axis=1)
    h = jnp.concatenate([emb_txt, jnp.concatenate([tail_txt, tail_img], axis=0)], axis=1)

    # ---- additive attention bias: (1 - mask) * -10000, pad positions fully masked ----
    am = attention_mask.astype(jnp.float32)
    mask_text = jnp.concatenate([am[:, :text_len],
                                 jnp.zeros((B, n_img + pad), jnp.float32)], axis=1)
    mask_img = jnp.concatenate([am[:, text_len:], jnp.zeros((B, pad), jnp.float32)], axis=1)
    mask_b = jnp.concatenate([mask_text, mask_img], axis=0)               # (2B, S)
    attn_bias = ((1.0 - mask_b) * -10000.0).reshape(2 * B, 1, S)

    for lp in params["layers"]:
        h = bert_layer(lp, h, attn_bias, cfg)

    # ---- pooling: mean over the original (un-padded) per-branch sequence extent, then tanh ----
    # (tiny op -> plain XLA; the previous M=1 Pallas matvec was pure launch overhead)
    w_text = jnp.concatenate([jnp.full((B, text_len), 1.0 / text_len, jnp.float32),
                              jnp.zeros((B, n_img + pad), jnp.float32)], axis=1)
    w_img = jnp.concatenate([jnp.full((B, S0), 1.0 / S0, jnp.float32),
                             jnp.zeros((B, pad), jnp.float32)], axis=1)
    pool_w = jnp.concatenate([w_text, w_img], axis=0)                     # (2B, S)
    pooled = jnp.tanh(jnp.einsum("bs,bsh->bh", pool_w, h.astype(jnp.float32)))

    t_feature = pooled[:B]
    i_feature = pooled[B:]
    # TODO(synk): the train-time forward() of ContrastiveTwinsSEP gathers the token at
    # a_token_len/b_token_len instead of the mean; this script keeps the dual-mode
    # (t_forwards/i_forwards) mean+tanh pooling of the previous accepted version.
    return i_feature, t_feature


# ---------------------------------------------------------------------------

if __name__ == "__main__":
    cfg = dict(vocab=100, max_pos=64, type_vocab=2, hidden=32, num_heads=2,
               head_dim=16, intermediate=64, num_layers=2, img_dim=16)
    B, text_len, n_img = 2, 8, 4

    key = jax.random.PRNGKey(0)
    kp, k_ids, k_img = jax.random.split(key, 3)
    params = init_params(kp, cfg)

    input_ids = jax.random.randint(k_ids, (B, 2 * text_len), 0, cfg["vocab"], dtype=jnp.int32)
    token_type_ids = jnp.concatenate(
        [jnp.zeros((B, text_len), jnp.int32), jnp.ones((B, text_len), jnp.int32)], axis=1)
    # attention_mask covers the text tokens of both halves plus the image regions of the
    # second (image) branch, so attention_mask[:, text_len:] spans that branch's full
    # concatenated sequence (text tokens + image regions).
    attention_mask = jnp.ones((B, 2 * text_len + n_img), jnp.float32)
    img_feats = jax.random.normal(k_img, (B, n_img, cfg["img_dim"]), jnp.float32)

    fwd = jax.jit(lambda p, *args: contrastive_twins_forward_dual(p, cfg, *args))
    i_feat, t_feat = fwd(params, input_ids, token_type_ids, attention_mask, img_feats)
    jax.block_until_ready((i_feat, t_feat))

    assert i_feat.shape == (B, cfg["hidden"]) and t_feat.shape == (B, cfg["hidden"])
    assert bool(jnp.all(jnp.isfinite(i_feat))) and bool(jnp.all(jnp.isfinite(t_feat)))
    print("KERNEL_OK")
</pallas_src>

<mosaic_0001>
module attributes {stable_mosaic.version = 11 : i64} {
  func.func @_linear_resident_kernel(%arg0: i32, %arg1: memref<64x32xbf16, #tpu.memory_space<vmem>>, %arg2: memref<32x96xbf16, #tpu.memory_space<vmem>>, %arg3: memref<1x96xf32, #tpu.memory_space<vmem>>, %arg4: memref<64x96xbf16, #tpu.memory_space<vmem>>) attributes {dimension_semantics = [#tpu.dimension_semantics<parallel>], iteration_bounds = array<i64: 1>, scalar_prefetch = 0 : i64, scratch_operands = 0 : i64, tpu.core_type = #tpu.core_type<tc>, window_params = [{transform_indices = @transform_0, window_bounds = array<i64: 64, 32>}, {pipeline_mode = #tpu.pipeline_mode<synchronous>, transform_indices = @transform_1, window_bounds = array<i64: 32, 96>}, {pipeline_mode = #tpu.pipeline_mode<synchronous>, transform_indices = @transform_2, window_bounds = array<i64: 1, 96>}, {transform_indices = @transform_3, window_bounds = array<i64: 64, 96>}]} {
    %c0 = arith.constant 0 : index
    %c0_0 = arith.constant 0 : index
    %0 = vector.load %arg1[%c0, %c0_0] : memref<64x32xbf16, #tpu.memory_space<vmem>>, vector<64x32xbf16>
    %c0_1 = arith.constant 0 : index
    %c0_2 = arith.constant 0 : index
    %1 = vector.load %arg2[%c0_1, %c0_2] : memref<32x96xbf16, #tpu.memory_space<vmem>>, vector<32x96xbf16>
    %cst = arith.constant dense<0.000000e+00> : vector<64x96xf32>
    %2 = tpu.matmul %0, %1, %cst {dimension_numbers = #tpu.dot_dimension_numbers<[1], [0], [0], [1], [0, 0, 1, 1], [], []>} : vector<64x32xbf16>, vector<32x96xbf16>, vector<64x96xf32> -> vector<64x96xf32>
    %c0_3 = arith.constant 0 : index
    %c0_4 = arith.constant 0 : index
    %3 = vector.load %arg3[%c0_3, %c0_4] : memref<1x96xf32, #tpu.memory_space<vmem>>, vector<1x96xf32>
    %4 = vector.broadcast %3 : vector<1x96xf32> to vector<64x96xf32>
    %5 = arith.addf %2, %4 : vector<64x96xf32>
    %6 = arith.truncf %5 : vector<64x96xf32> to vector<64x96xbf16>
    %c0_5 = arith.constant 0 : index
    %c0_6 = arith.constant 0 : index
    %7 = vector.load %arg4[%c0_5, %c0_6] : memref<64x96xbf16, #tpu.memory_space<vmem>>, vector<64x96xbf16>
    tpu.vector_store %arg4[%c0_5, %c0_6], %6 {strides = array<i32>} : memref<64x96xbf16, #tpu.memory_space<vmem>>, vector<64x96xbf16>,
    return
  }
  func.func @transform_0(%arg0: i32) -> (i32, i32) {
    %c0_i32 = arith.constant 0 : i32
    %c0_i32_0 = arith.constant 0 : i32
    return %arg0, %c0_i32 : i32, i32
  }
  func.func @transform_1(%arg0: i32) -> (i32, i32) {
    %c0_i32 = arith.constant 0 : i32
    %c0_i32_0 = arith.constant 0 : i32
    %c0_i32_1 = arith.constant 0 : i32
    return %c0_i32, %c0_i32_0 : i32, i32
  }
  func.func @transform_2(%arg0: i32) -> (i32, i32) {
    %c0_i32 = arith.constant 0 : i32
    %c0_i32_0 = arith.constant 0 : i32
    %c0_i32_1 = arith.constant 0 : i32
    return %c0_i32, %c0_i32_0 : i32, i32
  }
  func.func @transform_3(%arg0: i32) -> (i32, i32) {
    %c0_i32 = arith.constant 0 : i32
    %c0_i32_0 = arith.constant 0 : i32
    return %arg0, %c0_i32 : i32, i32
  }
}

module attributes {stable_mosaic.version = 11 : i64} {
  func.func @_linear_resident_kernel(%arg0: i32, %arg1: memref<8x16xf32, #tpu.memory_space<vmem>>, %arg2: memref<16x32xbf16, #tpu.memory_space<vmem>>, %arg3: memref<1x32xf32, #tpu.memory_space<vmem>>, %arg4: memref<8x32xbf16, #tpu.memory_space<vmem>>) attributes {dimension_semantics = [#tpu.dimension_semantics<parallel>], iteration_bounds = array<i64: 1>, scalar_prefetch = 0 : i64, scratch_operands = 0 : i64, tpu.core_type = #tpu.core_type<tc>, window_params = [{transform_indices = @transform_0, window_bounds = array<i64: 8, 16>}, {pipeline_mode = #tpu.pipeline_mode<synchronous>, transform_indices = @transform_1, window_bounds = array<i64: 16, 32>}, {pipeline_mode = #tpu.pipeline_mode<synchronous>, transform_indices = @transform_2, window_bounds = array<i64: 1, 32>}, {transform_indices = @transform_3, window_bounds = array<i64: 8, 32>}]} {
    %c0 = arith.constant 0 : index
    %c0_0 = arith.constant 0 : index
    %0 = vector.load %arg1[%c0, %c0_0] : memref<8x16xf32, #tpu.memory_space<vmem>>, vector<8x16xf32>
    %1 = arith.truncf %0 : vector<8x16xf32> to vector<8x16xbf16>
    %c0_1 = arith.constant 0 : index
    %c0_2 = arith.constant 0 : index
    %2 = vector.load %arg2[%c0_1, %c0_2] : memref<16x32xbf16, #tpu.memory_space<vmem>>, vector<16x32xbf16>
    %cst = arith.constant dense<0.000000e+00> : vector<8x32xf32>
    %3 = tpu.matmul %1, %2, %cst {dimension_numbers = #tpu.dot_dimension_numbers<[1], [0], [0], [1], [0, 0, 1, 1], [], []>} : vector<8x16xbf16>, vector<16x32xbf16>, vector<8x32xf32> -> vector<8x32xf32>
    %c0_3 = arith.constant 0 : index
    %c0_4 = arith.constant 0 : index
    %4 = vector.load %arg3[%c0_3, %c0_4] : memref<1x32xf32, #tpu.memory_space<vmem>>, vector<1x32xf32>
    %5 = vector.broadcast %4 : vector<1x32xf32> to vector<8x32xf32>
    %6 = arith.addf %3, %5 : vector<8x32xf32>
    %7 = arith.truncf %6 : vector<8x32xf32> to vector<8x32xbf16>
    %c0_5 = arith.constant 0 : index
    %c0_6 = arith.constant 0 : index
    %8 = vector.load %arg4[%c0_5, %c0_6] : memref<8x32xbf16, #tpu.memory_space<vmem>>, vector<8x32xbf16>
    tpu.vector_store %arg4[%c0_5, %c0_6], %7 {strides = array<i32>} : memref<8x32xbf16, #tpu.memory_space<vmem>>, vector<8x32xbf16>,
    return
  }
  func.func @transform_0(%arg0: i32) -> (i32, i32) {
    %c0_i32 = arith.constant 0 : i32
    %c0_i32_0 = arith.constant 0 : i32
    return %arg0, %c0_i32 : i32, i32
  }
  func.func @transform_1(%arg0: i32) -> (i32, i32) {
    %c0_i32 = arith.constant 0 : i32
    %c0_i32_0 = arith.constant 0 : i32
    %c0_i32_1 = arith.constant 0 : i32
    return %c0_i32, %c0_i32_0 : i32, i32
  }
  func.func @transform_2(%arg0: i32) -> (i32, i32) {
    %c0_i32 = arith.constant 0 : i32
    %c0_i32_0 = arith.constant 0 : i32
    %c0_i32_1 = arith.constant 0 : i32
    return %c0_i32, %c0_i32_0 : i32, i32
  }
  func.func @transform_3(%arg0: i32) -> (i32, i32) {
    %c0_i32 = arith.constant 0 : i32
    %c0_i32_0 = arith.constant 0 : i32
    return %arg0, %c0_i32 : i32, i32
  }
}

module attributes {stable_mosaic.version = 11 : i64} {
  func.func @_embed_ln_kernel(%arg0: i32, %arg1: memref<1x8x32xf32, #tpu.memory_space<vmem>>, %arg2: memref<1x8x32xf32, #tpu.memory_space<vmem>>, %arg3: memref<1x8x32xf32, #tpu.memory_space<vmem>>, %arg4: memref<1x1x32xf32, #tpu.memory_space<vmem>>, %arg5: memref<1x1x32xf32, #tpu.memory_space<vmem>>, %arg6: memref<1x8x32xbf16, #tpu.memory_space<vmem>>) attributes {dimension_semantics = [#tpu.dimension_semantics<parallel>], iteration_bounds = array<i64: 4>, scalar_prefetch = 0 : i64, scratch_operands = 0 : i64, tpu.core_type = #tpu.core_type<tc>, window_params = [{transform_indices = @transform_0, window_bounds = array<i64: 1, 8, 32>}, {pipeline_mode = #tpu.pipeline_mode<synchronous>, transform_indices = @transform_1, window_bounds = array<i64: 1, 8, 32>}, {transform_indices = @transform_2, window_bounds = array<i64: 1, 8, 32>}, {pipeline_mode = #tpu.pipeline_mode<synchronous>, transform_indices = @transform_3, window_bounds = array<i64: 1, 1, 32>}, {pipeline_mode = #tpu.pipeline_mode<synchronous>, transform_indices = @transform_4, window_bounds = array<i64: 1, 1, 32>}, {transform_indices = @transform_5, window_bounds = array<i64: 1, 8, 32>}]} {
    %c0 = arith.constant 0 : index
    %c0_0 = arith.constant 0 : index
    %c0_1 = arith.constant 0 : index
    %0 = vector.load %arg1[%c0, %c0_0, %c0_1] : memref<1x8x32xf32, #tpu.memory_space<vmem>>, vector<1x8x32xf32>
    %1 = vector.shape_cast %0 : vector<1x8x32xf32> to vector<8x32xf32>
    %c0_2 = arith.constant 0 : index
    %c0_3 = arith.constant 0 : index
    %c0_4 = arith.constant 0 : index
    %2 = vector.load %arg2[%c0_2, %c0_3, %c0_4] : memref<1x8x32xf32, #tpu.memory_space<vmem>>, vector<1x8x32xf32>
    %3 = vector.shape_cast %2 : vector<1x8x32xf32> to vector<8x32xf32>
    %4 = arith.addf %1, %3 : vector<8x32xf32>
    %c0_5 = arith.constant 0 : index
    %c0_6 = arith.constant 0 : index
    %c0_7 = arith.constant 0 : index
    %5 = vector.load %arg3[%c0_5, %c0_6, %c0_7] : memref<1x8x32xf32, #tpu.memory_space<vmem>>, vector<1x8x32xf32>
    %6 = vector.shape_cast %5 : vector<1x8x32xf32> to vector<8x32xf32>
    %7 = arith.addf %4, %6 : vector<8x32xf32>
    %cst = arith.constant dense<0.000000e+00> : vector<8xf32>
    %8 = vector.multi_reduction <add>, %7, %cst [1] : vector<8x32xf32> to vector<8xf32>
    %9 = vector.shape_cast %8 : vector<8xf32> to vector<8x1xf32>
    %cst_8 = arith.constant 3.200000e+01 : f32
    %10 = vector.broadcast %cst_8 : f32 to vector<8x1xf32>
    %11 = arith.divf %9, %10 : vector<8x1xf32>
    %12 = vector.broadcast %11 : vector<8x1xf32> to vector<8x32xf32>
    %13 = arith.subf %7, %12 : vector<8x32xf32>
    %14 = arith.mulf %13, %13 : vector<8x32xf32>
    %cst_9 = arith.constant dense<0.000000e+00> : vector<8xf32>
    %15 = vector.multi_reduction <add>, %14, %cst_9 [1] : vector<8x32xf32> to vector<8xf32>
    %16 = vector.shape_cast %15 : vector<8xf32> to vector<8x1xf32>
    %cst_10 = arith.constant 3.200000e+01 : f32
    %17 = vector.broadcast %cst_10 : f32 to vector<8x1xf32>
    %18 = arith.divf %16, %17 : vector<8x1xf32>
    %19 = vector.broadcast %11 : vector<8x1xf32> to vector<8x32xf32>
    %20 = arith.subf %7, %19 : vector<8x32xf32>
    %cst_11 = arith.constant 9.99999996E-13 : f32
    %21 = vector.broadcast %cst_11 : f32 to vector<8x1xf32>
    %22 = arith.addf %18, %21 : vector<8x1xf32>
    %23 = math.rsqrt %22 : vector<8x1xf32>
    %24 = vector.broadcast %23 : vector<8x1xf32> to vector<8x32xf32>
    %25 = arith.mulf %20, %24 : vector<8x32xf32>
    %c0_12 = arith.constant 0 : index
    %c0_13 = arith.constant 0 : index
    %c0_14 = arith.constant 0 : index
    %26 = vector.load %arg4[%c0_12, %c0_13, %c0_14] : memref<1x1x32xf32, #tpu.memory_space<vmem>>, vector<1x1x32xf32>
    %27 = vector.shape_cast %26 : vector<1x1x32xf32> to vector<1x32xf32>
    %28 = vector.broadcast %27 : vector<1x32xf32> to vector<8x32xf32>
    %29 = arith.mulf %25, %28 : vector<8x32xf32>
    %c0_15 = arith.constant 0 : index
    %c0_16 = arith.constant 0 : index
    %c0_17 = arith.constant 0 : index
    %30 = vector.load %arg5[%c0_15, %c0_16, %c0_17] : memref<1x1x32xf32, #tpu.memory_space<vmem>>, vector<1x1x32xf32>
    %31 = vector.shape_cast %30 : vector<1x1x32xf32> to vector<1x32xf32>
    %32 = vector.broadcast %31 : vector<1x32xf32> to vector<8x32xf32>
    %33 = arith.addf %29, %32 : vector<8x32xf32>
    %34 = arith.truncf %33 : vector<8x32xf32> to vector<8x32xbf16>
    %c0_18 = arith.constant 0 : index
    %c0_19 = arith.constant 0 : index
    %c0_20 = arith.constant 0 : index
    %35 = vector.load %arg6[%c0_18, %c0_19, %c0_20] : memref<1x8x32xbf16, #tpu.memory_space<vmem>>, vector<1x8x32xbf16>
    %36 = vector.shape_cast %35 : vector<1x8x32xbf16> to vector<8x32xbf16>
    %37 = vector.shape_cast %34 : vector<8x32xbf16> to vector<1x8x32xbf16>
    tpu.vector_store %arg6[%c0_18, %c0_19, %c0_20], %37 {strides = array<i32>} : memref<1x8x32xbf16, #tpu.memory_space<vmem>>, vector<1x8x32xbf16>,
    return
  }
  func.func @transform_0(%arg0: i32) -> (i32, i32, i32) {
    %c0_i32 = arith.constant 0 : i32
    %c0_i32_0 = arith.constant 0 : i32
    %c0_i32_1 = arith.constant 0 : i32
    return %arg0, %c0_i32, %c0_i32_0 : i32, i32, i32
  }
  func.func @transform_1(%arg0: i32) -> (i32, i32, i32) {
    %c0_i32 = arith.constant 0 : i32
    %c0_i32_0 = arith.constant 0 : i32
    %c0_i32_1 = arith.constant 0 : i32
    %c0_i32_2 = arith.constant 0 : i32
    return %c0_i32, %c0_i32_0, %c0_i32_1 : i32, i32, i32
  }
  func.func @transform_2(%arg0: i32) -> (i32, i32, i32) {
    %c0_i32 = arith.constant 0 : i32
    %c0_i32_0 = arith.constant 0 : i32
    %c0_i32_1 = arith.constant 0 : i32
    return %arg0, %c0_i32, %c0_i32_0 : i32, i32, i32
  }
  func.func @transform_3(%arg0: i32) -> (i32, i32, i32) {
    %c0_i32 = arith.constant 0 : i32
    %c0_i32_0 = arith.constant 0 : i32
    %c0_i32_1 = arith.constant 0 : i32
    %c0_i32_2 = arith.constant 0 : i32
    return %c0_i32, %c0_i32_0, %c0_i32_1 : i32, i32, i32
  }
  func.func @transform_4(%arg0: i32) -> (i32, i32, i32) {
    %c0_i32 = arith.constant 0 : i32
    %c0_i32_0 = arith.constant 0 : i32
    %c0_i32_1 = arith.constant 0 : i32
    %c0_i32_2 = arith.constant 0 : i32
    return %c0_i32, %c0_i32_0, %c0_i32_1 : i32, i32, i32
  }
  func.func @transform_5(%arg0: i32) -> (i32, i32, i32) {
    %c0_i32 = arith.constant 0 : i32
    %c0_i32_0 = arith.constant 0 : i32
    %c0_i32_1 = arith.constant 0 : i32
    return %arg0, %c0_i32, %c0_i32_0 : i32, i32, i32
  }
}

module attributes {stable_mosaic.version = 11 : i64} {
  func.func @_attention_full_kernel(%arg0: i32, %arg1: memref<1x16x96xbf16, #tpu.memory_space<vmem>>, %arg2: memref<1x1x16xf32, #tpu.memory_space<vmem>>, %arg3: memref<1x16x32xbf16, #tpu.memory_space<vmem>>) attributes {dimension_semantics = [#tpu.dimension_semantics<parallel>], iteration_bounds = array<i64: 4>, scalar_prefetch = 0 : i64, scratch_operands = 0 : i64, tpu.core_type = #tpu.core_type<tc>, window_params = [{transform_indices = @transform_0, window_bounds = array<i64: 1, 16, 96>}, {transform_indices = @transform_1, window_bounds = array<i64: 1, 1, 16>}, {transform_indices = @transform_2, window_bounds = array<i64: 1, 16, 32>}]} {
    %c0 = arith.constant 0 : index
    %c0_0 = arith.constant 0 : index
    %c0_1 = arith.constant 0 : index
    %0 = vector.load %arg2[%c0, %c0_0, %c0_1] : memref<1x1x16xf32, #tpu.memory_space<vmem>>, vector<1x1x16xf32>
    %1 = vector.shape_cast %0 : vector<1x1x16xf32> to vector<1x16xf32>
    %c0_2 = arith.constant 0 : index
    %c0_3 = arith.constant 0 : index
    %c0_4 = arith.constant 0 : index
    %2 = vector.load %arg1[%c0_2, %c0_3, %c0_4] : memref<1x16x96xbf16, #tpu.memory_space<vmem>>, vector<1x16x16xbf16>
    %3 = vector.shape_cast %2 : vector<1x16x16xbf16> to vector<16x16xbf16>
    %c0_5 = arith.constant 0 : index
    %c0_6 = arith.constant 0 : index
    %c32 = arith.constant 32 : index
    %4 = vector.load %arg1[%c0_5, %c0_6, %c32] : memref<1x16x96xbf16, #tpu.memory_space<vmem>>, vector<1x16x16xbf16>
    %5 = vector.shape_cast %4 : vector<1x16x16xbf16> to vector<16x16xbf16>
    %c0_7 = arith.constant 0 : index
    %c0_8 = arith.constant 0 : index
    %c64 = arith.constant 64 : index
    %6 = vector.load %arg1[%c0_7, %c0_8, %c64] : memref<1x16x96xbf16, #tpu.memory_space<vmem>>, vector<1x16x16xbf16>
    %7 = vector.shape_cast %6 : vector<1x16x16xbf16> to vector<16x16xbf16>
    "tpu.trace_start"() <{level = 10 : i32, message = "qd,kd->qk"}> : () -> ()
    %cst = arith.constant dense<0.000000e+00> : vector<16x16xf32>
    %8 = tpu.matmul %3, %5, %cst {dimension_numbers = #tpu.dot_dimension_numbers<[1], [1], [0], [0], [0, 0, 1, 0], [], []>} : vector<16x16xbf16>, vector<16x16xbf16>, vector<16x16xf32> -> vector<16x16xf32>
    "tpu.trace_stop"() : () -> ()
    %cst_9 = arith.constant 2.500000e-01 : f32
    %9 = vector.broadcast %cst_9 : f32 to vector<16x16xf32>
    %10 = arith.mulf %8, %9 : vector<16x16xf32>
    %11 = vector.broadcast %1 : vector<1x16xf32> to vector<16x16xf32>
    %12 = arith.addf %10, %11 : vector<16x16xf32>
    %cst_10 = arith.constant dense<0xFF800000> : vector<16xf32>
    %13 = vector.multi_reduction <maximumf>, %12, %cst_10 [1] : vector<16x16xf32> to vector<16xf32>
    %14 = vector.shape_cast %13 : vector<16xf32> to vector<16x1xf32>
    %15 = vector.broadcast %14 : vector<16x1xf32> to vector<16x16xf32>
    %16 = arith.subf %12, %15 : vector<16x16xf32>
    %17 = math.exp %16 : vector<16x16xf32>
    %cst_11 = arith.constant dense<0.000000e+00> : vector<16xf32>
    %18 = vector.multi_reduction <add>, %17, %cst_11 [1] : vector<16x16xf32> to vector<16xf32>
    %19 = vector.shape_cast %18 : vector<16xf32> to vector<16x1xf32>
    %20 = tpu.reciprocal %19 {approx = true} : vector<16x1xf32> -> vector<16x1xf32>
    %21 = vector.broadcast %20 : vector<16x1xf32> to vector<16x16xf32>
    %22 = arith.mulf %17, %21 : vector<16x16xf32>
    %23 = arith.truncf %22 : vector<16x16xf32> to vector<16x16xbf16>
    %cst_12 = arith.constant dense<0.000000e+00> : vector<16x16xf32>
    %24 = tpu.matmul %23, %7, %cst_12 {dimension_numbers = #tpu.dot_dimension_numbers<[1], [0], [0], [1], [0, 0, 1, 1], [], []>} : vector<16x16xbf16>, vector<16x16xbf16>, vector<16x16xf32> -> vector<16x16xf32>
    %c0_13 = arith.constant 0 : index
    %c0_14 = arith.constant 0 : index
    %c16 = arith.constant 16 : index
    %25 = vector.load %arg1[%c0_13, %c0_14, %c16] : memref<1x16x96xbf16, #tpu.memory_space<vmem>>, vector<1x16x16xbf16>
    %26 = vector.shape_cast %25 : vector<1x16x16xbf16> to vector<16x16xbf16>
    %c0_15 = arith.constant 0 : index
    %c0_16 = arith.constant 0 : index
    %c48 = arith.constant 48 : index
    %27 = vector.load %arg1[%c0_15, %c0_16, %c48] : memref<1x16x96xbf16, #tpu.memory_space<vmem>>, vector<1x16x16xbf16>
    %28 = vector.shape_cast %27 : vector<1x16x16xbf16> to vector<16x16xbf16>
    %c0_17 = arith.constant 0 : index
    %c0_18 = arith.constant 0 : index
    %c80 = arith.constant 80 : index
    %29 = vector.load %arg1[%c0_17, %c0_18, %c80] : memref<1x16x96xbf16, #tpu.memory_space<vmem>>, vector<1x16x16xbf16>
    %30 = vector.shape_cast %29 : vector<1x16x16xbf16> to vector<16x16xbf16>
    "tpu.trace_start"() <{level = 10 : i32, message = "qd,kd->qk"}> : () -> ()
    %cst_19 = arith.constant dense<0.000000e+00> : vector<16x16xf32>
    %31 = tpu.matmul %26, %28, %cst_19 {dimension_numbers = #tpu.dot_dimension_numbers<[1], [1], [0], [0], [0, 0, 1, 0], [], []>} : vector<16x16xbf16>, vector<16x16xbf16>, vector<16x16xf32> -> vector<16x16xf32>
    "tpu.trace_stop"() : () -> ()
    %cst_20 = arith.constant 2.500000e-01 : f32
    %32 = vector.broadcast %cst_20 : f32 to vector<16x16xf32>
    %33 = arith.mulf %31, %32 : vector<16x16xf32>
    %34 = vector.broadcast %1 : vector<1x16xf32> to vector<16x16xf32>
    %35 = arith.addf %33, %34 : vector<16x16xf32>
    %cst_21 = arith.constant dense<0xFF800000> : vector<16xf32>
    %36 = vector.multi_reduction <maximumf>, %35, %cst_21 [1] : vector<16x16xf32> to vector<16xf32>
    %37 = vector.shape_cast %36 : vector<16xf32> to vector<16x1xf32>
    %38 = vector.broadcast %37 : vector<16x1xf32> to vector<16x16xf32>
    %39 = arith.subf %35, %38 : vector<16x16xf32>
    %40 = math.exp %39 : vector<16x16xf32>
    %cst_22 = arith.constant dense<0.000000e+00> : vector<16xf32>
    %41 = vector.multi_reduction <add>, %40, %cst_22 [1] : vector<16x16xf32> to vector<16xf32>
    %42 = vector.shape_cast %41 : vector<16xf32> to vector<16x1xf32>
    %43 = tpu.reciprocal %42 {approx = true} : vector<16x1xf32> -> vector<16x1xf32>
    %44 = vector.broadcast %43 : vector<16x1xf32> to vector<16x16xf32>
    %45 = arith.mulf %40, %44 : vector<16x16xf32>
    %46 = arith.truncf %45 : vector<16x16xf32> to vector<16x16xbf16>
    %cst_23 = arith.constant dense<0.000000e+00> : vector<16x16xf32>
    %47 = tpu.matmul %46, %30, %cst_23 {dimension_numbers = #tpu.dot_dimension_numbers<[1], [0], [0], [1], [0, 0, 1, 1], [], []>} : vector<16x16xbf16>, vector<16x16xbf16>, vector<16x16xf32> -> vector<16x16xf32>
    %48 = tpu.concatenate %24, %47 in 1 : vector<16x16xf32>, vector<16x16xf32> -> vector<16x32xf32>
    %49 = arith.truncf %48 : vector<16x32xf32> to vector<16x32xbf16>
    %c0_24 = arith.constant 0 : index
    %c0_25 = arith.constant 0 : index
    %c0_26 = arith.constant 0 : index
    %50 = vector.load %arg3[%c0_24, %c0_25, %c0_26] : memref<1x16x32xbf16, #tpu.memory_space<vmem>>, vector<1x16x32xbf16>
    %51 = vector.shape_cast %50 : vector<1x16x32xbf16> to vector<16x32xbf16>
    %52 = vector.shape_cast %49 : vector<16x32xbf16> to vector<1x16x32xbf16>
    tpu.vector_store %arg3[%c0_24, %c0_25, %c0_26], %52 {strides = array<i32>} : memref<1x16x32xbf16, #tpu.memory_space<vmem>>, vector<1x16x32xbf16>,
    return
  }
  func.func @transform_0(%arg0: i32) -> (i32, i32, i32) {
    %c0_i32 = arith.constant 0 : i32
    %c0_i32_0 = arith.constant 0 : i32
    %c0_i32_1 = arith.constant 0 : i32
    return %arg0, %c0_i32, %c0_i32_0 : i32, i32, i32
  }
  func.func @transform_1(%arg0: i32) -> (i32, i32, i32) {
    %c0_i32 = arith.constant 0 : i32
    %c0_i32_0 = arith.constant 0 : i32
    %c0_i32_1 = arith.constant 0 : i32
    return %arg0, %c0_i32, %c0_i32_0 : i32, i32, i32
  }
  func.func @transform_2(%arg0: i32) -> (i32, i32, i32) {
    %c0_i32 = arith.constant 0 : i32
    %c0_i32_0 = arith.constant 0 : i32
    %c0_i32_1 = arith.constant 0 : i32
    return %arg0, %c0_i32, %c0_i32_0 : i32, i32, i32
  }
}

module attributes {stable_mosaic.version = 11 : i64} {
  func.func @_linear_add_ln_resident_kernel(%arg0: i32, %arg1: memref<64x32xbf16, #tpu.memory_space<vmem>>, %arg2: memref<32x32xbf16, #tpu.memory_space<vmem>>, %arg3: memref<1x32xf32, #tpu.memory_space<vmem>>, %arg4: memref<64x32xbf16, #tpu.memory_space<vmem>>, %arg5: memref<1x32xf32, #tpu.memory_space<vmem>>, %arg6: memref<1x32xf32, #tpu.memory_space<vmem>>, %arg7: memref<64x32xbf16, #tpu.memory_space<vmem>>) attributes {dimension_semantics = [#tpu.dimension_semantics<parallel>], iteration_bounds = array<i64: 1>, scalar_prefetch = 0 : i64, scratch_operands = 0 : i64, tpu.core_type = #tpu.core_type<tc>, window_params = [{transform_indices = @transform_0, window_bounds = array<i64: 64, 32>}, {pipeline_mode = #tpu.pipeline_mode<synchronous>, transform_indices = @transform_1, window_bounds = array<i64: 32, 32>}, {pipeline_mode = #tpu.pipeline_mode<synchronous>, transform_indices = @transform_2, window_bounds = array<i64: 1, 32>}, {transform_indices = @transform_3, window_bounds = array<i64: 64, 32>}, {pipeline_mode = #tpu.pipeline_mode<synchronous>, transform_indices = @transform_4, window_bounds = array<i64: 1, 32>}, {pipeline_mode = #tpu.pipeline_mode<synchronous>, transform_indices = @transform_5, window_bounds = array<i64: 1, 32>}, {transform_indices = @transform_6, window_bounds = array<i64: 64, 32>}]} {
    %c0 = arith.constant 0 : index
    %c0_0 = arith.constant 0 : index
    %0 = vector.load %arg1[%c0, %c0_0] : memref<64x32xbf16, #tpu.memory_space<vmem>>, vector<64x32xbf16>
    %c0_1 = arith.constant 0 : index
    %c0_2 = arith.constant 0 : index
    %1 = vector.load %arg2[%c0_1, %c0_2] : memref<32x32xbf16, #tpu.memory_space<vmem>>, vector<32x32xbf16>
    %cst = arith.constant dense<0.000000e+00> : vector<64x32xf32>
    %2 = tpu.matmul %0, %1, %cst {dimension_numbers = #tpu.dot_dimension_numbers<[1], [0], [0], [1], [0, 0, 1, 1], [], []>} : vector<64x32xbf16>, vector<32x32xbf16>, vector<64x32xf32> -> vector<64x32xf32>
    %c0_3 = arith.constant 0 : index
    %c0_4 = arith.constant 0 : index
    %3 = vector.load %arg3[%c0_3, %c0_4] : memref<1x32xf32, #tpu.memory_space<vmem>>, vector<1x32xf32>
    %4 = vector.broadcast %3 : vector<1x32xf32> to vector<64x32xf32>
    %5 = arith.addf %2, %4 : vector<64x32xf32>
    %c0_5 = arith.constant 0 : index
    %c0_6 = arith.constant 0 : index
    %6 = vector.load %arg4[%c0_5, %c0_6] : memref<64x32xbf16, #tpu.memory_space<vmem>>, vector<64x32xbf16>
    %7 = arith.extf %6 : vector<64x32xbf16> to vector<64x32xf32>
    %8 = arith.addf %5, %7 : vector<64x32xf32>
    %cst_7 = arith.constant dense<0.000000e+00> : vector<64xf32>
    %9 = vector.multi_reduction <add>, %8, %cst_7 [1] : vector<64x32xf32> to vector<64xf32>
    %10 = vector.shape_cast %9 : vector<64xf32> to vector<64x1xf32>
    %cst_8 = arith.constant 3.200000e+01 : f32
    %11 = vector.broadcast %cst_8 : f32 to vector<64x1xf32>
    %12 = arith.divf %10, %11 : vector<64x1xf32>
    %13 = vector.broadcast %12 : vector<64x1xf32> to vector<64x32xf32>
    %14 = arith.subf %8, %13 : vector<64x32xf32>
    %15 = arith.mulf %14, %14 : vector<64x32xf32>
    %cst_9 = arith.constant dense<0.000000e+00> : vector<64xf32>
    %16 = vector.multi_reduction <add>, %15, %cst_9 [1] : vector<64x32xf32> to vector<64xf32>
    %17 = vector.shape_cast %16 : vector<64xf32> to vector<64x1xf32>
    %cst_10 = arith.constant 3.200000e+01 : f32
    %18 = vector.broadcast %cst_10 : f32 to vector<64x1xf32>
    %19 = arith.divf %17, %18 : vector<64x1xf32>
    %20 = vector.broadcast %12 : vector<64x1xf32> to vector<64x32xf32>
    %21 = arith.subf %8, %20 : vector<64x32xf32>
    %cst_11 = arith.constant 9.99999996E-13 : f32
    %22 = vector.broadcast %cst_11 : f32 to vector<64x1xf32>
    %23 = arith.addf %19, %22 : vector<64x1xf32>
    %24 = math.rsqrt %23 : vector<64x1xf32>
    %25 = vector.broadcast %24 : vector<64x1xf32> to vector<64x32xf32>
    %26 = arith.mulf %21, %25 : vector<64x32xf32>
    %c0_12 = arith.constant 0 : index
    %c0_13 = arith.constant 0 : index
    %27 = vector.load %arg5[%c0_12, %c0_13] : memref<1x32xf32, #tpu.memory_space<vmem>>, vector<1x32xf32>
    %28 = vector.broadcast %27 : vector<1x32xf32> to vector<64x32xf32>
    %29 = arith.mulf %26, %28 : vector<64x32xf32>
    %c0_14 = arith.constant 0 : index
    %c0_15 = arith.constant 0 : index
    %30 = vector.load %arg6[%c0_14, %c0_15] : memref<1x32xf32, #tpu.memory_space<vmem>>, vector<1x32xf32>
    %31 = vector.broadcast %30 : vector<1x32xf32> to vector<64x32xf32>
    %32 = arith.addf %29, %31 : vector<64x32xf32>
    %33 = arith.truncf %32 : vector<64x32xf32> to vector<64x32xbf16>
    %c0_16 = arith.constant 0 : index
    %c0_17 = arith.constant 0 : index
    %34 = vector.load %arg7[%c0_16, %c0_17] : memref<64x32xbf16, #tpu.memory_space<vmem>>, vector<64x32xbf16>
    tpu.vector_store %arg7[%c0_16, %c0_17], %33 {strides = array<i32>} : memref<64x32xbf16, #tpu.memory_space<vmem>>, vector<64x32xbf16>,
    return
  }
  func.func @transform_0(%arg0: i32) -> (i32, i32) {
    %c0_i32 = arith.constant 0 : i32
    %c0_i32_0 = arith.constant 0 : i32
    return %arg0, %c0_i32 : i32, i32
  }
  func.func @transform_1(%arg0: i32) -> (i32, i32) {
    %c0_i32 = arith.constant 0 : i32
    %c0_i32_0 = arith.constant 0 : i32
    %c0_i32_1 = arith.constant 0 : i32
    return %c0_i32, %c0_i32_0 : i32, i32
  }
  func.func @transform_2(%arg0: i32) -> (i32, i32) {
    %c0_i32 = arith.constant 0 : i32
    %c0_i32_0 = arith.constant 0 : i32
    %c0_i32_1 = arith.constant 0 : i32
    return %c0_i32, %c0_i32_0 : i32, i32
  }
  func.func @transform_3(%arg0: i32) -> (i32, i32) {
    %c0_i32 = arith.constant 0 : i32
    %c0_i32_0 = arith.constant 0 : i32
    return %arg0, %c0_i32 : i32, i32
  }
  func.func @transform_4(%arg0: i32) -> (i32, i32) {
    %c0_i32 = arith.constant 0 : i32
    %c0_i32_0 = arith.constant 0 : i32
    %c0_i32_1 = arith.constant 0 : i32
    return %c0_i32, %c0_i32_0 : i32, i32
  }
  func.func @transform_5(%arg0: i32) -> (i32, i32) {
    %c0_i32 = arith.constant 0 : i32
    %c0_i32_0 = arith.constant 0 : i32
    %c0_i32_1 = arith.constant 0 : i32
    return %c0_i32, %c0_i32_0 : i32, i32
  }
  func.func @transform_6(%arg0: i32) -> (i32, i32) {
    %c0_i32 = arith.constant 0 : i32
    %c0_i32_0 = arith.constant 0 : i32
    return %arg0, %c0_i32 : i32, i32
  }
}

module attributes {stable_mosaic.version = 11 : i64} {
  func.func @_linear_add_ln_resident_kernel(%arg0: i32, %arg1: memref<64x64xbf16, #tpu.memory_space<vmem>>, %arg2: memref<64x32xbf16, #tpu.memory_space<vmem>>, %arg3: memref<1x32xf32, #tpu.memory_space<vmem>>, %arg4: memref<64x32xbf16, #tpu.memory_space<vmem>>, %arg5: memref<1x32xf32, #tpu.memory_space<vmem>>, %arg6: memref<1x32xf32, #tpu.memory_space<vmem>>, %arg7: memref<64x32xbf16, #tpu.memory_space<vmem>>) attributes {dimension_semantics = [#tpu.dimension_semantics<parallel>], iteration_bounds = array<i64: 1>, scalar_prefetch = 0 : i64, scratch_operands = 0 : i64, tpu.core_type = #tpu.core_type<tc>, window_params = [{transform_indices = @transform_0, window_bounds = array<i64: 64, 64>}, {pipeline_mode = #tpu.pipeline_mode<synchronous>, transform_indices = @transform_1, window_bounds = array<i64: 64, 32>}, {pipeline_mode = #tpu.pipeline_mode<synchronous>, transform_indices = @transform_2, window_bounds = array<i64: 1, 32>}, {transform_indices = @transform_3, window_bounds = array<i64: 64, 32>}, {pipeline_mode = #tpu.pipeline_mode<synchronous>, transform_indices = @transform_4, window_bounds = array<i64: 1, 32>}, {pipeline_mode = #tpu.pipeline_mode<synchronous>, transform_indices = @transform_5, window_bounds = array<i64: 1, 32>}, {transform_indices = @transform_6, window_bounds = array<i64: 64, 32>}]} {
    %c0 = arith.constant 0 : index
    %c0_0 = arith.constant 0 : index
    %0 = vector.load %arg1[%c0, %c0_0] : memref<64x64xbf16, #tpu.memory_space<vmem>>, vector<64x64xbf16>
    %c0_1 = arith.constant 0 : index
    %c0_2 = arith.constant 0 : index
    %1 = vector.load %arg2[%c0_1, %c0_2] : memref<64x32xbf16, #tpu.memory_space<vmem>>, vector<64x32xbf16>
    %cst = arith.constant dense<0.000000e+00> : vector<64x32xf32>
    %2 = tpu.matmul %0, %1, %cst {dimension_numbers = #tpu.dot_dimension_numbers<[1], [0], [0], [1], [0, 0, 1, 1], [], []>} : vector<64x64xbf16>, vector<64x32xbf16>, vector<64x32xf32> -> vector<64x32xf32>
    %c0_3 = arith.constant 0 : index
    %c0_4 = arith.constant 0 : index
    %3 = vector.load %arg3[%c0_3, %c0_4] : memref<1x32xf32, #tpu.memory_space<vmem>>, vector<1x32xf32>
    %4 = vector.broadcast %3 : vector<1x32xf32> to vector<64x32xf32>
    %5 = arith.addf %2, %4 : vector<64x32xf32>
    %c0_5 = arith.constant 0 : index
    %c0_6 = arith.constant 0 : index
    %6 = vector.load %arg4[%c0_5, %c0_6] : memref<64x32xbf16, #tpu.memory_space<vmem>>, vector<64x32xbf16>
    %7 = arith.extf %6 : vector<64x32xbf16> to vector<64x32xf32>
    %8 = arith.addf %5, %7 : vector<64x32xf32>
    %cst_7 = arith.constant dense<0.000000e+00> : vector<64xf32>
    %9 = vector.multi_reduction <add>, %8, %cst_7 [1] : vector<64x32xf32> to vector<64xf32>
    %10 = vector.shape_cast %9 : vector<64xf32> to vector<64x1xf32>
    %cst_8 = arith.constant 3.200000e+01 : f32
    %11 = vector.broadcast %cst_8 : f32 to vector<64x1xf32>
    %12 = arith.divf %10, %11 : vector<64x1xf32>
    %13 = vector.broadcast %12 : vector<64x1xf32> to vector<64x32xf32>
    %14 = arith.subf %8, %13 : vector<64x32xf32>
    %15 = arith.mulf %14, %14 : vector<64x32xf32>
    %cst_9 = arith.constant dense<0.000000e+00> : vector<64xf32>
    %16 = vector.multi_reduction <add>, %15, %cst_9 [1] : vector<64x32xf32> to vector<64xf32>
    %17 = vector.shape_cast %16 : vector<64xf32> to vector<64x1xf32>
    %cst_10 = arith.constant 3.200000e+01 : f32
    %18 = vector.broadcast %cst_10 : f32 to vector<64x1xf32>
    %19 = arith.divf %17, %18 : vector<64x1xf32>
    %20 = vector.broadcast %12 : vector<64x1xf32> to vector<64x32xf32>
    %21 = arith.subf %8, %20 : vector<64x32xf32>
    %cst_11 = arith.constant 9.99999996E-13 : f32
    %22 = vector.broadcast %cst_11 : f32 to vector<64x1xf32>
    %23 = arith.addf %19, %22 : vector<64x1xf32>
    %24 = math.rsqrt %23 : vector<64x1xf32>
    %25 = vector.broadcast %24 : vector<64x1xf32> to vector<64x32xf32>
    %26 = arith.mulf %21, %25 : vector<64x32xf32>
    %c0_12 = arith.constant 0 : index
    %c0_13 = arith.constant 0 : index
    %27 = vector.load %arg5[%c0_12, %c0_13] : memref<1x32xf32, #tpu.memory_space<vmem>>, vector<1x32xf32>
    %28 = vector.broadcast %27 : vector<1x32xf32> to vector<64x32xf32>
    %29 = arith.mulf %26, %28 : vector<64x32xf32>
    %c0_14 = arith.constant 0 : index
    %c0_15 = arith.constant 0 : index
    %30 = vector.load %arg6[%c0_14, %c0_15] : memref<1x32xf32, #tpu.memory_space<vmem>>, vector<1x32xf32>
    %31 = vector.broadcast %30 : vector<1x32xf32> to vector<64x32xf32>
    %32 = arith.addf %29, %31 : vector<64x32xf32>
    %33 = arith.truncf %32 : vector<64x32xf32> to vector<64x32xbf16>
    %c0_16 = arith.constant 0 : index
    %c0_17 = arith.constant 0 : index
    %34 = vector.load %arg7[%c0_16, %c0_17] : memref<64x32xbf16, #tpu.memory_space<vmem>>, vector<64x32xbf16>
    tpu.vector_store %arg7[%c0_16, %c0_17], %33 {strides = array<i32>} : memref<64x32xbf16, #tpu.memory_space<vmem>>, vector<64x32xbf16>,
    return
  }
  func.func @transform_0(%arg0: i32) -> (i32, i32) {
    %c0_i32 = arith.constant 0 : i32
    %c0_i32_0 = arith.constant 0 : i32
    return %arg0, %c0_i32 : i32, i32
  }
  func.func @transform_1(%arg0: i32) -> (i32, i32) {
    %c0_i32 = arith.constant 0 : i32
    %c0_i32_0 = arith.constant 0 : i32
    %c0_i32_1 = arith.constant 0 : i32
    return %c0_i32, %c0_i32_0 : i32, i32
  }
  func.func @transform_2(%arg0: i32) -> (i32, i32) {
    %c0_i32 = arith.constant 0 : i32
    %c0_i32_0 = arith.constant 0 : i32
    %c0_i32_1 = arith.constant 0 : i32
    return %c0_i32, %c0_i32_0 : i32, i32
  }
  func.func @transform_3(%arg0: i32) -> (i32, i32) {
    %c0_i32 = arith.constant 0 : i32
    %c0_i32_0 = arith.constant 0 : i32
    return %arg0, %c0_i32 : i32, i32
  }
  func.func @transform_4(%arg0: i32) -> (i32, i32) {
    %c0_i32 = arith.constant 0 : i32
    %c0_i32_0 = arith.constant 0 : i32
    %c0_i32_1 = arith.constant 0 : i32
    return %c0_i32, %c0_i32_0 : i32, i32
  }
  func.func @transform_5(%arg0: i32) -> (i32, i32) {
    %c0_i32 = arith.constant 0 : i32
    %c0_i32_0 = arith.constant 0 : i32
    %c0_i32_1 = arith.constant 0 : i32
    return %c0_i32, %c0_i32_0 : i32, i32
  }
  func.func @transform_6(%arg0: i32) -> (i32, i32) {
    %c0_i32 = arith.constant 0 : i32
    %c0_i32_0 = arith.constant 0 : i32
    return %arg0, %c0_i32 : i32, i32
  }
}

module attributes {stable_mosaic.version = 11 : i64} {
  func.func @_linear_resident_kernel(%arg0: i32, %arg1: memref<64x32xbf16, #tpu.memory_space<vmem>>, %arg2: memref<32x64xbf16, #tpu.memory_space<vmem>>, %arg3: memref<1x64xf32, #tpu.memory_space<vmem>>, %arg4: memref<64x64xbf16, #tpu.memory_space<vmem>>) attributes {dimension_semantics = [#tpu.dimension_semantics<parallel>], iteration_bounds = array<i64: 1>, scalar_prefetch = 0 : i64, scratch_operands = 0 : i64, tpu.core_type = #tpu.core_type<tc>, window_params = [{transform_indices = @transform_0, window_bounds = array<i64: 64, 32>}, {pipeline_mode = #tpu.pipeline_mode<synchronous>, transform_indices = @transform_1, window_bounds = array<i64: 32, 64>}, {pipeline_mode = #tpu.pipeline_mode<synchronous>, transform_indices = @transform_2, window_bounds = array<i64: 1, 64>}, {transform_indices = @transform_3, window_bounds = array<i64: 64, 64>}]} {
    %c0 = arith.constant 0 : index
    %c0_0 = arith.constant 0 : index
    %0 = vector.load %arg1[%c0, %c0_0] : memref<64x32xbf16, #tpu.memory_space<vmem>>, vector<64x32xbf16>
    %c0_1 = arith.constant 0 : index
    %c0_2 = arith.constant 0 : index
    %1 = vector.load %arg2[%c0_1, %c0_2] : memref<32x64xbf16, #tpu.memory_space<vmem>>, vector<32x64xbf16>
    %cst = arith.constant dense<0.000000e+00> : vector<64x64xf32>
    %2 = tpu.matmul %0, %1, %cst {dimension_numbers = #tpu.dot_dimension_numbers<[1], [0], [0], [1], [0, 0, 1, 1], [], []>} : vector<64x32xbf16>, vector<32x64xbf16>, vector<64x64xf32> -> vector<64x64xf32>
    %c0_3 = arith.constant 0 : index
    %c0_4 = arith.constant 0 : index
    %3 = vector.load %arg3[%c0_3, %c0_4] : memref<1x64xf32, #tpu.memory_space<vmem>>, vector<1x64xf32>
    %4 = vector.broadcast %3 : vector<1x64xf32> to vector<64x64xf32>
    %5 = arith.addf %2, %4 : vector<64x64xf32>
    %cst_5 = arith.constant 5.000000e-01 : f32
    %6 = vector.broadcast %cst_5 : f32 to vector<64x64xf32>
    %7 = arith.mulf %6, %5 : vector<64x64xf32>
    %cst_6 = arith.constant 0.707106769 : f32
    %8 = vector.broadcast %cst_6 : f32 to vector<64x64xf32>
    %9 = arith.mulf %5, %8 : vector<64x64xf32>
    %cst_7 = arith.constant 0.000000e+00 : f32
    %10 = vector.broadcast %cst_7 : f32 to vector<64x64xf32>
    %11 = arith.cmpf olt, %9, %10 : vector<64x64xf32>
    %cst_8 = arith.constant -1.000000e+00 : f32
    %cst_9 = arith.constant 1.000000e+00 : f32
    %12 = vector.broadcast %cst_8 : f32 to vector<64x64xf32>
    %13 = vector.broadcast %cst_9 : f32 to vector<64x64xf32>
    %14 = arith.select %11, %12, %13 : vector<64x64xi1>, vector<64x64xf32>
    %15 = math.absf %9 : vector<64x64xf32>
    %cst_10 = arith.constant 0.327591091 : f32
    %16 = vector.broadcast %cst_10 : f32 to vector<64x64xf32>
    %17 = arith.mulf %16, %15 : vector<64x64xf32>
    %cst_11 = arith.constant 1.000000e+00 : f32
    %18 = vector.broadcast %cst_11 : f32 to vector<64x64xf32>
    %19 = arith.addf %18, %17 : vector<64x64xf32>
    %cst_12 = arith.constant 1.000000e+00 : f32
    %20 = vector.broadcast %cst_12 : f32 to vector<64x64xf32>
    %21 = arith.divf %20, %19 : vector<64x64xf32>
    %cst_13 = arith.constant 1.06140542 : f32
    %22 = vector.broadcast %cst_13 : f32 to vector<64x64xf32>
    %23 = arith.mulf %22, %21 : vector<64x64xf32>
    %cst_14 = arith.constant -1.45315206 : f32
    %24 = vector.broadcast %cst_14 : f32 to vector<64x64xf32>
    %25 = arith.addf %23, %24 : vector<64x64xf32>
    %26 = arith.mulf %25, %21 : vector<64x64xf32>
    %cst_15 = arith.constant 1.42141378 : f32
    %27 = vector.broadcast %cst_15 : f32 to vector<64x64xf32>
    %28 = arith.addf %26, %27 : vector<64x64xf32>
    %29 = arith.mulf %28, %21 : vector<64x64xf32>
    %cst_16 = arith.constant -0.284496725 : f32
    %30 = vector.broadcast %cst_16 : f32 to vector<64x64xf32>
    %31 = arith.addf %29, %30 : vector<64x64xf32>
    %32 = arith.mulf %31, %21 : vector<64x64xf32>
    %cst_17 = arith.constant 0.254829586 : f32
    %33 = vector.broadcast %cst_17 : f32 to vector<64x64xf32>
    %34 = arith.addf %32, %33 : vector<64x64xf32>
    %35 = arith.mulf %34, %21 : vector<64x64xf32>
    %cst_18 = arith.constant 0.000000e+00 : f32
    %36 = vector.broadcast %cst_18 : f32 to vector<64x64xf32>
    %37 = arith.subf %36, %15 : vector<64x64xf32>
    %38 = arith.mulf %37, %15 : vector<64x64xf32>
    %39 = math.exp %38 : vector<64x64xf32>
    %40 = arith.mulf %35, %39 : vector<64x64xf32>
    %cst_19 = arith.constant 1.000000e+00 : f32
    %41 = vector.broadcast %cst_19 : f32 to vector<64x64xf32>
    %42 = arith.subf %41, %40 : vector<64x64xf32>
    %43 = arith.mulf %14, %42 : vector<64x64xf32>
    %cst_20 = arith.constant 1.000000e+00 : f32
    %44 = vector.broadcast %cst_20 : f32 to vector<64x64xf32>
    %45 = arith.addf %44, %43 : vector<64x64xf32>
    %46 = arith.mulf %7, %45 : vector<64x64xf32>
    %47 = arith.truncf %46 : vector<64x64xf32> to vector<64x64xbf16>
    %c0_21 = arith.constant 0 : index
    %c0_22 = arith.constant 0 : index
    %48 = vector.load %arg4[%c0_21, %c0_22] : memref<64x64xbf16, #tpu.memory_space<vmem>>, vector<64x64xbf16>
    tpu.vector_store %arg4[%c0_21, %c0_22], %47 {strides = array<i32>} : memref<64x64xbf16, #tpu.memory_space<vmem>>, vector<64x64xbf16>,
    return
  }
  func.func @transform_0(%arg0: i32) -> (i32, i32) {
    %c0_i32 = arith.constant 0 : i32
    %c0_i32_0 = arith.constant 0 : i32
    return %arg0, %c0_i32 : i32, i32
  }
  func.func @transform_1(%arg0: i32) -> (i32, i32) {
    %c0_i32 = arith.constant 0 : i32
    %c0_i32_0 = arith.constant 0 : i32
    %c0_i32_1 = arith.constant 0 : i32
    return %c0_i32, %c0_i32_0 : i32, i32
  }
  func.func @transform_2(%arg0: i32) -> (i32, i32) {
    %c0_i32 = arith.constant 0 : i32
    %c0_i32_0 = arith.constant 0 : i32
    %c0_i32_1 = arith.constant 0 : i32
    return %c0_i32, %c0_i32_0 : i32, i32
  }
  func.func @transform_3(%arg0: i32) -> (i32, i32) {
    %c0_i32 = arith.constant 0 : i32
    %c0_i32_0 = arith.constant 0 : i32
    return %arg0, %c0_i32 : i32, i32
  }
}

</mosaic_0001>

<llo_original>
// kernel: _lambda_.13
$region0: #{_lambda_.13}
  #allocation0 [shape = 'u32[]', space=smem, size = 0x4, offset = 0x4, fixed_abs, tag = 'smem constant byte address 0x4 - core index']
  #allocation1 [shape = 'u32[144,128]{1,0:T(1,128)}', space=vmem, size = 0x12000, scoped, tag = 'internal scratch']
  %s0 = inlined_call_operand.vmem [shape: f32[8,16], index: 0, kind: input, shape index: {}]
  %s1 = inlined_call_operand.vmem [shape: bf16[16,32], index: 1, kind: input, shape index: {}]
  %s2 = inlined_call_operand.vmem [shape: f32[1,32], index: 2, kind: input, shape index: {}]
  %s3 = inlined_call_operand.vmem [shape: bf16[8,32], index: 3, kind: output, shape index: {}]
  %s4 = sld [smem:[#allocation0]]
  $region22: #{_lambda_.13} parent=0
    _
  %s6 = ssub.s32 1, %s4
  %s7 = scalar_select 0, %s6, %s4
  // Predicated region
  $region2: #{_lambda_.13} parent=0 // pred_check
    _
  $region3: #{_lambda_.13} parent=0 // pred_check_branch
    %9 = sbr.rel (0) target = $region5
  $region4: #{_lambda_.13} parent=0 // pred_region
    _
  $region5: #{_lambda_.13} parent=0 // pred_fallthru
    _
  // Predicated region
  $region6: #{_lambda_.13} parent=0 // pred_check
    _
  $region7: #{_lambda_.13} parent=0 // pred_check_branch
    %11 = sbr.rel (0) target = $region9
  $region8: #{_lambda_.13} parent=0 // pred_region
    _
  $region9: #{_lambda_.13} parent=0 // pred_fallthru
    _
  // Predicated region
  $region10: #{_lambda_.13} parent=0 // pred_check
    _
  $region11: #{_lambda_.13} parent=0 // pred_check_branch
    %13 = sbr.rel (0) target = $region13
  $region12: #{_lambda_.13} parent=0 // pred_region
    _
  $region13: #{_lambda_.13} parent=0 // pred_fallthru
    _
  %v15 = vld [vmem:[%s0] sm:$0xff]
  %v16 = vpack.c.bf16 %v15, %v15
  %v17 = vld [vmem:[%s1] sm:$0xf]
  %v18 = vld [vmem:[%s1 + $0x4] sm:$0xf]
  %v19 = vld [vmem:[%s2] sm:$0x1]
  %v21 = vlaneseq
  %v22 = vshrl.u32 %v21, 7
  %v23 = vsub.s32 0, %v22
  %v24 = vrot.slane %v19, %v23
  %v28 = vunpack.c.l.b16 %v17
  %v29 = vunpack.c.l.b16 %v18
  %v30 = vpack.c.b16 %v29, %v28
  %vm32 = vcmask 130048
  %v34 = vsel %vm32, %v16, 0
  %36 = vmatprep.subr.bf16.mxu0 0
  %37 = vmatpush1.bf16.msra.mxu0 %v30
  %38 = vmatprep.subr.bf16.mxu0 0
  %39 = vmatpush1.bf16.msra.mxu0 0
  %40 = vmatprep.subr.bf16.mxu0 0
  %41 = vmatpush1.bf16.msra.mxu0 0
  %42 = vmatprep.subr.bf16.mxu0 0
  %43 = vmatpush1.bf16.msra.mxu0 0
  %44 = vmatprep.subr.bf16.mxu0 0
  %45 = vmatpush1.bf16.msra.mxu0 0
  %46 = vmatprep.subr.bf16.mxu0 0
  %47 = vmatpush1.bf16.msra.mxu0 0
  %48 = vmatprep.subr.bf16.mxu0 0
  %49 = vmatpush1.bf16.msra.mxu0 0
  %50 = vmatprep.subr.bf16.mxu0 0
  %51 = vmatpush1.bf16.msra.mxu0 0
  %52 = vmatprep.subr.bf16.mxu0 0
  %53 = vmatpush1.bf16.msra.mxu0 0
  %54 = vmatprep.subr.bf16.mxu0 0
  %55 = vmatpush1.bf16.msra.mxu0 0
  %56 = vmatprep.subr.bf16.mxu0 0
  %57 = vmatpush1.bf16.msra.mxu0 0
  %58 = vmatprep.subr.bf16.mxu0 0
  %59 = vmatpush1.bf16.msra.mxu0 0
  %60 = vmatprep.subr.bf16.mxu0 0
  %61 = vmatpush1.bf16.msra.mxu0 0
  %62 = vmatprep.subr.bf16.mxu0 0
  %63 = vmatpush1.bf16.msra.mxu0 0
  %64 = vmatprep.subr.bf16.mxu0 0
  %65 = vmatpush1.bf16.msra.mxu0 0
  %66 = vmatprep.subr.bf16.mxu0 0
  %67 = vmatpush1.bf16.msra.mxu0 0
  %68 = vmatprep.mubr.bf16.mxu0 0
  %69 = vmatmul.mubr.bf16.gmra.mrb[0].mxu0 %v34
  %v70 = vpop.f32.mrb[0].mxu0
  %v71 = vadd.f32 %v24, %v70
  %v72 = vpop.f32.mrb[0].mxu0
  %v73 = vpop.f32.mrb[0].mxu0
  %v74 = vpop.f32.mrb[0].mxu0
  %75 = vdwg.mxu0
  %v76 = vpack.c.bf16 %v71, %v71
  %vm77 = vcmask 257024
  %78 = vst.msk [vmem:[%s3] sm:$0xf] %vm77, %v76
  // Predicated region
  $region14: #{_lambda_.13} parent=0 // pred_check
    _
  $region15: #{_lambda_.13} parent=0 // pred_check_branch
    %80 = sbr.rel (0) target = $region17
  $region16: #{_lambda_.13} parent=0 // pred_region
    _
  $region17: #{_lambda_.13} parent=0 // pred_fallthru
    _
  // Predicated region
  $region18: #{_lambda_.13} parent=0 // pred_check
    _
  $region19: #{_lambda_.13} parent=0 // pred_check_branch
    %82 = sbr.rel (0) target = $region21
  $region20: #{_lambda_.13} parent=0 // pred_region
    _
  $region21: #{_lambda_.13} parent=0 // pred_fallthru
    _

// kernel: _lambda_.12
$region0: #{_lambda_.12}
  #allocation0 [shape = 'u32[]', space=smem, size = 0x4, offset = 0x4, fixed_abs, tag = 'smem constant byte address 0x4 - core index']
  #allocation1 [shape = 'u32[144,128]{1,0:T(1,128)}', space=vmem, size = 0x12000, scoped, tag = 'internal scratch']
  %s0 = inlined_call_operand.vmem [shape: f32[4,8,32], index: 0, kind: input, shape index: {}]
  %s1 = inlined_call_operand.vmem [shape: f32[1,8,32], index: 1, kind: input, shape index: {}]
  %s2 = inlined_call_operand.vmem [shape: f32[4,8,32], index: 2, kind: input, shape index: {}]
  %s3 = inlined_call_operand.vmem [shape: f32[1,1,32], index: 3, kind: input, shape index: {}]
  %s4 = inlined_call_operand.vmem [shape: f32[1,1,32], index: 4, kind: input, shape index: {}]
  %s5 = inlined_call_operand.vmem [shape: bf16[4,8,32], index: 5, kind: output, shape index: {}]
  %s6 = sld [smem:[#allocation0]]
  $region53: #{_lambda_.12} parent=0
    _
  %s8 = ssub.s32 1, %s6
  %s9 = scalar_select 0, %s8, %s6
  loop: start=0, step=1, limit=6
  $region2: #{_lambda_.12} parent=0 // loop_pre_header
    _
  $region3: #{_lambda_.12} parent=0 // loop_header
    %s11 = sphi 0, %s15
    %p12 = scmp.ge.s32.totalorder %s11, 6
    %s21 = sphi 0, %s23
    %s24 = sphi 0, %s21
    %s25 = sphi 0, %s24
    %s41 = sphi 0, %s25
    %s45 = sphi 0, %s45
    %s47 = sphi 0, %s45
    %s48 = sphi 0, %s47
    %s62 = sphi 0, %s48
    %s68 = sphi 0, %s70
    %s71 = sphi 0, %s68
    %s72 = sphi 0, %s71
    %s88 = sphi 0, %s72
    %s92 = sphi 0, %s92
    %s94 = sphi 0, %s92
    %s95 = sphi 0, %s94
    %s109 = sphi 0, %s95
    %s113 = sphi 0, %s113
    %s115 = sphi 0, %s113
    %s116 = sphi 0, %s115
    %s130 = sphi 0, %s116
    %s136 = sphi 0, %s138
    %s139 = sphi 0, %s136
    %s140 = sphi 0, %s139
    %s156 = sphi 0, %s140
  $region4: #{_lambda_.12} parent=0 // loop_header_branch
    %14 = sbr.rel (%p12) target = $region8
  $region5: #{_lambda_.12} parent=0 // loop_body
    %s16 = ssub.s32 %s11, 1
    %s17 = ssub.s32 %s11, 2
    %s18 = sadd.s32 %s11, 1
    %s19 = ssub.s32 %s11, %s18
    %p20 = scmp.eq.s32.totalorder %s19, 0
    %s22 = sadd.s32 %s21, 1
    %s23 = scalar_select %p20, %s21, %s22
    %p26 = pneg %p20
    %p27 = scmp.eq.s32.totalorder %s11, 3
    %p28 = por %p26, %p27
    %p29 = scmp.ne.s32.totalorder %s21, %s24
    %p30 = scmp.eq.s32.totalorder %s11, 0
    %p31 = por %p29, %p30
    %p32 = scmp.ne.s32.totalorder %s21, %s24
    %p33 = scmp.eq.s32.totalorder %s16, 3
    %p34 = por %p32, %p33
    %p35 = scmp.ne.s32.totalorder %s24, %s25
    %p36 = scmp.eq.s32.totalorder %s16, 0
    %p37 = por %p35, %p36
    %p38 = scmp.ne.s32.totalorder %s24, %s25
    %p39 = scmp.eq.s32.totalorder %s17, 3
    %p40 = por %p38, %p39
    %p42 = scmp.ne.s32.totalorder %s25, %s41
    %p43 = scmp.eq.s32.totalorder %s17, 0
    %p44 = por %p42, %p43
    %s46 = sadd.s32 %s45, 1
    %p49 = scmp.eq.s32.totalorder %s11, 3
    %p50 = scmp.ne.s32.totalorder %s45, %s47
    %p51 = scmp.eq.s32.totalorder %s11, 0
    %p52 = por %p50, %p51
    %p53 = scmp.ne.s32.totalorder %s45, %s47
    %p54 = scmp.eq.s32.totalorder %s16, 3
    %p55 = por %p53, %p54
    %p56 = scmp.ne.s32.totalorder %s47, %s48
    %p57 = scmp.eq.s32.totalorder %s16, 0
    %p58 = por %p56, %p57
    %p59 = scmp.ne.s32.totalorder %s47, %s48
    %p60 = scmp.eq.s32.totalorder %s17, 3
    %p61 = por %p59, %p60
    %p63 = scmp.ne.s32.totalorder %s48, %s62
    %p64 = scmp.eq.s32.totalorder %s17, 0
    %p65 = por %p63, %p64
    %s66 = ssub.s32 %s11, %s18
    %p67 = scmp.eq.s32.totalorder %s66, 0
    %s69 = sadd.s32 %s68, 1
    %s70 = scalar_select %p67, %s68, %s69
    %p73 = pneg %p67
    %p74 = scmp.eq.s32.totalorder %s11, 3
    %p75 = por %p73, %p74
    %p76 = scmp.ne.s32.totalorder %s68, %s71
    %p77 = scmp.eq.s32.totalorder %s11, 0
    %p78 = por %p76, %p77
    %p79 = scmp.ne.s32.totalorder %s68, %s71
    %p80 = scmp.eq.s32.totalorder %s16, 3
    %p81 = por %p79, %p80
    %p82 = scmp.ne.s32.totalorder %s71, %s72
    %p83 = scmp.eq.s32.totalorder %s16, 0
    %p84 = por %p82, %p83
    %p85 = scmp.ne.s32.totalorder %s71, %s72
    %p86 = scmp.eq.s32.totalorder %s17, 3
    %p87 = por %p85, %p86
    %p89 = scmp.ne.s32.totalorder %s72, %s88
    %p90 = scmp.eq.s32.totalorder %s17, 0
    %p91 = por %p89, %p90
    %s93 = sadd.s32 %s92, 1
    %p96 = scmp.eq.s32.totalorder %s11, 3
    %p97 = scmp.ne.s32.totalorder %s92, %s94
    %p98 = scmp.eq.s32.totalorder %s11, 0
    %p99 = por %p97, %p98
    %p100 = scmp.ne.s32.totalorder %s92, %s94
    %p101 = scmp.eq.s32.totalorder %s16, 3
    %p102 = por %p100, %p101
    %p103 = scmp.ne.s32.totalorder %s94, %s95
    %p104 = scmp.eq.s32.totalorder %s16, 0
    %p105 = por %p103, %p104
    %p106 = scmp.ne.s32.totalorder %s94, %s95
    %p107 = scmp.eq.s32.totalorder %s17, 3
    %p108 = por %p106, %p107
    %p110 = scmp.ne.s32.totalorder %s95, %s109
    %p111 = scmp.eq.s32.totalorder %s17, 0
    %p112 = por %p110, %p111
    %s114 = sadd.s32 %s113, 1
    %p117 = scmp.eq.s32.totalorder %s11, 3
    %p118 = scmp.ne.s32.totalorder %s113, %s115
    %p119 = scmp.eq.s32.totalorder %s11, 0
    %p120 = por %p118, %p119
    %p121 = scmp.ne.s32.totalorder %s113, %s115
    %p122 = scmp.eq.s32.totalorder %s16, 3
    %p123 = por %p121, %p122
    %p124 = scmp.ne.s32.totalorder %s115, %s116
    %p125 = scmp.eq.s32.totalorder %s16, 0
    %p126 = por %p124, %p125
    %p127 = scmp.ne.s32.totalorder %s115, %s116
    %p128 = scmp.eq.s32.totalorder %s17, 3
    %p129 = por %p127, %p128
    %p131 = scmp.ne.s32.totalorder %s116, %s130
    %p132 = scmp.eq.s32.totalorder %s17, 0
    %p133 = por %p131, %p132
    %s134 = ssub.s32 %s11, %s18
    %p135 = scmp.eq.s32.totalorder %s134, 0
    %s137 = sadd.s32 %s136, 1
    %s138 = scalar_select %p135, %s136, %s137
    %p141 = pneg %p135
    %p142 = scmp.eq.s32.totalorder %s11, 3
    %p143 = por %p141, %p142
    %p144 = scmp.ne.s32.totalorder %s136, %s139
    %p145 = scmp.eq.s32.totalorder %s11, 0
    %p146 = por %p144, %p145
    %p147 = scmp.ne.s32.totalorder %s136, %s139
    %p148 = scmp.eq.s32.totalorder %s16, 3
    %p149 = por %p147, %p148
    %p150 = scmp.ne.s32.totalorder %s139, %s140
    %p151 = scmp.eq.s32.totalorder %s16, 0
    %p152 = por %p150, %p151
    %p153 = scmp.ne.s32.totalorder %s139, %s140
    %p154 = scmp.eq.s32.totalorder %s17, 3
    %p155 = por %p153, %p154
    %p157 = scmp.ne.s32.totalorder %s140, %s156
    %p158 = scmp.eq.s32.totalorder %s17, 0
    %p159 = por %p157, %p158
    %p160 = scmp.le.s32.totalorder 1, %s11
    %p161 = scmp.lt.s32.totalorder %s11, 5
    %p162 = pnand %p160, %p161
    %p163 = pneg %p162
    // Predicated region
    $region9: #{_lambda_.12} parent=5 // pred_check
      _
    $region10: #{_lambda_.12} parent=5 // pred_check_branch
      %165 = sbr.rel (%p162) target = $region12
    $region11: #{_lambda_.12} parent=5 // pred_region
      %s166 = ssub.s32 %s11, 1
      // Predicated region
      $region13: #{_lambda_.12} parent=11 // pred_check
        %p167 = pneg %p58
      $region14: #{_lambda_.12} parent=11 // pred_check_branch
        %169 = sbr.rel (%p167) target = $region16
      $region15: #{_lambda_.12} parent=11 // pred_region
        _
      $region16: #{_lambda_.12} parent=11 // pred_fallthru
        _
      // Predicated region
      $region17: #{_lambda_.12} parent=11 // pred_check
        %p170 = pneg %p105
      $region18: #{_lambda_.12} parent=11 // pred_check_branch
        %172 = sbr.rel (%p170) target = $region20
      $region19: #{_lambda_.12} parent=11 // pred_region
        _
      $region20: #{_lambda_.12} parent=11 // pred_fallthru
        _
      // Predicated region
      $region21: #{_lambda_.12} parent=11 // pred_check
        %p173 = pneg %p126
      $region22: #{_lambda_.12} parent=11 // pred_check_branch
        %175 = sbr.rel (%p173) target = $region24
      $region23: #{_lambda_.12} parent=11 // pred_region
        _
      $region24: #{_lambda_.12} parent=11 // pred_fallthru
        _
    $region12: #{_lambda_.12} parent=5 // pred_fallthru
      _
    %p176 = scmp.lt.s32.totalorder %s11, 4
    // Predicated region
    $region25: #{_lambda_.12} parent=5 // pred_check
      %p177 = pneg %p176
    $region26: #{_lambda_.12} parent=5 // pred_check_branch
      %179 = sbr.rel (%p177) target = $region28
    $region27: #{_lambda_.12} parent=5 // pred_region
      // Predicated region
      $region29: #{_lambda_.12} parent=27 // pred_check
        %p180 = pneg %p31
      $region30: #{_lambda_.12} parent=27 // pred_check_branch
        %182 = sbr.rel (%p180) target = $region32
      $region31: #{_lambda_.12} parent=27 // pred_region
        %p183 = scmp.lt.s32.totalorder %s11, 3
        %s184 = scalar_select %p183, %s11, 3
        %s185 = smul.addr %s184, 8
        %s186 = scalar_lea.vmem %s0, %s185
      $region32: #{_lambda_.12} parent=27 // pred_fallthru
        _
      // Predicated region
      $region33: #{_lambda_.12} parent=27 // pred_check
        %p187 = pneg %p78
      $region34: #{_lambda_.12} parent=27 // pred_check_branch
        %189 = sbr.rel (%p187) target = $region36
      $region35: #{_lambda_.12} parent=27 // pred_region
        %p190 = scmp.lt.s32.totalorder %s11, 3
        %s191 = scalar_select %p190, %s11, 3
        %s192 = smul.addr %s191, 8
        %s193 = scalar_lea.vmem %s2, %s192
      $region36: #{_lambda_.12} parent=27 // pred_fallthru
        _
    $region28: #{_lambda_.12} parent=5 // pred_fallthru
      _
    %p194 = scmp.le.s32.totalorder 1, %s11
    %p195 = scmp.lt.s32.totalorder %s11, 5
    %p196 = pnand %p194, %p195
    %p197 = pneg %p196
    // Predicated region
    $region37: #{_lambda_.12} parent=5 // pred_check
      _
    $region38: #{_lambda_.12} parent=5 // pred_check_branch
      %199 = sbr.rel (%p196) target = $region40
    $region39: #{_lambda_.12} parent=5 // pred_region
      %s200 = ssub.s32 %s11, 1
      %p201 = scmp.lt.s32.totalorder %s16, 3
      %s202 = scalar_select %p201, %s16, 3
      %s203 = smul.addr %s202, 8
      %s204 = scalar_lea.vmem %s0, %s203
      %p205 = pneg %p37
      %p206 = pneg %p34
      %p207 = pneg %p58
      %p208 = pneg %p55
      %p209 = scmp.lt.s32.totalorder %s16, 3
      %s210 = scalar_select %p209, %s16, 3
      %s211 = smul.addr %s210, 8
      %s212 = scalar_lea.vmem %s2, %s211
      %p213 = pneg %p84
      %p214 = pneg %p81
      %p215 = pneg %p105
      %p216 = pneg %p102
      %p217 = pneg %p126
      %p218 = pneg %p123
      %p219 = pneg %p152
      %p220 = pneg %p149
      %p221 = scmp.lt.s32.totalorder %s16, 3
      %s222 = scalar_select %p221, %s16, 3
      %s223 = smul.addr %s222, 4
      %s224 = scalar_lea.vmem %s5, %s223
      %p225 = scmp.lt.s32.totalorder %s16, 3
      %s226 = scalar_select %p225, %s16, 3
      %s227 = smul.addr %s226, 8
      %s228 = scalar_lea.vmem %s0, %s227
      %p229 = scmp.lt.s32.totalorder %s16, 3
      %s230 = scalar_select %p229, %s16, 3
      %s231 = smul.addr %s230, 8
      %s232 = scalar_lea.vmem %s2, %s231
      %p233 = scmp.lt.s32.totalorder %s16, 3
      %s234 = scalar_select %p233, %s16, 3
      %s235 = smul.addr %s234, 4
      %s236 = scalar_lea.vmem %s5, %s235
      %v237 = vld [vmem:[%s228] sm:$0xff]
      %v238 = vld [vmem:[%s1] sm:$0xff]
      %v239 = vadd.f32 %v237, %v238
      %v240 = vld [vmem:[%s232] sm:$0xff]
      %v241 = vadd.f32 %v239, %v240
      %vm242 = vcmask 261120
      %v243 = vsel %vm242, %v241, 0.0
      %244 = vadd.xlane.f32.xlu0 %v243
      %v245 = vpop.xlane.xlu0 %244
      %v246 = vrcp.pop 32.0
      %v247 = vmul.f32 %v245, %v246
      %v248 = vsub.f32 %v241, %v247
      %v249 = vmul.f32 %v248, %v248
      %v250 = vsel %vm242, %v249, 0.0
      %251 = vadd.xlane.f32.xlu0 %v250
      %v252 = vpop.xlane.xlu0 %251
      %v253 = vmul.f32 %v252, %v246
      %v254 = vadd.f32 %v253, 1e-12
      %v255 = vrsqrt.pop %v254
      %v256 = vmul.f32 %v248, %v255
      %v257 = vld [vmem:[%s3] sm:$0x1]
      %v259 = vlaneseq
      %v260 = vshrl.u32 %v259, 7
      %v261 = vsub.s32 0, %v260
      %v262 = vrot.slane %v257, %v261
      %v264 = vmul.f32 %v256, %v262
      %v265 = vld [vmem:[%s4] sm:$0x1]
      %v267 = vlaneseq
      %v268 = vshrl.u32 %v267, 7
      %v269 = vsub.s32 0, %v268
      %v270 = vrot.slane %v265, %v269
      %v272 = vadd.f32 %v264, %v270
      %v273 = vpack.c.bf16 %v272, %v272
      %vm274 = vcmask 257024
      %275 = vst.msk [vmem:[%s236] sm:$0xf] %vm274, %v273
      %p276 = scmp.lt.s32.totalorder %s16, 3
      %s277 = scalar_select %p276, %s16, 3
      %s278 = smul.addr %s277, 4
      %s279 = scalar_lea.vmem %s5, %s278
      // Predicated region
      $region41: #{_lambda_.12} parent=39 // pred_check
        %p280 = pneg %p149
      $region42: #{_lambda_.12} parent=39 // pred_check_branch
        %282 = sbr.rel (%p280) target = $region44
      $region43: #{_lambda_.12} parent=39 // pred_region
        _
      $region44: #{_lambda_.12} parent=39 // pred_fallthru
        _
    $region40: #{_lambda_.12} parent=5 // pred_fallthru
      _
    %p283 = scmp.le.s32.totalorder 2, %s11
    // Predicated region
    $region45: #{_lambda_.12} parent=5 // pred_check
      %p284 = pneg %p283
    $region46: #{_lambda_.12} parent=5 // pred_check_branch
      %286 = sbr.rel (%p284) target = $region48
    $region47: #{_lambda_.12} parent=5 // pred_region
      %s287 = ssub.s32 %s11, 2
      // Predicated region
      $region49: #{_lambda_.12} parent=47 // pred_check
        %p288 = pneg %p155
      $region50: #{_lambda_.12} parent=47 // pred_check_branch
        %290 = sbr.rel (%p288) target = $region52
      $region51: #{_lambda_.12} parent=47 // pred_region
        %p291 = scmp.lt.s32.totalorder %s17, 3
        %s292 = scalar_select %p291, %s17, 3
        %s293 = smul.addr %s292, 4
        %s294 = scalar_lea.vmem %s5, %s293
      $region52: #{_lambda_.12} parent=47 // pred_fallthru
        _
    $region48: #{_lambda_.12} parent=5 // pred_fallthru
      _
  $region6: #{_lambda_.12} parent=0 // loop_footer
    %s15 = sadd.s32 1, %s11
  $region7: #{_lambda_.12} parent=0 // loop_footer_branch
    %10 = sbr.rel target = $region3
  $region8: #{_lambda_.12} parent=0 // loop_exit
    _

// kernel: _lambda_.15
$region0: #{_lambda_.15}
  #allocation0 [shape = 'u32[]', space=smem, size = 0x4, offset = 0x4, fixed_abs, tag = 'smem constant byte address 0x4 - core index']
  #allocation1 [shape = 'u32[144,128]{1,0:T(1,128)}', space=vmem, size = 0x12000, scoped, tag = 'internal scratch']
  %s0 = inlined_call_operand.vmem [shape: bf16[4,16,96], index: 0, kind: input, shape index: {}]
  %s1 = inlined_call_operand.vmem [shape: f32[4,1,16], index: 1, kind: input, shape index: {}]
  %s2 = inlined_call_operand.vmem [shape: bf16[4,16,32], index: 2, kind: output, shape index: {}]
  %s3 = sld [smem:[#allocation0]]
  $region41: #{_lambda_.15} parent=0
    _
  %s5 = ssub.s32 1, %s3
  %s6 = scalar_select 0, %s5, %s3
  loop: start=0, step=1, limit=6
  $region2: #{_lambda_.15} parent=0 // loop_pre_header
    _
  $region3: #{_lambda_.15} parent=0 // loop_header
    %s8 = sphi 0, %s12
    %p9 = scmp.ge.s32.totalorder %s8, 6
    %s18 = sphi 0, %s20
    %s21 = sphi 0, %s18
    %s22 = sphi 0, %s21
    %s38 = sphi 0, %s22
    %s44 = sphi 0, %s46
    %s47 = sphi 0, %s44
    %s48 = sphi 0, %s47
    %s64 = sphi 0, %s48
    %s70 = sphi 0, %s72
    %s73 = sphi 0, %s70
    %s74 = sphi 0, %s73
    %s90 = sphi 0, %s74
  $region4: #{_lambda_.15} parent=0 // loop_header_branch
    %11 = sbr.rel (%p9) target = $region8
  $region5: #{_lambda_.15} parent=0 // loop_body
    %s13 = ssub.s32 %s8, 1
    %s14 = ssub.s32 %s8, 2
    %s15 = sadd.s32 %s8, 1
    %s16 = ssub.s32 %s8, %s15
    %p17 = scmp.eq.s32.totalorder %s16, 0
    %s19 = sadd.s32 %s18, 1
    %s20 = scalar_select %p17, %s18, %s19
    %p23 = pneg %p17
    %p24 = scmp.eq.s32.totalorder %s8, 3
    %p25 = por %p23, %p24
    %p26 = scmp.ne.s32.totalorder %s18, %s21
    %p27 = scmp.eq.s32.totalorder %s8, 0
    %p28 = por %p26, %p27
    %p29 = scmp.ne.s32.totalorder %s18, %s21
    %p30 = scmp.eq.s32.totalorder %s13, 3
    %p31 = por %p29, %p30
    %p32 = scmp.ne.s32.totalorder %s21, %s22
    %p33 = scmp.eq.s32.totalorder %s13, 0
    %p34 = por %p32, %p33
    %p35 = scmp.ne.s32.totalorder %s21, %s22
    %p36 = scmp.eq.s32.totalorder %s14, 3
    %p37 = por %p35, %p36
    %p39 = scmp.ne.s32.totalorder %s22, %s38
    %p40 = scmp.eq.s32.totalorder %s14, 0
    %p41 = por %p39, %p40
    %s42 = ssub.s32 %s8, %s15
    %p43 = scmp.eq.s32.totalorder %s42, 0
    %s45 = sadd.s32 %s44, 1
    %s46 = scalar_select %p43, %s44, %s45
    %p49 = pneg %p43
    %p50 = scmp.eq.s32.totalorder %s8, 3
    %p51 = por %p49, %p50
    %p52 = scmp.ne.s32.totalorder %s44, %s47
    %p53 = scmp.eq.s32.totalorder %s8, 0
    %p54 = por %p52, %p53
    %p55 = scmp.ne.s32.totalorder %s44, %s47
    %p56 = scmp.eq.s32.totalorder %s13, 3
    %p57 = por %p55, %p56
    %p58 = scmp.ne.s32.totalorder %s47, %s48
    %p59 = scmp.eq.s32.totalorder %s13, 0
    %p60 = por %p58, %p59
    %p61 = scmp.ne.s32.totalorder %s47, %s48
    %p62 = scmp.eq.s32.totalorder %s14, 3
    %p63 = por %p61, %p62
    %p65 = scmp.ne.s32.totalorder %s48, %s64
    %p66 = scmp.eq.s32.totalorder %s14, 0
    %p67 = por %p65, %p66
    %s68 = ssub.s32 %s8, %s15
    %p69 = scmp.eq.s32.totalorder %s68, 0
    %s71 = sadd.s32 %s70, 1
    %s72 = scalar_select %p69, %s70, %s71
    %p75 = pneg %p69
    %p76 = scmp.eq.s32.totalorder %s8, 3
    %p77 = por %p75, %p76
    %p78 = scmp.ne.s32.totalorder %s70, %s73
    %p79 = scmp.eq.s32.totalorder %s8, 0
    %p80 = por %p78, %p79
    %p81 = scmp.ne.s32.totalorder %s70, %s73
    %p82 = scmp.eq.s32.totalorder %s13, 3
    %p83 = por %p81, %p82
    %p84 = scmp.ne.s32.totalorder %s73, %s74
    %p85 = scmp.eq.s32.totalorder %s13, 0
    %p86 = por %p84, %p85
    %p87 = scmp.ne.s32.totalorder %s73, %s74
    %p88 = scmp.eq.s32.totalorder %s14, 3
    %p89 = por %p87, %p88
    %p91 = scmp.ne.s32.totalorder %s74, %s90
    %p92 = scmp.eq.s32.totalorder %s14, 0
    %p93 = por %p91, %p92
    %p94 = scmp.le.s32.totalorder 1, %s8
    %p95 = scmp.lt.s32.totalorder %s8, 5
    %p96 = pnand %p94, %p95
    %p97 = pneg %p96
    // Predicated region
    $region9: #{_lambda_.15} parent=5 // pred_check
      _
    $region10: #{_lambda_.15} parent=5 // pred_check_branch
      %99 = sbr.rel (%p96) target = $region12
    $region11: #{_lambda_.15} parent=5 // pred_region
      %s100 = ssub.s32 %s8, 1
    $region12: #{_lambda_.15} parent=5 // pred_fallthru
      _
    %p101 = scmp.lt.s32.totalorder %s8, 4
    // Predicated region
    $region13: #{_lambda_.15} parent=5 // pred_check
      %p102 = pneg %p101
    $region14: #{_lambda_.15} parent=5 // pred_check_branch
      %104 = sbr.rel (%p102) target = $region16
    $region15: #{_lambda_.15} parent=5 // pred_region
      // Predicated region
      $region17: #{_lambda_.15} parent=15 // pred_check
        %p105 = pneg %p28
      $region18: #{_lambda_.15} parent=15 // pred_check_branch
        %107 = sbr.rel (%p105) target = $region20
      $region19: #{_lambda_.15} parent=15 // pred_region
        %p108 = scmp.lt.s32.totalorder %s8, 3
        %s109 = scalar_select %p108, %s8, 3
        %s110 = smul.addr %s109, 2
        %s111 = smul.addr %s110, 4
        %s112 = scalar_lea.vmem %s0, %s111
      $region20: #{_lambda_.15} parent=15 // pred_fallthru
        _
      // Predicated region
      $region21: #{_lambda_.15} parent=15 // pred_check
        %p113 = pneg %p54
      $region22: #{_lambda_.15} parent=15 // pred_check_branch
        %115 = sbr.rel (%p113) target = $region24
      $region23: #{_lambda_.15} parent=15 // pred_region
        %p116 = scmp.lt.s32.totalorder %s8, 3
        %s117 = scalar_select %p116, %s8, 3
        %s118 = scalar_lea.vmem %s1, %s117
      $region24: #{_lambda_.15} parent=15 // pred_fallthru
        _
    $region16: #{_lambda_.15} parent=5 // pred_fallthru
      _
    %p119 = scmp.le.s32.totalorder 1, %s8
    %p120 = scmp.lt.s32.totalorder %s8, 5
    %p121 = pnand %p119, %p120
    %p122 = pneg %p121
    // Predicated region
    $region25: #{_lambda_.15} parent=5 // pred_check
      _
    $region26: #{_lambda_.15} parent=5 // pred_check_branch
      %124 = sbr.rel (%p121) target = $region28
    $region27: #{_lambda_.15} parent=5 // pred_region
      %s125 = ssub.s32 %s8, 1
      %p126 = scmp.lt.s32.totalorder %s13, 3
      %s127 = scalar_select %p126, %s13, 3
      %s128 = smul.addr %s127, 2
      %s129 = smul.addr %s128, 4
      %s130 = scalar_lea.vmem %s0, %s129
      %p131 = pneg %p34
      %p132 = pneg %p31
      %p133 = scmp.lt.s32.totalorder %s13, 3
      %s134 = scalar_select %p133, %s13, 3
      %s135 = scalar_lea.vmem %s1, %s134
      %p136 = pneg %p60
      %p137 = pneg %p57
      %p138 = pneg %p86
      %p139 = pneg %p83
      %p140 = scmp.lt.s32.totalorder %s13, 3
      %s141 = scalar_select %p140, %s13, 3
      %s142 = smul.addr %s141, 2
      %s143 = smul.addr %s142, 4
      %s144 = scalar_lea.vmem %s2, %s143
      %p145 = scmp.lt.s32.totalorder %s13, 3
      %s146 = scalar_select %p145, %s13, 3
      %s147 = smul.addr %s146, 2
      %s148 = smul.addr %s147, 4
      %s149 = scalar_lea.vmem %s0, %s148
      %p150 = scmp.lt.s32.totalorder %s13, 3
      %s151 = scalar_select %p150, %s13, 3
      %s152 = scalar_lea.vmem %s1, %s151
      %p153 = scmp.lt.s32.totalorder %s13, 3
      %s154 = scalar_select %p153, %s13, 3
      %s155 = smul.addr %s154, 2
      %s156 = smul.addr %s155, 4
      %s157 = scalar_lea.vmem %s2, %s156
      %v159 = vld [vmem:[%s152] sm:$0x1]
      %v160 = vld [vmem:[%s149] sm:$0xf]
      %v161 = vld [vmem:[%s149 + $0x4] sm:$0xf]
      %v164 = vunpack.c.l.b16 %v160
      %v165 = vunpack.c.l.b16 %v161
      %v166 = vpack.c.b16 %v165, %v164
      %167 = vrot.lane.b32.xlu0 %v166, 96
      %v168 = vpop.permute.xlu0 %167
      %vm169 = vcmask 130048
      %v171 = vsel %vm169, %v166, 0
      %v174 = vsel %vm169, %v168, 0
      %176 = vmatprep.subr.bf16.mxu0 0
      %177 = vmatpush1.bf16.xpose.msra.mxu0 %v174
      %178 = vmatprep.subr.bf16.mxu0 0
      %179 = vmatpush1.bf16.xpose.msra.mxu0 0
      %180 = vmatprep.subr.bf16.mxu0 0
      %181 = vmatpush1.bf16.xpose.msra.mxu0 0
      %182 = vmatprep.subr.bf16.mxu0 0
      %183 = vmatpush1.bf16.xpose.msra.mxu0 0
      %184 = vmatprep.subr.bf16.mxu0 0
      %185 = vmatpush1.bf16.xpose.msra.mxu0 0
      %186 = vmatprep.subr.bf16.mxu0 0
      %187 = vmatpush1.bf16.xpose.msra.mxu0 0
      %188 = vmatprep.subr.bf16.mxu0 0
      %189 = vmatpush1.bf16.xpose.msra.mxu0 0
      %190 = vmatprep.subr.bf16.mxu0 0
      %191 = vmatpush1.bf16.xpose.msra.mxu0 0
      %192 = vmatprep.subr.bf16.mxu0 0
      %193 = vmatpush1.bf16.xpose.msra.mxu0 0
      %194 = vmatprep.subr.bf16.mxu0 0
      %195 = vmatpush1.bf16.xpose.msra.mxu0 0
      %196 = vmatprep.subr.bf16.mxu0 0
      %197 = vmatpush1.bf16.xpose.msra.mxu0 0
      %198 = vmatprep.subr.bf16.mxu0 0
      %199 = vmatpush1.bf16.xpose.msra.mxu0 0
      %200 = vmatprep.subr.bf16.mxu0 0
      %201 = vmatpush1.bf16.xpose.msra.mxu0 0
      %202 = vmatprep.subr.bf16.mxu0 0
      %203 = vmatpush1.bf16.xpose.msra.mxu0 0
      %204 = vmatprep.subr.bf16.mxu0 0
      %205 = vmatpush1.bf16.xpose.msra.mxu0 0
      %206 = vmatprep.subr.bf16.mxu0 0
      %207 = vmatpush1.bf16.xpose.msra.mxu0 0
      %208 = vmatprep.mubr.bf16.mxu0 0
      %209 = vmatmul.mubr.bf16.gmra.mrb[0].mxu0 %v171
      %v210 = vpop.f32.mrb[0].mxu0
      %v211 = vadd.f32 0.0, %v210
      %v212 = vpop.f32.mrb[0].mxu0
      %v213 = vpop.f32.mrb[0].mxu0
      %v214 = vadd.f32 0.0, %v213
      %v215 = vpop.f32.mrb[0].mxu0
      %216 = vdwg.mxu0
      %v217 = vmul.f32 %v211, 0.25
      %v218 = vmul.f32 %v214, 0.25
      %v220 = vlaneseq
      %v221 = vshrl.u32 %v220, 7
      %v222 = vsub.s32 0, %v221
      %v223 = vrot.slane %v159, %v222
      %v225 = vadd.f32 %v217, %v223
      %v226 = vadd.f32 %v218, %v223
      %v227 = vsel %vm169, %v225, -inf
      %228 = vmax.xlane.f32.xlu0 %v227
      %v229 = vpop.xlane.xlu0 %228
      %v230 = vsel %vm169, %v226, -inf
      %231 = vmax.xlane.f32.xlu0 %v230
      %v232 = vpop.xlane.xlu0 %231
      %v233 = vsub.f32 %v225, %v229
      %v234 = vsub.f32 %v226, %v232
      %v235 = vmul.f32 %v233, 1.442695
      %v236 = vpow.pop %v235
      %v237 = vmul.f32 %v234, 1.442695
      %v238 = vpow.pop %v237
      %v239 = vsel %vm169, %v236, 0.0
      %240 = vadd.xlane.f32.xlu0 %v239
      %v241 = vpop.xlane.xlu0 %240
      %v242 = vsel %vm169, %v238, 0.0
      %243 = vadd.xlane.f32.xlu0 %v242
      %v244 = vpop.xlane.xlu0 %243
      %v245 = vrcp.pop %v241
      %v246 = vrcp.pop %v244
      %v247 = vmul.f32 %v236, %v245
      %v248 = vmul.f32 %v238, %v246
      %v249 = vpack.c.bf16 %v248, %v247
      %250 = vrot.lane.b32.xlu0 %v166, 64
      %v251 = vpop.permute.xlu0 %250
      %v254 = vsel %vm169, %v249, 0
      %256 = vmatprep.subr.bf16.mxu0 0
      %257 = vmatpush1.bf16.msra.mxu0 %v251
      %258 = vmatprep.subr.bf16.mxu0 0
      %259 = vmatpush1.bf16.msra.mxu0 0
      %260 = vmatprep.subr.bf16.mxu0 0
      %261 = vmatpush1.bf16.msra.mxu0 0
      %262 = vmatprep.subr.bf16.mxu0 0
      %263 = vmatpush1.bf16.msra.mxu0 0
      %264 = vmatprep.subr.bf16.mxu0 0
      %265 = vmatpush1.bf16.msra.mxu0 0
      %266 = vmatprep.subr.bf16.mxu0 0
      %267 = vmatpush1.bf16.msra.mxu0 0
      %268 = vmatprep.subr.bf16.mxu0 0
      %269 = vmatpush1.bf16.msra.mxu0 0
      %270 = vmatprep.subr.bf16.mxu0 0
      %271 = vmatpush1.bf16.msra.mxu0 0
      %272 = vmatprep.subr.bf16.mxu0 0
      %273 = vmatpush1.bf16.msra.mxu0 0
      %274 = vmatprep.subr.bf16.mxu0 0
      %275 = vmatpush1.bf16.msra.mxu0 0
      %276 = vmatprep.subr.bf16.mxu0 0
      %277 = vmatpush1.bf16.msra.mxu0 0
      %278 = vmatprep.subr.bf16.mxu0 0
      %279 = vmatpush1.bf16.msra.mxu0 0
      %280 = vmatprep.subr.bf16.mxu0 0
      %281 = vmatpush1.bf16.msra.mxu0 0
      %282 = vmatprep.subr.bf16.mxu0 0
      %283 = vmatpush1.bf16.msra.mxu0 0
      %284 = vmatprep.subr.bf16.mxu0 0
      %285 = vmatpush1.bf16.msra.mxu0 0
      %286 = vmatprep.subr.bf16.mxu0 0
      %287 = vmatpush1.bf16.msra.mxu0 0
      %288 = vmatprep.mubr.bf16.mxu0 0
      %289 = vmatmul.mubr.bf16.gmra.mrb[0].mxu0 %v254
      %v290 = vpop.f32.mrb[0].mxu0
      %v291 = vadd.f32 0.0, %v290
      %v292 = vpop.f32.mrb[0].mxu0
      %v293 = vpop.f32.mrb[0].mxu0
      %v294 = vadd.f32 0.0, %v293
      %v295 = vpop.f32.mrb[0].mxu0
      %296 = vdwg.mxu0
      %v297 = vld [vmem:[%s149] sm:$0xf]
      %v298 = vld [vmem:[%s149 + $0x4] sm:$0xf]
      %v301 = vunpack.c.l.b16 %v297
      %v302 = vunpack.c.l.b16 %v298
      %v303 = vpack.c.b16 %v302, %v301
      %304 = vrot.lane.b32.xlu0 %v303, 112
      %v305 = vpop.permute.xlu0 %304
      %306 = vrot.lane.b32.xlu0 %v303, 80
      %v307 = vpop.permute.xlu0 %306
      %v309 = vsel %vm169, %v305, 0
      %v312 = vsel %vm169, %v307, 0
      %314 = vmatprep.subr.bf16.mxu0 0
      %315 = vmatpush1.bf16.xpose.msra.mxu0 %v312
      %316 = vmatprep.subr.bf16.mxu0 0
      %317 = vmatpush1.bf16.xpose.msra.mxu0 0
      %318 = vmatprep.subr.bf16.mxu0 0
      %319 = vmatpush1.bf16.xpose.msra.mxu0 0
      %320 = vmatprep.subr.bf16.mxu0 0
      %321 = vmatpush1.bf16.xpose.msra.mxu0 0
      %322 = vmatprep.subr.bf16.mxu0 0
      %323 = vmatpush1.bf16.xpose.msra.mxu0 0
      %324 = vmatprep.subr.bf16.mxu0 0
      %325 = vmatpush1.bf16.xpose.msra.mxu0 0
      %326 = vmatprep.subr.bf16.mxu0 0
      %327 = vmatpush1.bf16.xpose.msra.mxu0 0
      %328 = vmatprep.subr.bf16.mxu0 0
      %329 = vmatpush1.bf16.xpose.msra.mxu0 0
      %330 = vmatprep.subr.bf16.mxu0 0
      %331 = vmatpush1.bf16.xpose.msra.mxu0 0
      %332 = vmatprep.subr.bf16.mxu0 0
      %333 = vmatpush1.bf16.xpose.msra.mxu0 0
      %334 = vmatprep.subr.bf16.mxu0 0
      %335 = vmatpush1.bf16.xpose.msra.mxu0 0
      %336 = vmatprep.subr.bf16.mxu0 0
      %337 = vmatpush1.bf16.xpose.msra.mxu0 0
      %338 = vmatprep.subr.bf16.mxu0 0
      %339 = vmatpush1.bf16.xpose.msra.mxu0 0
      %340 = vmatprep.subr.bf16.mxu0 0
      %341 = vmatpush1.bf16.xpose.msra.mxu0 0
      %342 = vmatprep.subr.bf16.mxu0 0
      %343 = vmatpush1.bf16.xpose.msra.mxu0 0
      %344 = vmatprep.subr.bf16.mxu0 0
      %345 = vmatpush1.bf16.xpose.msra.mxu0 0
      %346 = vmatprep.mubr.bf16.mxu0 0
      %347 = vmatmul.mubr.bf16.gmra.mrb[0].mxu0 %v309
      %v348 = vpop.f32.mrb[0].mxu0
      %v349 = vadd.f32 0.0, %v348
      %v350 = vpop.f32.mrb[0].mxu0
      %v351 = vpop.f32.mrb[0].mxu0
      %v352 = vadd.f32 0.0, %v351
      %v353 = vpop.f32.mrb[0].mxu0
      %354 = vdwg.mxu0
      %v355 = vmul.f32 %v349, 0.25
      %v356 = vmul.f32 %v352, 0.25
      %v357 = vadd.f32 %v355, %v223
      %v358 = vadd.f32 %v356, %v223
      %v359 = vsel %vm169, %v357, -inf
      %360 = vmax.xlane.f32.xlu0 %v359
      %v361 = vpop.xlane.xlu0 %360
      %v362 = vsel %vm169, %v358, -inf
      %363 = vmax.xlane.f32.xlu0 %v362
      %v364 = vpop.xlane.xlu0 %363
      %v365 = vsub.f32 %v357, %v361
      %v366 = vsub.f32 %v358, %v364
      %v367 = vmul.f32 %v365, 1.442695
      %v368 = vpow.pop %v367
      %v369 = vmul.f32 %v366, 1.442695
      %v370 = vpow.pop %v369
      %v371 = vsel %vm169, %v368, 0.0
      %372 = vadd.xlane.f32.xlu0 %v371
      %v373 = vpop.xlane.xlu0 %372
      %v374 = vsel %vm169, %v370, 0.0
      %375 = vadd.xlane.f32.xlu0 %v374
      %v376 = vpop.xlane.xlu0 %375
      %v377 = vrcp.pop %v373
      %v378 = vrcp.pop %v376
      %v379 = vmul.f32 %v368, %v377
      %v380 = vmul.f32 %v370, %v378
      %v381 = vpack.c.bf16 %v380, %v379
      %382 = vrot.lane.b32.xlu0 %v303, 48
      %v383 = vpop.permute.xlu0 %382
      %v386 = vsel %vm169, %v381, 0
      %388 = vmatprep.subr.bf16.mxu0 0
      %389 = vmatpush1.bf16.msra.mxu0 %v383
      %390 = vmatprep.subr.bf16.mxu0 0
      %391 = vmatpush1.bf16.msra.mxu0 0
      %392 = vmatprep.subr.bf16.mxu0 0
      %393 = vmatpush1.bf16.msra.mxu0 0
      %394 = vmatprep.subr.bf16.mxu0 0
      %395 = vmatpush1.bf16.msra.mxu0 0
      %396 = vmatprep.subr.bf16.mxu0 0
      %397 = vmatpush1.bf16.msra.mxu0 0
      %398 = vmatprep.subr.bf16.mxu0 0
      %399 = vmatpush1.bf16.msra.mxu0 0
      %400 = vmatprep.subr.bf16.mxu0 0
      %401 = vmatpush1.bf16.msra.mxu0 0
      %402 = vmatprep.subr.bf16.mxu0 0
      %403 = vmatpush1.bf16.msra.mxu0 0
      %404 = vmatprep.subr.bf16.mxu0 0
      %405 = vmatpush1.bf16.msra.mxu0 0
      %406 = vmatprep.subr.bf16.mxu0 0
      %407 = vmatpush1.bf16.msra.mxu0 0
      %408 = vmatprep.subr.bf16.mxu0 0
      %409 = vmatpush1.bf16.msra.mxu0 0
      %410 = vmatprep.subr.bf16.mxu0 0
      %411 = vmatpush1.bf16.msra.mxu0 0
      %412 = vmatprep.subr.bf16.mxu0 0
      %413 = vmatpush1.bf16.msra.mxu0 0
      %414 = vmatprep.subr.bf16.mxu0 0
      %415 = vmatpush1.bf16.msra.mxu0 0
      %416 = vmatprep.subr.bf16.mxu0 0
      %417 = vmatpush1.bf16.msra.mxu0 0
      %418 = vmatprep.subr.bf16.mxu0 0
      %419 = vmatpush1.bf16.msra.mxu0 0
      %420 = vmatprep.mubr.bf16.mxu0 0
      %421 = vmatmul.mubr.bf16.gmra.mrb[0].mxu0 %v386
      %v422 = vpop.f32.mrb[0].mxu0
      %v423 = vadd.f32 0.0, %v422
      %v424 = vpop.f32.mrb[0].mxu0
      %v425 = vpop.f32.mrb[0].mxu0
      %v426 = vadd.f32 0.0, %v425
      %v427 = vpop.f32.mrb[0].mxu0
      %428 = vdwg.mxu0
      %431 = vrot.lane.b32.xlu0 %v423, 16
      %v432 = vpop.permute.xlu0 %431
      %433 = vrot.lane.b32.xlu0 %v426, 16
      %v434 = vpop.permute.xlu0 %433
      %v437 = vsel %vm169, %v291, %v432
      %v438 = vsel %vm169, %v294, %v434
      %v439 = vpack.c.bf16 %v438, %v437
      %v441 = vunpack.c.l.b16 %v439
      %v442 = vunpack.c.h.b16 %v439
      %v443 = vpack.c.b16 %v441, %v441
      %v444 = vpack.c.b16 %v442, %v442
      %vm447 = vcmask 257024
      %448 = vst.msk [vmem:[%s157] sm:$0xf] %vm447, %v443
      %449 = vst.msk [vmem:[%s157 + $0x4] sm:$0xf] %vm447, %v444
      %p450 = scmp.lt.s32.totalorder %s13, 3
      %s451 = scalar_select %p450, %s13, 3
      %s452 = smul.addr %s451, 2
      %s453 = smul.addr %s452, 4
      %s454 = scalar_lea.vmem %s2, %s453
      // Predicated region
      $region29: #{_lambda_.15} parent=27 // pred_check
        %p455 = pneg %p83
      $region30: #{_lambda_.15} parent=27 // pred_check_branch
        %457 = sbr.rel (%p455) target = $region32
      $region31: #{_lambda_.15} parent=27 // pred_region
        _
      $region32: #{_lambda_.15} parent=27 // pred_fallthru
        _
    $region28: #{_lambda_.15} parent=5 // pred_fallthru
      _
    %p458 = scmp.le.s32.totalorder 2, %s8
    // Predicated region
    $region33: #{_lambda_.15} parent=5 // pred_check
      %p459 = pneg %p458
    $region34: #{_lambda_.15} parent=5 // pred_check_branch
      %461 = sbr.rel (%p459) target = $region36
    $region35: #{_lambda_.15} parent=5 // pred_region
      %s462 = ssub.s32 %s8, 2
      // Predicated region
      $region37: #{_lambda_.15} parent=35 // pred_check
        %p463 = pneg %p89
      $region38: #{_lambda_.15} parent=35 // pred_check_branch
        %465 = sbr.rel (%p463) target = $region40
      $region39: #{_lambda_.15} parent=35 // pred_region
        %p466 = scmp.lt.s32.totalorder %s14, 3
        %s467 = scalar_select %p466, %s14, 3
        %s468 = smul.addr %s467, 2
        %s469 = smul.addr %s468, 4
        %s470 = scalar_lea.vmem %s2, %s469
      $region40: #{_lambda_.15} parent=35 // pred_fallthru
        _
    $region36: #{_lambda_.15} parent=5 // pred_fallthru
      _
  $region6: #{_lambda_.15} parent=0 // loop_footer
    %s12 = sadd.s32 1, %s8
  $region7: #{_lambda_.15} parent=0 // loop_footer_branch
    %7 = sbr.rel target = $region3
  $region8: #{_lambda_.15} parent=0 // loop_exit
    _

// kernel: _lambda_.14
$region0: #{_lambda_.14}
  #allocation0 [shape = 'u32[]', space=smem, size = 0x4, offset = 0x4, fixed_abs, tag = 'smem constant byte address 0x4 - core index']
  #allocation1 [shape = 'u32[144,128]{1,0:T(1,128)}', space=vmem, size = 0x12000, scoped, tag = 'internal scratch']
  %s0 = inlined_call_operand.vmem [shape: bf16[64,32], index: 0, kind: input, shape index: {}]
  %s1 = inlined_call_operand.vmem [shape: bf16[32,96], index: 1, kind: input, shape index: {}]
  %s2 = inlined_call_operand.vmem [shape: f32[1,96], index: 2, kind: input, shape index: {}]
  %s3 = inlined_call_operand.vmem [shape: bf16[64,96], index: 3, kind: output, shape index: {}]
  %s4 = sld [smem:[#allocation0]]
  $region22: #{_lambda_.14} parent=0
    _
  %s6 = ssub.s32 1, %s4
  %s7 = scalar_select 0, %s6, %s4
  // Predicated region
  $region2: #{_lambda_.14} parent=0 // pred_check
    _
  $region3: #{_lambda_.14} parent=0 // pred_check_branch
    %9 = sbr.rel (0) target = $region5
  $region4: #{_lambda_.14} parent=0 // pred_region
    _
  $region5: #{_lambda_.14} parent=0 // pred_fallthru
    _
  // Predicated region
  $region6: #{_lambda_.14} parent=0 // pred_check
    _
  $region7: #{_lambda_.14} parent=0 // pred_check_branch
    %11 = sbr.rel (0) target = $region9
  $region8: #{_lambda_.14} parent=0 // pred_region
    _
  $region9: #{_lambda_.14} parent=0 // pred_fallthru
    _
  // Predicated region
  $region10: #{_lambda_.14} parent=0 // pred_check
    _
  $region11: #{_lambda_.14} parent=0 // pred_check_branch
    %13 = sbr.rel (0) target = $region13
  $region12: #{_lambda_.14} parent=0 // pred_region
    _
  $region13: #{_lambda_.14} parent=0 // pred_fallthru
    _
  %v15 = vld [vmem:[%s0] sm:$0xf]
  %v16 = vld [vmem:[%s0 + $0x4] sm:$0xf]
  %v17 = vld [vmem:[%s0 + $0x8] sm:$0xf]
  %v18 = vld [vmem:[%s0 + $0xc] sm:$0xf]
  %v19 = vld [vmem:[%s0 + $0x10] sm:$0xf]
  %v20 = vld [vmem:[%s0 + $0x14] sm:$0xf]
  %v21 = vld [vmem:[%s0 + $0x18] sm:$0xf]
  %v22 = vld [vmem:[%s0 + $0x1c] sm:$0xf]
  %v23 = vld [vmem:[%s1] sm:$0xf]
  %v24 = vld [vmem:[%s1 + $0x4] sm:$0xf]
  %v25 = vld [vmem:[%s1 + $0x8] sm:$0xf]
  %v26 = vld [vmem:[%s1 + $0xc] sm:$0xf]
  %v27 = vld [vmem:[%s2] sm:$0x1]
  %v29 = vlaneseq
  %v30 = vshrl.u32 %v29, 7
  %v31 = vsub.s32 0, %v30
  %v32 = vrot.slane %v27, %v31
  %v42 = vunpack.c.l.b16 %v15
  %v43 = vunpack.c.l.b16 %v16
  %v44 = vunpack.c.l.b16 %v17
  %v45 = vunpack.c.l.b16 %v18
  %v46 = vunpack.c.l.b16 %v19
  %v47 = vunpack.c.l.b16 %v20
  %v48 = vunpack.c.l.b16 %v21
  %v49 = vunpack.c.l.b16 %v22
  %v50 = vpack.c.b16 %v43, %v42
  %v51 = vpack.c.b16 %v45, %v44
  %v52 = vpack.c.b16 %v47, %v46
  %v53 = vpack.c.b16 %v49, %v48
  %v58 = vunpack.c.l.b16 %v23
  %v59 = vunpack.c.l.b16 %v24
  %v60 = vunpack.c.l.b16 %v25
  %v61 = vunpack.c.l.b16 %v26
  %v62 = vpack.c.b16 %v59, %v58
  %v63 = vpack.c.b16 %v61, %v60
  %vm66 = vcmask 261120
  %v68 = vsel %vm66, %v50, 0
  %v71 = vsel %vm66, %v51, 0
  %v74 = vsel %vm66, %v52, 0
  %v77 = vsel %vm66, %v53, 0
  %79 = vmatprep.subr.bf16.mxu0 0
  %80 = vmatpush1.bf16.msra.mxu0 %v62
  %81 = vmatprep.subr.bf16.mxu0 0
  %82 = vmatpush1.bf16.msra.mxu0 %v63
  %83 = vmatprep.subr.bf16.mxu0 0
  %84 = vmatpush1.bf16.msra.mxu0 0
  %85 = vmatprep.subr.bf16.mxu0 0
  %86 = vmatpush1.bf16.msra.mxu0 0
  %87 = vmatprep.subr.bf16.mxu0 0
  %88 = vmatpush1.bf16.msra.mxu0 0
  %89 = vmatprep.subr.bf16.mxu0 0
  %90 = vmatpush1.bf16.msra.mxu0 0
  %91 = vmatprep.subr.bf16.mxu0 0
  %92 = vmatpush1.bf16.msra.mxu0 0
  %93 = vmatprep.subr.bf16.mxu0 0
  %94 = vmatpush1.bf16.msra.mxu0 0
  %95 = vmatprep.subr.bf16.mxu0 0
  %96 = vmatpush1.bf16.msra.mxu0 0
  %97 = vmatprep.subr.bf16.mxu0 0
  %98 = vmatpush1.bf16.msra.mxu0 0
  %99 = vmatprep.subr.bf16.mxu0 0
  %100 = vmatpush1.bf16.msra.mxu0 0
  %101 = vmatprep.subr.bf16.mxu0 0
  %102 = vmatpush1.bf16.msra.mxu0 0
  %103 = vmatprep.subr.bf16.mxu0 0
  %104 = vmatpush1.bf16.msra.mxu0 0
  %105 = vmatprep.subr.bf16.mxu0 0
  %106 = vmatpush1.bf16.msra.mxu0 0
  %107 = vmatprep.subr.bf16.mxu0 0
  %108 = vmatpush1.bf16.msra.mxu0 0
  %109 = vmatprep.subr.bf16.mxu0 0
  %110 = vmatpush1.bf16.msra.mxu0 0
  %111 = vmatprep.mubr.bf16.mxu0 0
  %112 = vmatmul.mubr.bf16.gmra.mrb[0].mxu0 %v68
  %v113 = vpop.f32.mrb[0].mxu0
  %v114 = vadd.f32 %v32, %v113
  %v115 = vpop.f32.mrb[0].mxu0
  %v116 = vpop.f32.mrb[0].mxu0
  %v117 = vadd.f32 %v32, %v116
  %v118 = vpop.f32.mrb[0].mxu0
  %119 = vmatprep.mubr.bf16.mxu0 0
  %120 = vmatmul.mubr.bf16.gmra.mrb[0].mxu0 %v71
  %v121 = vpop.f32.mrb[0].mxu0
  %v122 = vadd.f32 %v32, %v121
  %v123 = vpop.f32.mrb[0].mxu0
  %v124 = vpop.f32.mrb[0].mxu0
  %v125 = vadd.f32 %v32, %v124
  %v126 = vpop.f32.mrb[0].mxu0
  %127 = vmatprep.mubr.bf16.mxu0 0
  %128 = vmatmul.mubr.bf16.gmra.mrb[0].mxu0 %v74
  %v129 = vpop.f32.mrb[0].mxu0
  %v130 = vadd.f32 %v32, %v129
  %v131 = vpop.f32.mrb[0].mxu0
  %v132 = vpop.f32.mrb[0].mxu0
  %v133 = vadd.f32 %v32, %v132
  %v134 = vpop.f32.mrb[0].mxu0
  %135 = vmatprep.mubr.bf16.mxu0 0
  %136 = vmatmul.mubr.bf16.gmra.mrb[0].mxu0 %v77
  %v137 = vpop.f32.mrb[0].mxu0
  %v138 = vadd.f32 %v32, %v137
  %v139 = vpop.f32.mrb[0].mxu0
  %v140 = vpop.f32.mrb[0].mxu0
  %v141 = vadd.f32 %v32, %v140
  %v142 = vpop.f32.mrb[0].mxu0
  %143 = vdwg.mxu0
  %v144 = vpack.c.bf16 %v117, %v114
  %v145 = vpack.c.bf16 %v125, %v122
  %v146 = vpack.c.bf16 %v133, %v130
  %v147 = vpack.c.bf16 %v141, %v138
  %v152 = vunpack.c.l.b16 %v144
  %v153 = vunpack.c.h.b16 %v144
  %v154 = vunpack.c.l.b16 %v145
  %v155 = vunpack.c.h.b16 %v145
  %v156 = vunpack.c.l.b16 %v146
  %v157 = vunpack.c.h.b16 %v146
  %v158 = vunpack.c.l.b16 %v147
  %v159 = vunpack.c.h.b16 %v147
  %v160 = vpack.c.b16 %v152, %v152
  %v161 = vpack.c.b16 %v153, %v153
  %v162 = vpack.c.b16 %v154, %v154
  %v163 = vpack.c.b16 %v155, %v155
  %v164 = vpack.c.b16 %v156, %v156
  %v165 = vpack.c.b16 %v157, %v157
  %v166 = vpack.c.b16 %v158, %v158
  %v167 = vpack.c.b16 %v159, %v159
  %vm176 = vcmask 781312
  %177 = vst.msk [vmem:[%s3] sm:$0xf] %vm176, %v160
  %178 = vst.msk [vmem:[%s3 + $0x4] sm:$0xf] %vm176, %v161
  %179 = vst.msk [vmem:[%s3 + $0x8] sm:$0xf] %vm176, %v162
  %180 = vst.msk [vmem:[%s3 + $0xc] sm:$0xf] %vm176, %v163
  %181 = vst.msk [vmem:[%s3 + $0x10] sm:$0xf] %vm176, %v164
  %182 = vst.msk [vmem:[%s3 + $0x14] sm:$0xf] %vm176, %v165
  %183 = vst.msk [vmem:[%s3 + $0x18] sm:$0xf] %vm176, %v166
  %184 = vst.msk [vmem:[%s3 + $0x1c] sm:$0xf] %vm176, %v167
  // Predicated region
  $region14: #{_lambda_.14} parent=0 // pred_check
    _
  $region15: #{_lambda_.14} parent=0 // pred_check_branch
    %186 = sbr.rel (0) target = $region17
  $region16: #{_lambda_.14} parent=0 // pred_region
    _
  $region17: #{_lambda_.14} parent=0 // pred_fallthru
    _
  // Predicated region
  $region18: #{_lambda_.14} parent=0 // pred_check
    _
  $region19: #{_lambda_.14} parent=0 // pred_check_branch
    %188 = sbr.rel (0) target = $region21
  $region20: #{_lambda_.14} parent=0 // pred_region
    _
  $region21: #{_lambda_.14} parent=0 // pred_fallthru
    _

// kernel: _lambda_.16
$region0: #{_lambda_.16}
  #allocation0 [shape = 'u32[]', space=smem, size = 0x4, offset = 0x4, fixed_abs, tag = 'smem constant byte address 0x4 - core index']
  #allocation1 [shape = 'u32[144,128]{1,0:T(1,128)}', space=vmem, size = 0x12000, scoped, tag = 'internal scratch']
  %s0 = inlined_call_operand.vmem [shape: bf16[64,32], index: 0, kind: input, shape index: {}]
  %s1 = inlined_call_operand.vmem [shape: bf16[32,32], index: 1, kind: input, shape index: {}]
  %s2 = inlined_call_operand.vmem [shape: f32[1,32], index: 2, kind: input, shape index: {}]
  %s3 = inlined_call_operand.vmem [shape: bf16[64,32], index: 3, kind: input, shape index: {}]
  %s4 = inlined_call_operand.vmem [shape: f32[1,32], index: 4, kind: input, shape index: {}]
  %s5 = inlined_call_operand.vmem [shape: f32[1,32], index: 5, kind: input, shape index: {}]
  %s6 = inlined_call_operand.vmem [shape: bf16[64,32], index: 6, kind: output, shape index: {}]
  %s7 = sld [smem:[#allocation0]]
  $region34: #{_lambda_.16} parent=0
    _
  %s9 = ssub.s32 1, %s7
  %s10 = scalar_select 0, %s9, %s7
  // Predicated region
  $region2: #{_lambda_.16} parent=0 // pred_check
    _
  $region3: #{_lambda_.16} parent=0 // pred_check_branch
    %12 = sbr.rel (0) target = $region5
  $region4: #{_lambda_.16} parent=0 // pred_region
    _
  $region5: #{_lambda_.16} parent=0 // pred_fallthru
    _
  // Predicated region
  $region6: #{_lambda_.16} parent=0 // pred_check
    _
  $region7: #{_lambda_.16} parent=0 // pred_check_branch
    %14 = sbr.rel (0) target = $region9
  $region8: #{_lambda_.16} parent=0 // pred_region
    _
  $region9: #{_lambda_.16} parent=0 // pred_fallthru
    _
  // Predicated region
  $region10: #{_lambda_.16} parent=0 // pred_check
    _
  $region11: #{_lambda_.16} parent=0 // pred_check_branch
    %16 = sbr.rel (0) target = $region13
  $region12: #{_lambda_.16} parent=0 // pred_region
    _
  $region13: #{_lambda_.16} parent=0 // pred_fallthru
    _
  // Predicated region
  $region14: #{_lambda_.16} parent=0 // pred_check
    _
  $region15: #{_lambda_.16} parent=0 // pred_check_branch
    %18 = sbr.rel (0) target = $region17
  $region16: #{_lambda_.16} parent=0 // pred_region
    _
  $region17: #{_lambda_.16} parent=0 // pred_fallthru
    _
  // Predicated region
  $region18: #{_lambda_.16} parent=0 // pred_check
    _
  $region19: #{_lambda_.16} parent=0 // pred_check_branch
    %20 = sbr.rel (0) target = $region21
  $region20: #{_lambda_.16} parent=0 // pred_region
    _
  $region21: #{_lambda_.16} parent=0 // pred_fallthru
    _
  // Predicated region
  $region22: #{_lambda_.16} parent=0 // pred_check
    _
  $region23: #{_lambda_.16} parent=0 // pred_check_branch
    %22 = sbr.rel (0) target = $region25
  $region24: #{_lambda_.16} parent=0 // pred_region
    _
  $region25: #{_lambda_.16} parent=0 // pred_fallthru
    _
  %v24 = vld [vmem:[%s0] sm:$0xf]
  %v25 = vld [vmem:[%s0 + $0x4] sm:$0xf]
  %v26 = vld [vmem:[%s0 + $0x8] sm:$0xf]
  %v27 = vld [vmem:[%s0 + $0xc] sm:$0xf]
  %v28 = vld [vmem:[%s0 + $0x10] sm:$0xf]
  %v29 = vld [vmem:[%s0 + $0x14] sm:$0xf]
  %v30 = vld [vmem:[%s0 + $0x18] sm:$0xf]
  %v31 = vld [vmem:[%s0 + $0x1c] sm:$0xf]
  %v32 = vld [vmem:[%s1] sm:$0xf]
  %v33 = vld [vmem:[%s1 + $0x4] sm:$0xf]
  %v34 = vld [vmem:[%s1 + $0x8] sm:$0xf]
  %v35 = vld [vmem:[%s1 + $0xc] sm:$0xf]
  %v36 = vld [vmem:[%s2] sm:$0x1]
  %v38 = vlaneseq
  %v39 = vshrl.u32 %v38, 7
  %v40 = vsub.s32 0, %v39
  %v41 = vrot.slane %v36, %v40
  %v51 = vunpack.c.l.b16 %v24
  %v52 = vunpack.c.l.b16 %v25
  %v53 = vunpack.c.l.b16 %v26
  %v54 = vunpack.c.l.b16 %v27
  %v55 = vunpack.c.l.b16 %v28
  %v56 = vunpack.c.l.b16 %v29
  %v57 = vunpack.c.l.b16 %v30
  %v58 = vunpack.c.l.b16 %v31
  %v59 = vpack.c.b16 %v52, %v51
  %v60 = vpack.c.b16 %v54, %v53
  %v61 = vpack.c.b16 %v56, %v55
  %v62 = vpack.c.b16 %v58, %v57
  %v67 = vunpack.c.l.b16 %v32
  %v68 = vunpack.c.l.b16 %v33
  %v69 = vunpack.c.l.b16 %v34
  %v70 = vunpack.c.l.b16 %v35
  %v71 = vpack.c.b16 %v68, %v67
  %v72 = vpack.c.b16 %v70, %v69
  %vm75 = vcmask 261120
  %v77 = vsel %vm75, %v59, 0
  %v80 = vsel %vm75, %v60, 0
  %v83 = vsel %vm75, %v61, 0
  %v86 = vsel %vm75, %v62, 0
  %88 = vmatprep.subr.bf16.mxu0 0
  %89 = vmatpush1.bf16.msra.mxu0 %v71
  %90 = vmatprep.subr.bf16.mxu0 0
  %91 = vmatpush1.bf16.msra.mxu0 %v72
  %92 = vmatprep.subr.bf16.mxu0 0
  %93 = vmatpush1.bf16.msra.mxu0 0
  %94 = vmatprep.subr.bf16.mxu0 0
  %95 = vmatpush1.bf16.msra.mxu0 0
  %96 = vmatprep.subr.bf16.mxu0 0
  %97 = vmatpush1.bf16.msra.mxu0 0
  %98 = vmatprep.subr.bf16.mxu0 0
  %99 = vmatpush1.bf16.msra.mxu0 0
  %100 = vmatprep.subr.bf16.mxu0 0
  %101 = vmatpush1.bf16.msra.mxu0 0
  %102 = vmatprep.subr.bf16.mxu0 0
  %103 = vmatpush1.bf16.msra.mxu0 0
  %104 = vmatprep.subr.bf16.mxu0 0
  %105 = vmatpush1.bf16.msra.mxu0 0
  %106 = vmatprep.subr.bf16.mxu0 0
  %107 = vmatpush1.bf16.msra.mxu0 0
  %108 = vmatprep.subr.bf16.mxu0 0
  %109 = vmatpush1.bf16.msra.mxu0 0
  %110 = vmatprep.subr.bf16.mxu0 0
  %111 = vmatpush1.bf16.msra.mxu0 0
  %112 = vmatprep.subr.bf16.mxu0 0
  %113 = vmatpush1.bf16.msra.mxu0 0
  %114 = vmatprep.subr.bf16.mxu0 0
  %115 = vmatpush1.bf16.msra.mxu0 0
  %116 = vmatprep.subr.bf16.mxu0 0
  %117 = vmatpush1.bf16.msra.mxu0 0
  %118 = vmatprep.subr.bf16.mxu0 0
  %119 = vmatpush1.bf16.msra.mxu0 0
  %120 = vmatprep.mubr.bf16.mxu0 0
  %121 = vmatmul.mubr.bf16.gmra.mrb[0].mxu0 %v77
  %v122 = vpop.f32.mrb[0].mxu0
  %v123 = vadd.f32 %v41, %v122
  %v124 = vpop.f32.mrb[0].mxu0
  %v125 = vpop.f32.mrb[0].mxu0
  %v126 = vadd.f32 %v41, %v125
  %v127 = vpop.f32.mrb[0].mxu0
  %128 = vmatprep.mubr.bf16.mxu0 0
  %129 = vmatmul.mubr.bf16.gmra.mrb[0].mxu0 %v80
  %v130 = vpop.f32.mrb[0].mxu0
  %v131 = vadd.f32 %v41, %v130
  %v132 = vpop.f32.mrb[0].mxu0
  %v133 = vpop.f32.mrb[0].mxu0
  %v134 = vadd.f32 %v41, %v133
  %v135 = vpop.f32.mrb[0].mxu0
  %136 = vmatprep.mubr.bf16.mxu0 0
  %137 = vmatmul.mubr.bf16.gmra.mrb[0].mxu0 %v83
  %v138 = vpop.f32.mrb[0].mxu0
  %v139 = vadd.f32 %v41, %v138
  %v140 = vpop.f32.mrb[0].mxu0
  %v141 = vpop.f32.mrb[0].mxu0
  %v142 = vadd.f32 %v41, %v141
  %v143 = vpop.f32.mrb[0].mxu0
  %144 = vmatprep.mubr.bf16.mxu0 0
  %145 = vmatmul.mubr.bf16.gmra.mrb[0].mxu0 %v86
  %v146 = vpop.f32.mrb[0].mxu0
  %v147 = vadd.f32 %v41, %v146
  %v148 = vpop.f32.mrb[0].mxu0
  %v149 = vpop.f32.mrb[0].mxu0
  %v150 = vadd.f32 %v41, %v149
  %v151 = vpop.f32.mrb[0].mxu0
  %152 = vdwg.mxu0
  %v153 = vld [vmem:[%s3] sm:$0xf]
  %v154 = vld [vmem:[%s3 + $0x4] sm:$0xf]
  %v155 = vld [vmem:[%s3 + $0x8] sm:$0xf]
  %v156 = vld [vmem:[%s3 + $0xc] sm:$0xf]
  %v157 = vld [vmem:[%s3 + $0x10] sm:$0xf]
  %v158 = vld [vmem:[%s3 + $0x14] sm:$0xf]
  %v159 = vld [vmem:[%s3 + $0x18] sm:$0xf]
  %v160 = vld [vmem:[%s3 + $0x1c] sm:$0xf]
  %v161 = vunpack.c.l.bf16 %v153
  %v162 = vunpack.c.l.bf16 %v154
  %v163 = vunpack.c.l.bf16 %v155
  %v164 = vunpack.c.l.bf16 %v156
  %v165 = vunpack.c.l.bf16 %v157
  %v166 = vunpack.c.l.bf16 %v158
  %v167 = vunpack.c.l.bf16 %v159
  %v168 = vunpack.c.l.bf16 %v160
  %v169 = vadd.f32 %v123, %v161
  %v170 = vadd.f32 %v126, %v162
  %v171 = vadd.f32 %v131, %v163
  %v172 = vadd.f32 %v134, %v164
  %v173 = vadd.f32 %v139, %v165
  %v174 = vadd.f32 %v142, %v166
  %v175 = vadd.f32 %v147, %v167
  %v176 = vadd.f32 %v150, %v168
  %v177 = vsel %vm75, %v169, 0.0
  %178 = vadd.xlane.f32.xlu0 %v177
  %v179 = vpop.xlane.xlu0 %178
  %v180 = vsel %vm75, %v170, 0.0
  %181 = vadd.xlane.f32.xlu0 %v180
  %v182 = vpop.xlane.xlu0 %181
  %v183 = vsel %vm75, %v171, 0.0
  %184 = vadd.xlane.f32.xlu0 %v183
  %v185 = vpop.xlane.xlu0 %184
  %v186 = vsel %vm75, %v172, 0.0
  %187 = vadd.xlane.f32.xlu0 %v186
  %v188 = vpop.xlane.xlu0 %187
  %v189 = vsel %vm75, %v173, 0.0
  %190 = vadd.xlane.f32.xlu0 %v189
  %v191 = vpop.xlane.xlu0 %190
  %v192 = vsel %vm75, %v174, 0.0
  %193 = vadd.xlane.f32.xlu0 %v192
  %v194 = vpop.xlane.xlu0 %193
  %v195 = vsel %vm75, %v175, 0.0
  %196 = vadd.xlane.f32.xlu0 %v195
  %v197 = vpop.xlane.xlu0 %196
  %v198 = vsel %vm75, %v176, 0.0
  %199 = vadd.xlane.f32.xlu0 %v198
  %v200 = vpop.xlane.xlu0 %199
  %v201 = vrcp.pop 32.0
  %v202 = vmul.f32 %v179, %v201
  %v203 = vmul.f32 %v182, %v201
  %v204 = vmul.f32 %v185, %v201
  %v205 = vmul.f32 %v188, %v201
  %v206 = vmul.f32 %v191, %v201
  %v207 = vmul.f32 %v194, %v201
  %v208 = vmul.f32 %v197, %v201
  %v209 = vmul.f32 %v200, %v201
  %v210 = vsub.f32 %v169, %v202
  %v211 = vsub.f32 %v170, %v203
  %v212 = vsub.f32 %v171, %v204
  %v213 = vsub.f32 %v172, %v205
  %v214 = vsub.f32 %v173, %v206
  %v215 = vsub.f32 %v174, %v207
  %v216 = vsub.f32 %v175, %v208
  %v217 = vsub.f32 %v176, %v209
  %v218 = vmul.f32 %v210, %v210
  %v219 = vmul.f32 %v211, %v211
  %v220 = vmul.f32 %v212, %v212
  %v221 = vmul.f32 %v213, %v213
  %v222 = vmul.f32 %v214, %v214
  %v223 = vmul.f32 %v215, %v215
  %v224 = vmul.f32 %v216, %v216
  %v225 = vmul.f32 %v217, %v217
  %v226 = vsel %vm75, %v218, 0.0
  %227 = vadd.xlane.f32.xlu0 %v226
  %v228 = vpop.xlane.xlu0 %227
  %v229 = vsel %vm75, %v219, 0.0
  %230 = vadd.xlane.f32.xlu0 %v229
  %v231 = vpop.xlane.xlu0 %230
  %v232 = vsel %vm75, %v220, 0.0
  %233 = vadd.xlane.f32.xlu0 %v232
  %v234 = vpop.xlane.xlu0 %233
  %v235 = vsel %vm75, %v221, 0.0
  %236 = vadd.xlane.f32.xlu0 %v235
  %v237 = vpop.xlane.xlu0 %236
  %v238 = vsel %vm75, %v222, 0.0
  %239 = vadd.xlane.f32.xlu0 %v238
  %v240 = vpop.xlane.xlu0 %239
  %v241 = vsel %vm75, %v223, 0.0
  %242 = vadd.xlane.f32.xlu0 %v241
  %v243 = vpop.xlane.xlu0 %242
  %v244 = vsel %vm75, %v224, 0.0
  %245 = vadd.xlane.f32.xlu0 %v244
  %v246 = vpop.xlane.xlu0 %245
  %v247 = vsel %vm75, %v225, 0.0
  %248 = vadd.xlane.f32.xlu0 %v247
  %v249 = vpop.xlane.xlu0 %248
  %v250 = vmul.f32 %v228, %v201
  %v251 = vmul.f32 %v231, %v201
  %v252 = vmul.f32 %v234, %v201
  %v253 = vmul.f32 %v237, %v201
  %v254 = vmul.f32 %v240, %v201
  %v255 = vmul.f32 %v243, %v201
  %v256 = vmul.f32 %v246, %v201
  %v257 = vmul.f32 %v249, %v201
  %v258 = vadd.f32 %v250, 1e-12
  %v259 = vadd.f32 %v251, 1e-12
  %v260 = vadd.f32 %v252, 1e-12
  %v261 = vadd.f32 %v253, 1e-12
  %v262 = vadd.f32 %v254, 1e-12
  %v263 = vadd.f32 %v255, 1e-12
  %v264 = vadd.f32 %v256, 1e-12
  %v265 = vadd.f32 %v257, 1e-12
  %v266 = vrsqrt.pop %v258
  %v267 = vrsqrt.pop %v259
  %v268 = vrsqrt.pop %v260
  %v269 = vrsqrt.pop %v261
  %v270 = vrsqrt.pop %v262
  %v271 = vrsqrt.pop %v263
  %v272 = vrsqrt.pop %v264
  %v273 = vrsqrt.pop %v265
  %v274 = vmul.f32 %v210, %v266
  %v275 = vmul.f32 %v211, %v267
  %v276 = vmul.f32 %v212, %v268
  %v277 = vmul.f32 %v213, %v269
  %v278 = vmul.f32 %v214, %v270
  %v279 = vmul.f32 %v215, %v271
  %v280 = vmul.f32 %v216, %v272
  %v281 = vmul.f32 %v217, %v273
  %v282 = vld [vmem:[%s4] sm:$0x1]
  %v284 = vlaneseq
  %v285 = vshrl.u32 %v284, 7
  %v286 = vsub.s32 0, %v285
  %v287 = vrot.slane %v282, %v286
  %v289 = vmul.f32 %v274, %v287
  %v290 = vmul.f32 %v275, %v287
  %v291 = vmul.f32 %v276, %v287
  %v292 = vmul.f32 %v277, %v287
  %v293 = vmul.f32 %v278, %v287
  %v294 = vmul.f32 %v279, %v287
  %v295 = vmul.f32 %v280, %v287
  %v296 = vmul.f32 %v281, %v287
  %v297 = vld [vmem:[%s5] sm:$0x1]
  %v299 = vlaneseq
  %v300 = vshrl.u32 %v299, 7
  %v301 = vsub.s32 0, %v300
  %v302 = vrot.slane %v297, %v301
  %v304 = vadd.f32 %v289, %v302
  %v305 = vadd.f32 %v290, %v302
  %v306 = vadd.f32 %v291, %v302
  %v307 = vadd.f32 %v292, %v302
  %v308 = vadd.f32 %v293, %v302
  %v309 = vadd.f32 %v294, %v302
  %v310 = vadd.f32 %v295, %v302
  %v311 = vadd.f32 %v296, %v302
  %v312 = vpack.c.bf16 %v305, %v304
  %v313 = vpack.c.bf16 %v307, %v306
  %v314 = vpack.c.bf16 %v309, %v308
  %v315 = vpack.c.bf16 %v311, %v310
  %v320 = vunpack.c.l.b16 %v312
  %v321 = vunpack.c.h.b16 %v312
  %v322 = vunpack.c.l.b16 %v313
  %v323 = vunpack.c.h.b16 %v313
  %v324 = vunpack.c.l.b16 %v314
  %v325 = vunpack.c.h.b16 %v314
  %v326 = vunpack.c.l.b16 %v315
  %v327 = vunpack.c.h.b16 %v315
  %v328 = vpack.c.b16 %v320, %v320
  %v329 = vpack.c.b16 %v321, %v321
  %v330 = vpack.c.b16 %v322, %v322
  %v331 = vpack.c.b16 %v323, %v323
  %v332 = vpack.c.b16 %v324, %v324
  %v333 = vpack.c.b16 %v325, %v325
  %v334 = vpack.c.b16 %v326, %v326
  %v335 = vpack.c.b16 %v327, %v327
  %vm344 = vcmask 257024
  %345 = vst.msk [vmem:[%s6] sm:$0xf] %vm344, %v328
  %346 = vst.msk [vmem:[%s6 + $0x4] sm:$0xf] %vm344, %v329
  %347 = vst.msk [vmem:[%s6 + $0x8] sm:$0xf] %vm344, %v330
  %348 = vst.msk [vmem:[%s6 + $0xc] sm:$0xf] %vm344, %v331
  %349 = vst.msk [vmem:[%s6 + $0x10] sm:$0xf] %vm344, %v332
  %350 = vst.msk [vmem:[%s6 + $0x14] sm:$0xf] %vm344, %v333
  %351 = vst.msk [vmem:[%s6 + $0x18] sm:$0xf] %vm344, %v334
  %352 = vst.msk [vmem:[%s6 + $0x1c] sm:$0xf] %vm344, %v335
  // Predicated region
  $region26: #{_lambda_.16} parent=0 // pred_check
    _
  $region27: #{_lambda_.16} parent=0 // pred_check_branch
    %354 = sbr.rel (0) target = $region29
  $region28: #{_lambda_.16} parent=0 // pred_region
    _
  $region29: #{_lambda_.16} parent=0 // pred_fallthru
    _
  // Predicated region
  $region30: #{_lambda_.16} parent=0 // pred_check
    _
  $region31: #{_lambda_.16} parent=0 // pred_check_branch
    %356 = sbr.rel (0) target = $region33
  $region32: #{_lambda_.16} parent=0 // pred_region
    _
  $region33: #{_lambda_.16} parent=0 // pred_fallthru
    _

// kernel: _lambda_.18
$region0: #{_lambda_.18}
  #allocation0 [shape = 'u32[]', space=smem, size = 0x4, offset = 0x4, fixed_abs, tag = 'smem constant byte address 0x4 - core index']
  #allocation1 [shape = 'u32[144,128]{1,0:T(1,128)}', space=vmem, size = 0x12000, scoped, tag = 'internal scratch']
  %s0 = inlined_call_operand.vmem [shape: bf16[64,64], index: 0, kind: input, shape index: {}]
  %s1 = inlined_call_operand.vmem [shape: bf16[64,32], index: 1, kind: input, shape index: {}]
  %s2 = inlined_call_operand.vmem [shape: f32[1,32], index: 2, kind: input, shape index: {}]
  %s3 = inlined_call_operand.vmem [shape: bf16[64,32], index: 3, kind: input, shape index: {}]
  %s4 = inlined_call_operand.vmem [shape: f32[1,32], index: 4, kind: input, shape index: {}]
  %s5 = inlined_call_operand.vmem [shape: f32[1,32], index: 5, kind: input, shape index: {}]
  %s6 = inlined_call_operand.vmem [shape: bf16[64,32], index: 6, kind: output, shape index: {}]
  %s7 = sld [smem:[#allocation0]]
  $region34: #{_lambda_.18} parent=0
    _
  %s9 = ssub.s32 1, %s7
  %s10 = scalar_select 0, %s9, %s7
  // Predicated region
  $region2: #{_lambda_.18} parent=0 // pred_check
    _
  $region3: #{_lambda_.18} parent=0 // pred_check_branch
    %12 = sbr.rel (0) target = $region5
  $region4: #{_lambda_.18} parent=0 // pred_region
    _
  $region5: #{_lambda_.18} parent=0 // pred_fallthru
    _
  // Predicated region
  $region6: #{_lambda_.18} parent=0 // pred_check
    _
  $region7: #{_lambda_.18} parent=0 // pred_check_branch
    %14 = sbr.rel (0) target = $region9
  $region8: #{_lambda_.18} parent=0 // pred_region
    _
  $region9: #{_lambda_.18} parent=0 // pred_fallthru
    _
  // Predicated region
  $region10: #{_lambda_.18} parent=0 // pred_check
    _
  $region11: #{_lambda_.18} parent=0 // pred_check_branch
    %16 = sbr.rel (0) target = $region13
  $region12: #{_lambda_.18} parent=0 // pred_region
    _
  $region13: #{_lambda_.18} parent=0 // pred_fallthru
    _
  // Predicated region
  $region14: #{_lambda_.18} parent=0 // pred_check
    _
  $region15: #{_lambda_.18} parent=0 // pred_check_branch
    %18 = sbr.rel (0) target = $region17
  $region16: #{_lambda_.18} parent=0 // pred_region
    _
  $region17: #{_lambda_.18} parent=0 // pred_fallthru
    _
  // Predicated region
  $region18: #{_lambda_.18} parent=0 // pred_check
    _
  $region19: #{_lambda_.18} parent=0 // pred_check_branch
    %20 = sbr.rel (0) target = $region21
  $region20: #{_lambda_.18} parent=0 // pred_region
    _
  $region21: #{_lambda_.18} parent=0 // pred_fallthru
    _
  // Predicated region
  $region22: #{_lambda_.18} parent=0 // pred_check
    _
  $region23: #{_lambda_.18} parent=0 // pred_check_branch
    %22 = sbr.rel (0) target = $region25
  $region24: #{_lambda_.18} parent=0 // pred_region
    _
  $region25: #{_lambda_.18} parent=0 // pred_fallthru
    _
  %v24 = vld [vmem:[%s0] sm:$0xf]
  %v25 = vld [vmem:[%s0 + $0x4] sm:$0xf]
  %v26 = vld [vmem:[%s0 + $0x8] sm:$0xf]
  %v27 = vld [vmem:[%s0 + $0xc] sm:$0xf]
  %v28 = vld [vmem:[%s0 + $0x10] sm:$0xf]
  %v29 = vld [vmem:[%s0 + $0x14] sm:$0xf]
  %v30 = vld [vmem:[%s0 + $0x18] sm:$0xf]
  %v31 = vld [vmem:[%s0 + $0x1c] sm:$0xf]
  %v32 = vld [vmem:[%s1] sm:$0xf]
  %v33 = vld [vmem:[%s1 + $0x4] sm:$0xf]
  %v34 = vld [vmem:[%s1 + $0x8] sm:$0xf]
  %v35 = vld [vmem:[%s1 + $0xc] sm:$0xf]
  %v36 = vld [vmem:[%s1 + $0x10] sm:$0xf]
  %v37 = vld [vmem:[%s1 + $0x14] sm:$0xf]
  %v38 = vld [vmem:[%s1 + $0x18] sm:$0xf]
  %v39 = vld [vmem:[%s1 + $0x1c] sm:$0xf]
  %v40 = vld [vmem:[%s2] sm:$0x1]
  %v42 = vlaneseq
  %v43 = vshrl.u32 %v42, 7
  %v44 = vsub.s32 0, %v43
  %v45 = vrot.slane %v40, %v44
  %v55 = vunpack.c.l.b16 %v24
  %v56 = vunpack.c.l.b16 %v25
  %v57 = vunpack.c.l.b16 %v26
  %v58 = vunpack.c.l.b16 %v27
  %v59 = vunpack.c.l.b16 %v28
  %v60 = vunpack.c.l.b16 %v29
  %v61 = vunpack.c.l.b16 %v30
  %v62 = vunpack.c.l.b16 %v31
  %v63 = vpack.c.b16 %v56, %v55
  %v64 = vpack.c.b16 %v58, %v57
  %v65 = vpack.c.b16 %v60, %v59
  %v66 = vpack.c.b16 %v62, %v61
  %v75 = vunpack.c.l.b16 %v32
  %v76 = vunpack.c.l.b16 %v33
  %v77 = vunpack.c.l.b16 %v34
  %v78 = vunpack.c.l.b16 %v35
  %v79 = vunpack.c.l.b16 %v36
  %v80 = vunpack.c.l.b16 %v37
  %v81 = vunpack.c.l.b16 %v38
  %v82 = vunpack.c.l.b16 %v39
  %v83 = vpack.c.b16 %v76, %v75
  %v84 = vpack.c.b16 %v78, %v77
  %v85 = vpack.c.b16 %v80, %v79
  %v86 = vpack.c.b16 %v82, %v81
  %vm91 = vcmask 523264
  %v93 = vsel %vm91, %v63, 0
  %v96 = vsel %vm91, %v64, 0
  %v99 = vsel %vm91, %v65, 0
  %v102 = vsel %vm91, %v66, 0
  %104 = vmatprep.subr.bf16.mxu0 0
  %105 = vmatpush1.bf16.msra.mxu0 %v83
  %106 = vmatprep.subr.bf16.mxu0 0
  %107 = vmatpush1.bf16.msra.mxu0 %v84
  %108 = vmatprep.subr.bf16.mxu0 0
  %109 = vmatpush1.bf16.msra.mxu0 %v85
  %110 = vmatprep.subr.bf16.mxu0 0
  %111 = vmatpush1.bf16.msra.mxu0 %v86
  %112 = vmatprep.subr.bf16.mxu0 0
  %113 = vmatpush1.bf16.msra.mxu0 0
  %114 = vmatprep.subr.bf16.mxu0 0
  %115 = vmatpush1.bf16.msra.mxu0 0
  %116 = vmatprep.subr.bf16.mxu0 0
  %117 = vmatpush1.bf16.msra.mxu0 0
  %118 = vmatprep.subr.bf16.mxu0 0
  %119 = vmatpush1.bf16.msra.mxu0 0
  %120 = vmatprep.subr.bf16.mxu0 0
  %121 = vmatpush1.bf16.msra.mxu0 0
  %122 = vmatprep.subr.bf16.mxu0 0
  %123 = vmatpush1.bf16.msra.mxu0 0
  %124 = vmatprep.subr.bf16.mxu0 0
  %125 = vmatpush1.bf16.msra.mxu0 0
  %126 = vmatprep.subr.bf16.mxu0 0
  %127 = vmatpush1.bf16.msra.mxu0 0
  %128 = vmatprep.subr.bf16.mxu0 0
  %129 = vmatpush1.bf16.msra.mxu0 0
  %130 = vmatprep.subr.bf16.mxu0 0
  %131 = vmatpush1.bf16.msra.mxu0 0
  %132 = vmatprep.subr.bf16.mxu0 0
  %133 = vmatpush1.bf16.msra.mxu0 0
  %134 = vmatprep.subr.bf16.mxu0 0
  %135 = vmatpush1.bf16.msra.mxu0 0
  %136 = vmatprep.mubr.bf16.mxu0 0
  %137 = vmatmul.mubr.bf16.gmra.mrb[0].mxu0 %v93
  %v138 = vpop.f32.mrb[0].mxu0
  %v139 = vadd.f32 %v45, %v138
  %v140 = vpop.f32.mrb[0].mxu0
  %v141 = vpop.f32.mrb[0].mxu0
  %v142 = vadd.f32 %v45, %v141
  %v143 = vpop.f32.mrb[0].mxu0
  %144 = vmatprep.mubr.bf16.mxu0 0
  %145 = vmatmul.mubr.bf16.gmra.mrb[0].mxu0 %v96
  %v146 = vpop.f32.mrb[0].mxu0
  %v147 = vadd.f32 %v45, %v146
  %v148 = vpop.f32.mrb[0].mxu0
  %v149 = vpop.f32.mrb[0].mxu0
  %v150 = vadd.f32 %v45, %v149
  %v151 = vpop.f32.mrb[0].mxu0
  %152 = vmatprep.mubr.bf16.mxu0 0
  %153 = vmatmul.mubr.bf16.gmra.mrb[0].mxu0 %v99
  %v154 = vpop.f32.mrb[0].mxu0
  %v155 = vadd.f32 %v45, %v154
  %v156 = vpop.f32.mrb[0].mxu0
  %v157 = vpop.f32.mrb[0].mxu0
  %v158 = vadd.f32 %v45, %v157
  %v159 = vpop.f32.mrb[0].mxu0
  %160 = vmatprep.mubr.bf16.mxu0 0
  %161 = vmatmul.mubr.bf16.gmra.mrb[0].mxu0 %v102
  %v162 = vpop.f32.mrb[0].mxu0
  %v163 = vadd.f32 %v45, %v162
  %v164 = vpop.f32.mrb[0].mxu0
  %v165 = vpop.f32.mrb[0].mxu0
  %v166 = vadd.f32 %v45, %v165
  %v167 = vpop.f32.mrb[0].mxu0
  %168 = vdwg.mxu0
  %v169 = vld [vmem:[%s3] sm:$0xf]
  %v170 = vld [vmem:[%s3 + $0x4] sm:$0xf]
  %v171 = vld [vmem:[%s3 + $0x8] sm:$0xf]
  %v172 = vld [vmem:[%s3 + $0xc] sm:$0xf]
  %v173 = vld [vmem:[%s3 + $0x10] sm:$0xf]
  %v174 = vld [vmem:[%s3 + $0x14] sm:$0xf]
  %v175 = vld [vmem:[%s3 + $0x18] sm:$0xf]
  %v176 = vld [vmem:[%s3 + $0x1c] sm:$0xf]
  %v177 = vunpack.c.l.bf16 %v169
  %v178 = vunpack.c.l.bf16 %v170
  %v179 = vunpack.c.l.bf16 %v171
  %v180 = vunpack.c.l.bf16 %v172
  %v181 = vunpack.c.l.bf16 %v173
  %v182 = vunpack.c.l.bf16 %v174
  %v183 = vunpack.c.l.bf16 %v175
  %v184 = vunpack.c.l.bf16 %v176
  %v185 = vadd.f32 %v139, %v177
  %v186 = vadd.f32 %v142, %v178
  %v187 = vadd.f32 %v147, %v179
  %v188 = vadd.f32 %v150, %v180
  %v189 = vadd.f32 %v155, %v181
  %v190 = vadd.f32 %v158, %v182
  %v191 = vadd.f32 %v163, %v183
  %v192 = vadd.f32 %v166, %v184
  %vm193 = vcmask 261120
  %v194 = vsel %vm193, %v185, 0.0
  %195 = vadd.xlane.f32.xlu0 %v194
  %v196 = vpop.xlane.xlu0 %195
  %v197 = vsel %vm193, %v186, 0.0
  %198 = vadd.xlane.f32.xlu0 %v197
  %v199 = vpop.xlane.xlu0 %198
  %v200 = vsel %vm193, %v187, 0.0
  %201 = vadd.xlane.f32.xlu0 %v200
  %v202 = vpop.xlane.xlu0 %201
  %v203 = vsel %vm193, %v188, 0.0
  %204 = vadd.xlane.f32.xlu0 %v203
  %v205 = vpop.xlane.xlu0 %204
  %v206 = vsel %vm193, %v189, 0.0
  %207 = vadd.xlane.f32.xlu0 %v206
  %v208 = vpop.xlane.xlu0 %207
  %v209 = vsel %vm193, %v190, 0.0
  %210 = vadd.xlane.f32.xlu0 %v209
  %v211 = vpop.xlane.xlu0 %210
  %v212 = vsel %vm193, %v191, 0.0
  %213 = vadd.xlane.f32.xlu0 %v212
  %v214 = vpop.xlane.xlu0 %213
  %v215 = vsel %vm193, %v192, 0.0
  %216 = vadd.xlane.f32.xlu0 %v215
  %v217 = vpop.xlane.xlu0 %216
  %v218 = vrcp.pop 32.0
  %v219 = vmul.f32 %v196, %v218
  %v220 = vmul.f32 %v199, %v218
  %v221 = vmul.f32 %v202, %v218
  %v222 = vmul.f32 %v205, %v218
  %v223 = vmul.f32 %v208, %v218
  %v224 = vmul.f32 %v211, %v218
  %v225 = vmul.f32 %v214, %v218
  %v226 = vmul.f32 %v217, %v218
  %v227 = vsub.f32 %v185, %v219
  %v228 = vsub.f32 %v186, %v220
  %v229 = vsub.f32 %v187, %v221
  %v230 = vsub.f32 %v188, %v222
  %v231 = vsub.f32 %v189, %v223
  %v232 = vsub.f32 %v190, %v224
  %v233 = vsub.f32 %v191, %v225
  %v234 = vsub.f32 %v192, %v226
  %v235 = vmul.f32 %v227, %v227
  %v236 = vmul.f32 %v228, %v228
  %v237 = vmul.f32 %v229, %v229
  %v238 = vmul.f32 %v230, %v230
  %v239 = vmul.f32 %v231, %v231
  %v240 = vmul.f32 %v232, %v232
  %v241 = vmul.f32 %v233, %v233
  %v242 = vmul.f32 %v234, %v234
  %v243 = vsel %vm193, %v235, 0.0
  %244 = vadd.xlane.f32.xlu0 %v243
  %v245 = vpop.xlane.xlu0 %244
  %v246 = vsel %vm193, %v236, 0.0
  %247 = vadd.xlane.f32.xlu0 %v246
  %v248 = vpop.xlane.xlu0 %247
  %v249 = vsel %vm193, %v237, 0.0
  %250 = vadd.xlane.f32.xlu0 %v249
  %v251 = vpop.xlane.xlu0 %250
  %v252 = vsel %vm193, %v238, 0.0
  %253 = vadd.xlane.f32.xlu0 %v252
  %v254 = vpop.xlane.xlu0 %253
  %v255 = vsel %vm193, %v239, 0.0
  %256 = vadd.xlane.f32.xlu0 %v255
  %v257 = vpop.xlane.xlu0 %256
  %v258 = vsel %vm193, %v240, 0.0
  %259 = vadd.xlane.f32.xlu0 %v258
  %v260 = vpop.xlane.xlu0 %259
  %v261 = vsel %vm193, %v241, 0.0
  %262 = vadd.xlane.f32.xlu0 %v261
  %v263 = vpop.xlane.xlu0 %262
  %v264 = vsel %vm193, %v242, 0.0
  %265 = vadd.xlane.f32.xlu0 %v264
  %v266 = vpop.xlane.xlu0 %265
  %v267 = vmul.f32 %v245, %v218
  %v268 = vmul.f32 %v248, %v218
  %v269 = vmul.f32 %v251, %v218
  %v270 = vmul.f32 %v254, %v218
  %v271 = vmul.f32 %v257, %v218
  %v272 = vmul.f32 %v260, %v218
  %v273 = vmul.f32 %v263, %v218
  %v274 = vmul.f32 %v266, %v218
  %v275 = vadd.f32 %v267, 1e-12
  %v276 = vadd.f32 %v268, 1e-12
  %v277 = vadd.f32 %v269, 1e-12
  %v278 = vadd.f32 %v270, 1e-12
  %v279 = vadd.f32 %v271, 1e-12
  %v280 = vadd.f32 %v272, 1e-12
  %v281 = vadd.f32 %v273, 1e-12
  %v282 = vadd.f32 %v274, 1e-12
  %v283 = vrsqrt.pop %v275
  %v284 = vrsqrt.pop %v276
  %v285 = vrsqrt.pop %v277
  %v286 = vrsqrt.pop %v278
  %v287 = vrsqrt.pop %v279
  %v288 = vrsqrt.pop %v280
  %v289 = vrsqrt.pop %v281
  %v290 = vrsqrt.pop %v282
  %v291 = vmul.f32 %v227, %v283
  %v292 = vmul.f32 %v228, %v284
  %v293 = vmul.f32 %v229, %v285
  %v294 = vmul.f32 %v230, %v286
  %v295 = vmul.f32 %v231, %v287
  %v296 = vmul.f32 %v232, %v288
  %v297 = vmul.f32 %v233, %v289
  %v298 = vmul.f32 %v234, %v290
  %v299 = vld [vmem:[%s4] sm:$0x1]
  %v301 = vlaneseq
  %v302 = vshrl.u32 %v301, 7
  %v303 = vsub.s32 0, %v302
  %v304 = vrot.slane %v299, %v303
  %v306 = vmul.f32 %v291, %v304
  %v307 = vmul.f32 %v292, %v304
  %v308 = vmul.f32 %v293, %v304
  %v309 = vmul.f32 %v294, %v304
  %v310 = vmul.f32 %v295, %v304
  %v311 = vmul.f32 %v296, %v304
  %v312 = vmul.f32 %v297, %v304
  %v313 = vmul.f32 %v298, %v304
  %v314 = vld [vmem:[%s5] sm:$0x1]
  %v316 = vlaneseq
  %v317 = vshrl.u32 %v316, 7
  %v318 = vsub.s32 0, %v317
  %v319 = vrot.slane %v314, %v318
  %v321 = vadd.f32 %v306, %v319
  %v322 = vadd.f32 %v307, %v319
  %v323 = vadd.f32 %v308, %v319
  %v324 = vadd.f32 %v309, %v319
  %v325 = vadd.f32 %v310, %v319
  %v326 = vadd.f32 %v311, %v319
  %v327 = vadd.f32 %v312, %v319
  %v328 = vadd.f32 %v313, %v319
  %v329 = vpack.c.bf16 %v322, %v321
  %v330 = vpack.c.bf16 %v324, %v323
  %v331 = vpack.c.bf16 %v326, %v325
  %v332 = vpack.c.bf16 %v328, %v327
  %v337 = vunpack.c.l.b16 %v329
  %v338 = vunpack.c.h.b16 %v329
  %v339 = vunpack.c.l.b16 %v330
  %v340 = vunpack.c.h.b16 %v330
  %v341 = vunpack.c.l.b16 %v331
  %v342 = vunpack.c.h.b16 %v331
  %v343 = vunpack.c.l.b16 %v332
  %v344 = vunpack.c.h.b16 %v332
  %v345 = vpack.c.b16 %v337, %v337
  %v346 = vpack.c.b16 %v338, %v338
  %v347 = vpack.c.b16 %v339, %v339
  %v348 = vpack.c.b16 %v340, %v340
  %v349 = vpack.c.b16 %v341, %v341
  %v350 = vpack.c.b16 %v342, %v342
  %v351 = vpack.c.b16 %v343, %v343
  %v352 = vpack.c.b16 %v344, %v344
  %vm361 = vcmask 257024
  %362 = vst.msk [vmem:[%s6] sm:$0xf] %vm361, %v345
  %363 = vst.msk [vmem:[%s6 + $0x4] sm:$0xf] %vm361, %v346
  %364 = vst.msk [vmem:[%s6 + $0x8] sm:$0xf] %vm361, %v347
  %365 = vst.msk [vmem:[%s6 + $0xc] sm:$0xf] %vm361, %v348
  %366 = vst.msk [vmem:[%s6 + $0x10] sm:$0xf] %vm361, %v349
  %367 = vst.msk [vmem:[%s6 + $0x14] sm:$0xf] %vm361, %v350
  %368 = vst.msk [vmem:[%s6 + $0x18] sm:$0xf] %vm361, %v351
  %369 = vst.msk [vmem:[%s6 + $0x1c] sm:$0xf] %vm361, %v352
  // Predicated region
  $region26: #{_lambda_.18} parent=0 // pred_check
    _
  $region27: #{_lambda_.18} parent=0 // pred_check_branch
    %371 = sbr.rel (0) target = $region29
  $region28: #{_lambda_.18} parent=0 // pred_region
    _
  $region29: #{_lambda_.18} parent=0 // pred_fallthru
    _
  // Predicated region
  $region30: #{_lambda_.18} parent=0 // pred_check
    _
  $region31: #{_lambda_.18} parent=0 // pred_check_branch
    %373 = sbr.rel (0) target = $region33
  $region32: #{_lambda_.18} parent=0 // pred_region
    _
  $region33: #{_lambda_.18} parent=0 // pred_fallthru
    _

// kernel: _lambda_.17
$region0: #{_lambda_.17}
  #allocation0 [shape = 'u32[]', space=smem, size = 0x4, offset = 0x4, fixed_abs, tag = 'smem constant byte address 0x4 - core index']
  #allocation1 [shape = 'u32[144,128]{1,0:T(1,128)}', space=vmem, size = 0x12000, scoped, tag = 'internal scratch']
  %s0 = inlined_call_operand.vmem [shape: bf16[64,32], index: 0, kind: input, shape index: {}]
  %s1 = inlined_call_operand.vmem [shape: bf16[32,64], index: 1, kind: input, shape index: {}]
  %s2 = inlined_call_operand.vmem [shape: f32[1,64], index: 2, kind: input, shape index: {}]
  %s3 = inlined_call_operand.vmem [shape: bf16[64,64], index: 3, kind: output, shape index: {}]
  %s4 = sld [smem:[#allocation0]]
  $region22: #{_lambda_.17} parent=0
    _
  %s6 = ssub.s32 1, %s4
  %s7 = scalar_select 0, %s6, %s4
  // Predicated region
  $region2: #{_lambda_.17} parent=0 // pred_check
    _
  $region3: #{_lambda_.17} parent=0 // pred_check_branch
    %9 = sbr.rel (0) target = $region5
  $region4: #{_lambda_.17} parent=0 // pred_region
    _
  $region5: #{_lambda_.17} parent=0 // pred_fallthru
    _
  // Predicated region
  $region6: #{_lambda_.17} parent=0 // pred_check
    _
  $region7: #{_lambda_.17} parent=0 // pred_check_branch
    %11 = sbr.rel (0) target = $region9
  $region8: #{_lambda_.17} parent=0 // pred_region
    _
  $region9: #{_lambda_.17} parent=0 // pred_fallthru
    _
  // Predicated region
  $region10: #{_lambda_.17} parent=0 // pred_check
    _
  $region11: #{_lambda_.17} parent=0 // pred_check_branch
    %13 = sbr.rel (0) target = $region13
  $region12: #{_lambda_.17} parent=0 // pred_region
    _
  $region13: #{_lambda_.17} parent=0 // pred_fallthru
    _
  %v15 = vld [vmem:[%s0] sm:$0xf]
  %v16 = vld [vmem:[%s0 + $0x4] sm:$0xf]
  %v17 = vld [vmem:[%s0 + $0x8] sm:$0xf]
  %v18 = vld [vmem:[%s0 + $0xc] sm:$0xf]
  %v19 = vld [vmem:[%s0 + $0x10] sm:$0xf]
  %v20 = vld [vmem:[%s0 + $0x14] sm:$0xf]
  %v21 = vld [vmem:[%s0 + $0x18] sm:$0xf]
  %v22 = vld [vmem:[%s0 + $0x1c] sm:$0xf]
  %v23 = vld [vmem:[%s1] sm:$0xf]
  %v24 = vld [vmem:[%s1 + $0x4] sm:$0xf]
  %v25 = vld [vmem:[%s1 + $0x8] sm:$0xf]
  %v26 = vld [vmem:[%s1 + $0xc] sm:$0xf]
  %v27 = vld [vmem:[%s2] sm:$0x1]
  %v29 = vlaneseq
  %v30 = vshrl.u32 %v29, 7
  %v31 = vsub.s32 0, %v30
  %v32 = vrot.slane %v27, %v31
  %v42 = vunpack.c.l.b16 %v15
  %v43 = vunpack.c.l.b16 %v16
  %v44 = vunpack.c.l.b16 %v17
  %v45 = vunpack.c.l.b16 %v18
  %v46 = vunpack.c.l.b16 %v19
  %v47 = vunpack.c.l.b16 %v20
  %v48 = vunpack.c.l.b16 %v21
  %v49 = vunpack.c.l.b16 %v22
  %v50 = vpack.c.b16 %v43, %v42
  %v51 = vpack.c.b16 %v45, %v44
  %v52 = vpack.c.b16 %v47, %v46
  %v53 = vpack.c.b16 %v49, %v48
  %v58 = vunpack.c.l.b16 %v23
  %v59 = vunpack.c.l.b16 %v24
  %v60 = vunpack.c.l.b16 %v25
  %v61 = vunpack.c.l.b16 %v26
  %v62 = vpack.c.b16 %v59, %v58
  %v63 = vpack.c.b16 %v61, %v60
  %vm66 = vcmask 261120
  %v68 = vsel %vm66, %v50, 0
  %v71 = vsel %vm66, %v51, 0
  %v74 = vsel %vm66, %v52, 0
  %v77 = vsel %vm66, %v53, 0
  %79 = vmatprep.subr.bf16.mxu0 0
  %80 = vmatpush1.bf16.msra.mxu0 %v62
  %81 = vmatprep.subr.bf16.mxu0 0
  %82 = vmatpush1.bf16.msra.mxu0 %v63
  %83 = vmatprep.subr.bf16.mxu0 0
  %84 = vmatpush1.bf16.msra.mxu0 0
  %85 = vmatprep.subr.bf16.mxu0 0
  %86 = vmatpush1.bf16.msra.mxu0 0
  %87 = vmatprep.subr.bf16.mxu0 0
  %88 = vmatpush1.bf16.msra.mxu0 0
  %89 = vmatprep.subr.bf16.mxu0 0
  %90 = vmatpush1.bf16.msra.mxu0 0
  %91 = vmatprep.subr.bf16.mxu0 0
  %92 = vmatpush1.bf16.msra.mxu0 0
  %93 = vmatprep.subr.bf16.mxu0 0
  %94 = vmatpush1.bf16.msra.mxu0 0
  %95 = vmatprep.subr.bf16.mxu0 0
  %96 = vmatpush1.bf16.msra.mxu0 0
  %97 = vmatprep.subr.bf16.mxu0 0
  %98 = vmatpush1.bf16.msra.mxu0 0
  %99 = vmatprep.subr.bf16.mxu0 0
  %100 = vmatpush1.bf16.msra.mxu0 0
  %101 = vmatprep.subr.bf16.mxu0 0
  %102 = vmatpush1.bf16.msra.mxu0 0
  %103 = vmatprep.subr.bf16.mxu0 0
  %104 = vmatpush1.bf16.msra.mxu0 0
  %105 = vmatprep.subr.bf16.mxu0 0
  %106 = vmatpush1.bf16.msra.mxu0 0
  %107 = vmatprep.subr.bf16.mxu0 0
  %108 = vmatpush1.bf16.msra.mxu0 0
  %109 = vmatprep.subr.bf16.mxu0 0
  %110 = vmatpush1.bf16.msra.mxu0 0
  %111 = vmatprep.mubr.bf16.mxu0 0
  %112 = vmatmul.mubr.bf16.gmra.mrb[0].mxu0 %v68
  %v113 = vpop.f32.mrb[0].mxu0
  %v114 = vadd.f32 %v32, %v113
  %v115 = vpop.f32.mrb[0].mxu0
  %v116 = vpop.f32.mrb[0].mxu0
  %v117 = vadd.f32 %v32, %v116
  %v118 = vpop.f32.mrb[0].mxu0
  %119 = vmatprep.mubr.bf16.mxu0 0
  %120 = vmatmul.mubr.bf16.gmra.mrb[0].mxu0 %v71
  %v121 = vpop.f32.mrb[0].mxu0
  %v122 = vadd.f32 %v32, %v121
  %v123 = vpop.f32.mrb[0].mxu0
  %v124 = vpop.f32.mrb[0].mxu0
  %v125 = vadd.f32 %v32, %v124
  %v126 = vpop.f32.mrb[0].mxu0
  %127 = vmatprep.mubr.bf16.mxu0 0
  %128 = vmatmul.mubr.bf16.gmra.mrb[0].mxu0 %v74
  %v129 = vpop.f32.mrb[0].mxu0
  %v130 = vadd.f32 %v32, %v129
  %v131 = vpop.f32.mrb[0].mxu0
  %v132 = vpop.f32.mrb[0].mxu0
  %v133 = vadd.f32 %v32, %v132
  %v134 = vpop.f32.mrb[0].mxu0
  %135 = vmatprep.mubr.bf16.mxu0 0
  %136 = vmatmul.mubr.bf16.gmra.mrb[0].mxu0 %v77
  %v137 = vpop.f32.mrb[0].mxu0
  %v138 = vadd.f32 %v32, %v137
  %v139 = vpop.f32.mrb[0].mxu0
  %v140 = vpop.f32.mrb[0].mxu0
  %v141 = vadd.f32 %v32, %v140
  %v142 = vpop.f32.mrb[0].mxu0
  %143 = vdwg.mxu0
  %v144 = vmul.f32 %v114, 0.5
  %v145 = vmul.f32 %v117, 0.5
  %v146 = vmul.f32 %v122, 0.5
  %v147 = vmul.f32 %v125, 0.5
  %v148 = vmul.f32 %v130, 0.5
  %v149 = vmul.f32 %v133, 0.5
  %v150 = vmul.f32 %v138, 0.5
  %v151 = vmul.f32 %v141, 0.5
  %v152 = vmul.f32 %v114, 0.70710677
  %v153 = vmul.f32 %v117, 0.70710677
  %v154 = vmul.f32 %v122, 0.70710677
  %v155 = vmul.f32 %v125, 0.70710677
  %v156 = vmul.f32 %v130, 0.70710677
  %v157 = vmul.f32 %v133, 0.70710677
  %v158 = vmul.f32 %v138, 0.70710677
  %v159 = vmul.f32 %v141, 0.70710677
  %vm160 = vcmp.lt.f32.partialorder %v152, 0.0
  %vm161 = vcmp.lt.f32.partialorder %v153, 0.0
  %vm162 = vcmp.lt.f32.partialorder %v154, 0.0
  %vm163 = vcmp.lt.f32.partialorder %v155, 0.0
  %vm164 = vcmp.lt.f32.partialorder %v156, 0.0
  %vm165 = vcmp.lt.f32.partialorder %v157, 0.0
  %vm166 = vcmp.lt.f32.partialorder %v158, 0.0
  %vm167 = vcmp.lt.f32.partialorder %v159, 0.0
  %v168 = vsel %vm160, -1.0, 1.0
  %v169 = vsel %vm161, -1.0, 1.0
  %v170 = vsel %vm162, -1.0, 1.0
  %v171 = vsel %vm163, -1.0, 1.0
  %v172 = vsel %vm164, -1.0, 1.0
  %v173 = vsel %vm165, -1.0, 1.0
  %v174 = vsel %vm166, -1.0, 1.0
  %v175 = vsel %vm167, -1.0, 1.0
  %v176 = vand.u32 2147483647, %v152
  %v177 = vand.u32 2147483647, %v153
  %v178 = vand.u32 2147483647, %v154
  %v179 = vand.u32 2147483647, %v155
  %v180 = vand.u32 2147483647, %v156
  %v181 = vand.u32 2147483647, %v157
  %v182 = vand.u32 2147483647, %v158
  %v183 = vand.u32 2147483647, %v159
  %v184 = vmul.f32 %v176, 0.3275911
  %v185 = vmul.f32 %v177, 0.3275911
  %v186 = vmul.f32 %v178, 0.3275911
  %v187 = vmul.f32 %v179, 0.3275911
  %v188 = vmul.f32 %v180, 0.3275911
  %v189 = vmul.f32 %v181, 0.3275911
  %v190 = vmul.f32 %v182, 0.3275911
  %v191 = vmul.f32 %v183, 0.3275911
  %v192 = vadd.f32 %v184, 1.0
  %v193 = vadd.f32 %v185, 1.0
  %v194 = vadd.f32 %v186, 1.0
  %v195 = vadd.f32 %v187, 1.0
  %v196 = vadd.f32 %v188, 1.0
  %v197 = vadd.f32 %v189, 1.0
  %v198 = vadd.f32 %v190, 1.0
  %v199 = vadd.f32 %v191, 1.0
  %v200 = vrcp.pop %v192
  %v201 = vmul.f32 1.0, %v200
  %v202 = vrcp.pop %v193
  %v203 = vmul.f32 1.0, %v202
  %v204 = vrcp.pop %v194
  %v205 = vmul.f32 1.0, %v204
  %v206 = vrcp.pop %v195
  %v207 = vmul.f32 1.0, %v206
  %v208 = vrcp.pop %v196
  %v209 = vmul.f32 1.0, %v208
  %v210 = vrcp.pop %v197
  %v211 = vmul.f32 1.0, %v210
  %v212 = vrcp.pop %v198
  %v213 = vmul.f32 1.0, %v212
  %v214 = vrcp.pop %v199
  %v215 = vmul.f32 1.0, %v214
  %v216 = vmul.f32 %v201, 1.0614054
  %v217 = vmul.f32 %v203, 1.0614054
  %v218 = vmul.f32 %v205, 1.0614054
  %v219 = vmul.f32 %v207, 1.0614054
  %v220 = vmul.f32 %v209, 1.0614054
  %v221 = vmul.f32 %v211, 1.0614054
  %v222 = vmul.f32 %v213, 1.0614054
  %v223 = vmul.f32 %v215, 1.0614054
  %v224 = vadd.f32 %v216, -1.4531521
  %v225 = vadd.f32 %v217, -1.4531521
  %v226 = vadd.f32 %v218, -1.4531521
  %v227 = vadd.f32 %v219, -1.4531521
  %v228 = vadd.f32 %v220, -1.4531521
  %v229 = vadd.f32 %v221, -1.4531521
  %v230 = vadd.f32 %v222, -1.4531521
  %v231 = vadd.f32 %v223, -1.4531521
  %v232 = vmul.f32 %v224, %v201
  %v233 = vmul.f32 %v225, %v203
  %v234 = vmul.f32 %v226, %v205
  %v235 = vmul.f32 %v227, %v207
  %v236 = vmul.f32 %v228, %v209
  %v237 = vmul.f32 %v229, %v211
  %v238 = vmul.f32 %v230, %v213
  %v239 = vmul.f32 %v231, %v215
  %v240 = vadd.f32 %v232, 1.4214138
  %v241 = vadd.f32 %v233, 1.4214138
  %v242 = vadd.f32 %v234, 1.4214138
  %v243 = vadd.f32 %v235, 1.4214138
  %v244 = vadd.f32 %v236, 1.4214138
  %v245 = vadd.f32 %v237, 1.4214138
  %v246 = vadd.f32 %v238, 1.4214138
  %v247 = vadd.f32 %v239, 1.4214138
  %v248 = vmul.f32 %v240, %v201
  %v249 = vmul.f32 %v241, %v203
  %v250 = vmul.f32 %v242, %v205
  %v251 = vmul.f32 %v243, %v207
  %v252 = vmul.f32 %v244, %v209
  %v253 = vmul.f32 %v245, %v211
  %v254 = vmul.f32 %v246, %v213
  %v255 = vmul.f32 %v247, %v215
  %v256 = vadd.f32 %v248, -0.28449672
  %v257 = vadd.f32 %v249, -0.28449672
  %v258 = vadd.f32 %v250, -0.28449672
  %v259 = vadd.f32 %v251, -0.28449672
  %v260 = vadd.f32 %v252, -0.28449672
  %v261 = vadd.f32 %v253, -0.28449672
  %v262 = vadd.f32 %v254, -0.28449672
  %v263 = vadd.f32 %v255, -0.28449672
  %v264 = vmul.f32 %v256, %v201
  %v265 = vmul.f32 %v257, %v203
  %v266 = vmul.f32 %v258, %v205
  %v267 = vmul.f32 %v259, %v207
  %v268 = vmul.f32 %v260, %v209
  %v269 = vmul.f32 %v261, %v211
  %v270 = vmul.f32 %v262, %v213
  %v271 = vmul.f32 %v263, %v215
  %v272 = vadd.f32 %v264, 0.2548296
  %v273 = vadd.f32 %v265, 0.2548296
  %v274 = vadd.f32 %v266, 0.2548296
  %v275 = vadd.f32 %v267, 0.2548296
  %v276 = vadd.f32 %v268, 0.2548296
  %v277 = vadd.f32 %v269, 0.2548296
  %v278 = vadd.f32 %v270, 0.2548296
  %v279 = vadd.f32 %v271, 0.2548296
  %v280 = vmul.f32 %v272, %v201
  %v281 = vmul.f32 %v273, %v203
  %v282 = vmul.f32 %v274, %v205
  %v283 = vmul.f32 %v275, %v207
  %v284 = vmul.f32 %v276, %v209
  %v285 = vmul.f32 %v277, %v211
  %v286 = vmul.f32 %v278, %v213
  %v287 = vmul.f32 %v279, %v215
  %v288 = vsub.f32 0.0, %v176
  %v289 = vsub.f32 0.0, %v177
  %v290 = vsub.f32 0.0, %v178
  %v291 = vsub.f32 0.0, %v179
  %v292 = vsub.f32 0.0, %v180
  %v293 = vsub.f32 0.0, %v181
  %v294 = vsub.f32 0.0, %v182
  %v295 = vsub.f32 0.0, %v183
  %v296 = vmul.f32 %v288, %v176
  %v297 = vmul.f32 %v289, %v177
  %v298 = vmul.f32 %v290, %v178
  %v299 = vmul.f32 %v291, %v179
  %v300 = vmul.f32 %v292, %v180
  %v301 = vmul.f32 %v293, %v181
  %v302 = vmul.f32 %v294, %v182
  %v303 = vmul.f32 %v295, %v183
  %v304 = vmul.f32 %v296, 1.442695
  %v305 = vpow.pop %v304
  %v306 = vmul.f32 %v297, 1.442695
  %v307 = vpow.pop %v306
  %v308 = vmul.f32 %v298, 1.442695
  %v309 = vpow.pop %v308
  %v310 = vmul.f32 %v299, 1.442695
  %v311 = vpow.pop %v310
  %v312 = vmul.f32 %v300, 1.442695
  %v313 = vpow.pop %v312
  %v314 = vmul.f32 %v301, 1.442695
  %v315 = vpow.pop %v314
  %v316 = vmul.f32 %v302, 1.442695
  %v317 = vpow.pop %v316
  %v318 = vmul.f32 %v303, 1.442695
  %v319 = vpow.pop %v318
  %v320 = vmul.f32 %v280, %v305
  %v321 = vmul.f32 %v281, %v307
  %v322 = vmul.f32 %v282, %v309
  %v323 = vmul.f32 %v283, %v311
  %v324 = vmul.f32 %v284, %v313
  %v325 = vmul.f32 %v285, %v315
  %v326 = vmul.f32 %v286, %v317
  %v327 = vmul.f32 %v287, %v319
  %v328 = vsub.f32 1.0, %v320
  %v329 = vsub.f32 1.0, %v321
  %v330 = vsub.f32 1.0, %v322
  %v331 = vsub.f32 1.0, %v323
  %v332 = vsub.f32 1.0, %v324
  %v333 = vsub.f32 1.0, %v325
  %v334 = vsub.f32 1.0, %v326
  %v335 = vsub.f32 1.0, %v327
  %v336 = vmul.f32 %v168, %v328
  %v337 = vmul.f32 %v169, %v329
  %v338 = vmul.f32 %v170, %v330
  %v339 = vmul.f32 %v171, %v331
  %v340 = vmul.f32 %v172, %v332
  %v341 = vmul.f32 %v173, %v333
  %v342 = vmul.f32 %v174, %v334
  %v343 = vmul.f32 %v175, %v335
  %v344 = vadd.f32 %v336, 1.0
  %v345 = vadd.f32 %v337, 1.0
  %v346 = vadd.f32 %v338, 1.0
  %v347 = vadd.f32 %v339, 1.0
  %v348 = vadd.f32 %v340, 1.0
  %v349 = vadd.f32 %v341, 1.0
  %v350 = vadd.f32 %v342, 1.0
  %v351 = vadd.f32 %v343, 1.0
  %v352 = vmul.f32 %v144, %v344
  %v353 = vmul.f32 %v145, %v345
  %v354 = vmul.f32 %v146, %v346
  %v355 = vmul.f32 %v147, %v347
  %v356 = vmul.f32 %v148, %v348
  %v357 = vmul.f32 %v149, %v349
  %v358 = vmul.f32 %v150, %v350
  %v359 = vmul.f32 %v151, %v351
  %v360 = vpack.c.bf16 %v353, %v352
  %v361 = vpack.c.bf16 %v355, %v354
  %v362 = vpack.c.bf16 %v357, %v356
  %v363 = vpack.c.bf16 %v359, %v358
  %v368 = vunpack.c.l.b16 %v360
  %v369 = vunpack.c.h.b16 %v360
  %v370 = vunpack.c.l.b16 %v361
  %v371 = vunpack.c.h.b16 %v361
  %v372 = vunpack.c.l.b16 %v362
  %v373 = vunpack.c.h.b16 %v362
  %v374 = vunpack.c.l.b16 %v363
  %v375 = vunpack.c.h.b16 %v363
  %v376 = vpack.c.b16 %v368, %v368
  %v377 = vpack.c.b16 %v369, %v369
  %v378 = vpack.c.b16 %v370, %v370
  %v379 = vpack.c.b16 %v371, %v371
  %v380 = vpack.c.b16 %v372, %v372
  %v381 = vpack.c.b16 %v373, %v373
  %v382 = vpack.c.b16 %v374, %v374
  %v383 = vpack.c.b16 %v375, %v375
  %vm392 = vcmask 519168
  %393 = vst.msk [vmem:[%s3] sm:$0xf] %vm392, %v376
  %394 = vst.msk [vmem:[%s3 + $0x4] sm:$0xf] %vm392, %v377
  %395 = vst.msk [vmem:[%s3 + $0x8] sm:$0xf] %vm392, %v378
  %396 = vst.msk [vmem:[%s3 + $0xc] sm:$0xf] %vm392, %v379
  %397 = vst.msk [vmem:[%s3 + $0x10] sm:$0xf] %vm392, %v380
  %398 = vst.msk [vmem:[%s3 + $0x14] sm:$0xf] %vm392, %v381
  %399 = vst.msk [vmem:[%s3 + $0x18] sm:$0xf] %vm392, %v382
  %400 = vst.msk [vmem:[%s3 + $0x1c] sm:$0xf] %vm392, %v383
  // Predicated region
  $region14: #{_lambda_.17} parent=0 // pred_check
    _
  $region15: #{_lambda_.17} parent=0 // pred_check_branch
    %402 = sbr.rel (0) target = $region17
  $region16: #{_lambda_.17} parent=0 // pred_region
    _
  $region17: #{_lambda_.17} parent=0 // pred_fallthru
    _
  // Predicated region
  $region18: #{_lambda_.17} parent=0 // pred_check
    _
  $region19: #{_lambda_.17} parent=0 // pred_check_branch
    %404 = sbr.rel (0) target = $region21
  $region20: #{_lambda_.17} parent=0 // pred_region
    _
  $region21: #{_lambda_.17} parent=0 // pred_fallthru
    _

</llo_original>
